<compile_context>
chip_gen: v7x
topology: tpu7x:2x2x1
jax: 0.10.0
libtpu: 0.0.40
codegen_flags: <defaults>
</compile_context>

<pallas_src>
import math
import functools

import jax
import jax.numpy as jnp
from jax.experimental import pallas as pl
from jax.experimental.pallas import tpu as pltpu


def _layernorm(h, gamma, beta, eps=1e-5):
    # PyTorch nn.LayerNorm: biased variance, eps inside the sqrt.  f32 math.
    mean = jnp.mean(h, axis=-1, keepdims=True)
    var = jnp.mean(jnp.square(h - mean), axis=-1, keepdims=True)
    return (h - mean) * jax.lax.rsqrt(var + eps) * gamma + beta


def _gelu_exact(x):
    # PyTorch F.gelu default = exact erf formulation (kept for parity).
    return 0.5 * x * (1.0 + jax.lax.erf(x * (1.0 / math.sqrt(2.0))))


def transformer_block_kernel(
    x_ref,
    wqkv_ref, bqkv_ref,
    wo_ref, bo_ref,
    g1_ref, be1_ref,
    w1_ref, b1_ref, w2_ref, b2_ref,
    g2_ref, be2_ref,
    o_ref,
    *, num_heads, head_dim,
):
    x = x_ref[0]                                   # (S, D) f32
    S, D = x.shape
    H, Dh = num_heads, head_dim
    cd = wqkv_ref.dtype                            # MXU operand dtype (bf16)

    # ---- fused QKV projection: one full-width matmul --------------------
    # 1/sqrt(Dh) is already folded into the q columns of wqkv/bqkv (host side).
    qkv = jnp.dot(x.astype(cd), wqkv_ref[...],
                  preferred_element_type=jnp.float32) + bqkv_ref[...]   # (S, 3D) f32

    # Single relayout to head-major: (S, 3H, Dh) -> (3H, S, Dh).
    qkv_hm = jnp.transpose(qkv.reshape(S, 3 * H, Dh), (1, 0, 2)).astype(cd)
    q = qkv_hm[0:H]                                # (H, S, Dh)
    k = qkv_hm[H:2 * H]                            # (H, S, Dh)
    v = qkv_hm[2 * H:3 * H]                        # (H, S, Dh)

    # ---- attention scores + softmax (f32) --------------------------------
    s = jnp.einsum('hqe,hke->hqk', q, k,
                   preferred_element_type=jnp.float32)                   # (H, S, S)
    s = s - jnp.max(s, axis=-1, keepdims=True)
    e = jnp.exp(s)
    denom = jnp.sum(e, axis=-1, keepdims=True)                           # (H, S, 1)

    # PV matmul first, normalize after (H*S*Dh elems instead of H*S*S).
    ctx = jnp.einsum('hqk,hke->hqe', e.astype(cd), v,
                     preferred_element_type=jnp.float32)                 # (H, S, Dh)
    ctx = ctx * pl.reciprocal(denom, approx=True)

    # ---- output projection: one full-K matmul against the original wo ----
    ctx_sd = jnp.transpose(ctx, (1, 0, 2)).reshape(S, D)                 # (S, H*Dh)=(S, D)
    attn_out = jnp.dot(ctx_sd.astype(cd), wo_ref[...],
                       preferred_element_type=jnp.float32) + bo_ref[...]

    # residual + norm1 (dropout = identity in inference)
    h1 = _layernorm(x + attn_out, g1_ref[...], be1_ref[...])

    # ---- FeedForward: linear1 -> gelu -> linear2 --------------------------
    f = jnp.dot(h1.astype(cd), w1_ref[...],
                preferred_element_type=jnp.float32) + b1_ref[...]
    f = _gelu_exact(f)
    ff_out = jnp.dot(f.astype(cd), w2_ref[...],
                     preferred_element_type=jnp.float32) + b2_ref[...]

    # residual + norm2
    out = _layernorm(h1 + ff_out, g2_ref[...], be2_ref[...])
    o_ref[0] = out.astype(o_ref.dtype)


def _vmem_capacity_bytes():
    try:
        return int(pltpu.get_tpu_info().vmem_capacity_bytes)
    except Exception:
        return 64 * 2**20   # conservative default (v7x per-TC VMEM)


def transformer_block(x, params, num_heads, matmul_dtype=jnp.bfloat16):
    B, S, D = x.shape
    H = num_heads
    Dh = D // H
    d_ff = params["w1"].shape[1]
    scale = 1.0 / math.sqrt(Dh)

    # --- host-side weight fusion (precompute once in production) ---------
    wqkv = jnp.concatenate(
        [params["wq"] * scale, params["wk"], params["wv"]], axis=1)      # (D, 3D)
    bqkv = jnp.concatenate(
        [params["bq"] * scale, params["bk"], params["bv"]], axis=1)      # (1, 3D)

    f32 = jnp.float32
    wqkv = wqkv.astype(matmul_dtype)
    wo = params["wo"].astype(matmul_dtype)
    w1 = params["w1"].astype(matmul_dtype)
    w2 = params["w2"].astype(matmul_dtype)
    bqkv = bqkv.astype(f32)
    bo, b1, b2 = (params["bo"].astype(f32), params["b1"].astype(f32),
                  params["b2"].astype(f32))
    g1, be1 = params["g1"].astype(f32), params["be1"].astype(f32)
    g2, be2 = params["g2"].astype(f32), params["be2"].astype(f32)

    kernel = functools.partial(transformer_block_kernel, num_heads=H, head_dim=Dh)
    args = (x, wqkv, bqkv, wo, bo, g1, be1, w1, b1, w2, b2, g2, be2)

    # VMEM budget pieces
    wbytes_big = jnp.dtype(matmul_dtype).itemsize * (3 * D * D + D * D + 2 * D * d_ff)
    wbytes_small = 4 * (3 * D + D + d_ff + 5 * D)
    act_bytes = 4 * (2 * S * 3 * D + 4 * H * S * Dh + 2 * H * S * S
                     + 6 * S * D + 2 * S * d_ff)
    io_bytes = 4 * (2 * 2 * S * D)

    cost = pl.CostEstimate(
        flops=int(2 * B * (S * D * 3 * D + 2 * H * S * S * Dh + S * D * D
                           + 2 * S * D * d_ff)),
        transcendentals=int(B * (H * S * S + S * d_ff)),
        bytes_accessed=int(8 * B * S * D + wbytes_big + wbytes_small),
    )

    def _call(single_buffer_weights):
        def weight_spec(shape):
            zeros = (0,) * len(shape)
            kwargs = {}
            if single_buffer_weights:
                kwargs["pipeline_mode"] = pl.Buffered(buffer_count=1)
            return pl.BlockSpec(shape, lambda b, zeros=zeros: zeros, **kwargs)

        in_specs = [
            pl.BlockSpec((1, S, D), lambda b: (b, 0, 0)),    # x (per-batch slab)
            weight_spec((D, 3 * D)), weight_spec((1, 3 * D)),  # wqkv, bqkv
            weight_spec((D, D)), weight_spec((1, D)),          # wo, bo
            weight_spec((1, D)), weight_spec((1, D)),          # norm1 gamma, beta
            weight_spec((D, d_ff)), weight_spec((1, d_ff)),    # w1, b1
            weight_spec((d_ff, D)), weight_spec((1, D)),       # w2, b2
            weight_spec((1, D)), weight_spec((1, D)),          # norm2 gamma, beta
        ]

        nbuf = 1 if single_buffer_weights else 2
        estimate = nbuf * (wbytes_big + wbytes_small) + 2 * act_bytes + io_bytes
        vmem_limit = int(min(_vmem_capacity_bytes() - 4 * 2**20,
                             max(32 * 2**20, 2 * estimate)))

        return pl.pallas_call(
            kernel,
            out_shape=jax.ShapeDtypeStruct((B, S, D), x.dtype),
            grid_spec=pltpu.PrefetchScalarGridSpec(
                num_scalar_prefetch=0,
                grid=(B,),
                in_specs=in_specs,
                out_specs=pl.BlockSpec((1, S, D), lambda b: (b, 0, 0)),
            ),
            compiler_params=pltpu.CompilerParams(
                dimension_semantics=("parallel",),   # batch programs -> both TCs
                vmem_limit_bytes=vmem_limit,
            ),
            cost_estimate=cost,
        )(*args)

    try:
        return _call(single_buffer_weights=True)
    except Exception:
        # Fallback if this JAX/Mosaic build rejects single-buffered inputs.
        return _call(single_buffer_weights=False)


def transformer_block_reference(x, params, num_heads):
    """Pure-JAX (f32) mirror of the PyTorch module (inference mode)."""
    B, S, D = x.shape
    H = num_heads
    Dh = D // H

    def ln(h, g, b, eps=1e-5):
        m = h.mean(-1, keepdims=True)
        v = ((h - m) ** 2).mean(-1, keepdims=True)
        return (h - m) / jnp.sqrt(v + eps) * g + b

    q = x @ params["wq"] + params["bq"]
    k = x @ params["wk"] + params["bk"]
    v = x @ params["wv"] + params["bv"]

    def split(t):
        return t.reshape(B, S, H, Dh).transpose(0, 2, 1, 3)   # (B, H, S, Dh)

    qh, kh, vh = split(q), split(k), split(v)
    s = jnp.einsum('bhqe,bhke->bhqk', qh, kh) / math.sqrt(Dh)
    p = jax.nn.softmax(s, axis=-1)
    ctx = jnp.einsum('bhqk,bhke->bhqe', p, vh)
    ctx = ctx.transpose(0, 2, 1, 3).reshape(B, S, D)
    attn = ctx @ params["wo"] + params["bo"]

    h1 = ln(x + attn, params["g1"], params["be1"])
    g = h1 @ params["w1"] + params["b1"]
    g = 0.5 * g * (1.0 + jax.lax.erf(g / math.sqrt(2.0)))
    ff = g @ params["w2"] + params["b2"]
    return ln(h1 + ff, params["g2"], params["be2"])


def init_params(key, d_model, d_ff):
    ks = jax.random.split(key, 6)

    def lin(k, fan_in, fan_out):
        bound = 1.0 / math.sqrt(fan_in)
        kw, kb = jax.random.split(k)
        w = jax.random.uniform(kw, (fan_in, fan_out), jnp.float32, -bound, bound)
        b = jax.random.uniform(kb, (1, fan_out), jnp.float32, -bound, bound)
        return w, b

    wq, bq = lin(ks[0], d_model, d_model)
    wk, bk = lin(ks[1], d_model, d_model)
    wv, bv = lin(ks[2], d_model, d_model)
    wo, bo = lin(ks[3], d_model, d_model)
    w1, b1 = lin(ks[4], d_model, d_ff)
    w2, b2 = lin(ks[5], d_ff, d_model)
    return dict(
        wq=wq, bq=bq, wk=wk, bk=bk, wv=wv, bv=bv, wo=wo, bo=bo,
        g1=jnp.ones((1, d_model), jnp.float32), be1=jnp.zeros((1, d_model), jnp.float32),
        w1=w1, b1=b1, w2=w2, b2=b2,
        g2=jnp.ones((1, d_model), jnp.float32), be2=jnp.zeros((1, d_model), jnp.float32),
    )


if __name__ == "__main__":
    B, S, D, H, D_FF = 2, 8, 32, 4, 64
    key = jax.random.PRNGKey(0)
    kx, kp = jax.random.split(key)
    x = jax.random.normal(kx, (B, S, D), jnp.float32)
    params = init_params(kp, D, D_FF)

    out = transformer_block(x, params, num_heads=H)
    jax.block_until_ready(out)
    assert out.shape == (B, S, D)

    # Sanity check vs. the pure-f32 reference.  Tolerance accounts for bf16
    # MXU operands and the approximate EUP reciprocal in the softmax.
    ref = transformer_block_reference(x, params, num_heads=H)
    max_err = float(jnp.max(jnp.abs(out - ref)))
    assert max_err < 5e-2, f"max abs error vs reference too large: {max_err}"

    print("KERNEL_OK")
</pallas_src>

<mosaic_0001>
module attributes {stable_mosaic.version = 11 : i64} {
  func.func @transformer_block_kernel(%arg0: i32, %arg1: memref<1x8x32xf32, #tpu.memory_space<vmem>>, %arg2: memref<32x96xbf16, #tpu.memory_space<vmem>>, %arg3: memref<1x96xf32, #tpu.memory_space<vmem>>, %arg4: memref<32x32xbf16, #tpu.memory_space<vmem>>, %arg5: memref<1x32xf32, #tpu.memory_space<vmem>>, %arg6: memref<1x32xf32, #tpu.memory_space<vmem>>, %arg7: memref<1x32xf32, #tpu.memory_space<vmem>>, %arg8: memref<32x64xbf16, #tpu.memory_space<vmem>>, %arg9: memref<1x64xf32, #tpu.memory_space<vmem>>, %arg10: memref<64x32xbf16, #tpu.memory_space<vmem>>, %arg11: memref<1x32xf32, #tpu.memory_space<vmem>>, %arg12: memref<1x32xf32, #tpu.memory_space<vmem>>, %arg13: memref<1x32xf32, #tpu.memory_space<vmem>>, %arg14: memref<1x8x32xf32, #tpu.memory_space<vmem>>) attributes {dimension_semantics = [#tpu.dimension_semantics<parallel>], iteration_bounds = array<i64: 2>, scalar_prefetch = 0 : i64, scratch_operands = 0 : i64, tpu.core_type = #tpu.core_type<tc>, window_params = [{transform_indices = @transform_0, window_bounds = array<i64: 1, 8, 32>}, {pipeline_mode = #tpu.pipeline_mode<synchronous>, transform_indices = @transform_1, window_bounds = array<i64: 32, 96>}, {pipeline_mode = #tpu.pipeline_mode<synchronous>, transform_indices = @transform_2, window_bounds = array<i64: 1, 96>}, {pipeline_mode = #tpu.pipeline_mode<synchronous>, transform_indices = @transform_3, window_bounds = array<i64: 32, 32>}, {pipeline_mode = #tpu.pipeline_mode<synchronous>, transform_indices = @transform_4, window_bounds = array<i64: 1, 32>}, {pipeline_mode = #tpu.pipeline_mode<synchronous>, transform_indices = @transform_5, window_bounds = array<i64: 1, 32>}, {pipeline_mode = #tpu.pipeline_mode<synchronous>, transform_indices = @transform_6, window_bounds = array<i64: 1, 32>}, {pipeline_mode = #tpu.pipeline_mode<synchronous>, transform_indices = @transform_7, window_bounds = array<i64: 32, 64>}, {pipeline_mode = #tpu.pipeline_mode<synchronous>, transform_indices = @transform_8, window_bounds = array<i64: 1, 64>}, {pipeline_mode = #tpu.pipeline_mode<synchronous>, transform_indices = @transform_9, window_bounds = array<i64: 64, 32>}, {pipeline_mode = #tpu.pipeline_mode<synchronous>, transform_indices = @transform_10, window_bounds = array<i64: 1, 32>}, {pipeline_mode = #tpu.pipeline_mode<synchronous>, transform_indices = @transform_11, window_bounds = array<i64: 1, 32>}, {pipeline_mode = #tpu.pipeline_mode<synchronous>, transform_indices = @transform_12, window_bounds = array<i64: 1, 32>}, {transform_indices = @transform_13, window_bounds = array<i64: 1, 8, 32>}]} {
    %c0 = arith.constant 0 : index
    %c0_0 = arith.constant 0 : index
    %c0_1 = arith.constant 0 : index
    %0 = vector.load %arg1[%c0, %c0_0, %c0_1] : memref<1x8x32xf32, #tpu.memory_space<vmem>>, vector<1x8x32xf32>
    %1 = vector.shape_cast %0 : vector<1x8x32xf32> to vector<8x32xf32>
    %2 = arith.truncf %1 : vector<8x32xf32> to vector<8x32xbf16>
    %c0_2 = arith.constant 0 : index
    %c0_3 = arith.constant 0 : index
    %3 = vector.load %arg2[%c0_2, %c0_3] : memref<32x96xbf16, #tpu.memory_space<vmem>>, vector<32x96xbf16>
    %cst = arith.constant dense<0.000000e+00> : vector<8x96xf32>
    %4 = tpu.matmul %2, %3, %cst {dimension_numbers = #tpu.dot_dimension_numbers<[1], [0], [0], [1], [0, 0, 1, 1], [], []>} : vector<8x32xbf16>, vector<32x96xbf16>, vector<8x96xf32> -> vector<8x96xf32>
    %c0_4 = arith.constant 0 : index
    %c0_5 = arith.constant 0 : index
    %5 = vector.load %arg3[%c0_4, %c0_5] : memref<1x96xf32, #tpu.memory_space<vmem>>, vector<1x96xf32>
    %6 = vector.broadcast %5 : vector<1x96xf32> to vector<8x96xf32>
    %7 = arith.addf %4, %6 : vector<8x96xf32>
    %8 = vector.shape_cast %7 : vector<8x96xf32> to vector<8x12x8xf32>
    %9 = tpu.transpose %8, [1, 0, 2] : vector<8x12x8xf32> -> vector<12x8x8xf32>
    %10 = arith.truncf %9 : vector<12x8x8xf32> to vector<12x8x8xbf16>
    %11 = vector.extract_strided_slice %10 {offsets = [0, 0, 0], sizes = [4, 8, 8], strides = [1, 1, 1]} : vector<12x8x8xbf16> to vector<4x8x8xbf16>
    %12 = vector.extract_strided_slice %10 {offsets = [4, 0, 0], sizes = [4, 8, 8], strides = [1, 1, 1]} : vector<12x8x8xbf16> to vector<4x8x8xbf16>
    %13 = vector.extract_strided_slice %10 {offsets = [8, 0, 0], sizes = [4, 8, 8], strides = [1, 1, 1]} : vector<12x8x8xbf16> to vector<4x8x8xbf16>
    "tpu.trace_start"() <{level = 10 : i32, message = "hqe,hke->hqk"}> : () -> ()
    %cst_6 = arith.constant dense<0.000000e+00> : vector<4x8x8xf32>
    %14 = tpu.matmul %11, %12, %cst_6 {dimension_numbers = #tpu.dot_dimension_numbers<[2], [2], [1], [1], [0, 0, 0, 1, 1, 1], [0], [0]>} : vector<4x8x8xbf16>, vector<4x8x8xbf16>, vector<4x8x8xf32> -> vector<4x8x8xf32>
    "tpu.trace_stop"() : () -> ()
    %cst_7 = arith.constant dense<0xFF800000> : vector<4x8xf32>
    %15 = vector.multi_reduction <maximumf>, %14, %cst_7 [2] : vector<4x8x8xf32> to vector<4x8xf32>
    %16 = vector.shape_cast %15 : vector<4x8xf32> to vector<4x8x1xf32>
    %17 = vector.broadcast %16 : vector<4x8x1xf32> to vector<4x8x8xf32>
    %18 = arith.subf %14, %17 : vector<4x8x8xf32>
    %19 = math.exp %18 : vector<4x8x8xf32>
    %cst_8 = arith.constant dense<0.000000e+00> : vector<4x8xf32>
    %20 = vector.multi_reduction <add>, %19, %cst_8 [2] : vector<4x8x8xf32> to vector<4x8xf32>
    %21 = vector.shape_cast %20 : vector<4x8xf32> to vector<4x8x1xf32>
    %22 = arith.truncf %19 : vector<4x8x8xf32> to vector<4x8x8xbf16>
    "tpu.trace_start"() <{level = 10 : i32, message = "hqk,hke->hqe"}> : () -> ()
    %cst_9 = arith.constant dense<0.000000e+00> : vector<4x8x8xf32>
    %23 = tpu.matmul %22, %13, %cst_9 {dimension_numbers = #tpu.dot_dimension_numbers<[2], [1], [1], [2], [0, 0, 0, 1, 1, 2], [0], [0]>} : vector<4x8x8xbf16>, vector<4x8x8xbf16>, vector<4x8x8xf32> -> vector<4x8x8xf32>
    "tpu.trace_stop"() : () -> ()
    %24 = tpu.reciprocal %21 {approx = true} : vector<4x8x1xf32> -> vector<4x8x1xf32>
    %25 = vector.broadcast %24 : vector<4x8x1xf32> to vector<4x8x8xf32>
    %26 = arith.mulf %23, %25 : vector<4x8x8xf32>
    %27 = tpu.transpose %26, [1, 0, 2] : vector<4x8x8xf32> -> vector<8x4x8xf32>
    %28 = vector.shape_cast %27 : vector<8x4x8xf32> to vector<8x32xf32>
    %29 = arith.truncf %28 : vector<8x32xf32> to vector<8x32xbf16>
    %c0_10 = arith.constant 0 : index
    %c0_11 = arith.constant 0 : index
    %30 = vector.load %arg4[%c0_10, %c0_11] : memref<32x32xbf16, #tpu.memory_space<vmem>>, vector<32x32xbf16>
    %cst_12 = arith.constant dense<0.000000e+00> : vector<8x32xf32>
    %31 = tpu.matmul %29, %30, %cst_12 {dimension_numbers = #tpu.dot_dimension_numbers<[1], [0], [0], [1], [0, 0, 1, 1], [], []>} : vector<8x32xbf16>, vector<32x32xbf16>, vector<8x32xf32> -> vector<8x32xf32>
    %c0_13 = arith.constant 0 : index
    %c0_14 = arith.constant 0 : index
    %32 = vector.load %arg5[%c0_13, %c0_14] : memref<1x32xf32, #tpu.memory_space<vmem>>, vector<1x32xf32>
    %33 = vector.broadcast %32 : vector<1x32xf32> to vector<8x32xf32>
    %34 = arith.addf %31, %33 : vector<8x32xf32>
    %35 = arith.addf %1, %34 : vector<8x32xf32>
    %c0_15 = arith.constant 0 : index
    %c0_16 = arith.constant 0 : index
    %36 = vector.load %arg6[%c0_15, %c0_16] : memref<1x32xf32, #tpu.memory_space<vmem>>, vector<1x32xf32>
    %c0_17 = arith.constant 0 : index
    %c0_18 = arith.constant 0 : index
    %37 = vector.load %arg7[%c0_17, %c0_18] : memref<1x32xf32, #tpu.memory_space<vmem>>, vector<1x32xf32>
    %cst_19 = arith.constant dense<0.000000e+00> : vector<8xf32>
    %38 = vector.multi_reduction <add>, %35, %cst_19 [1] : vector<8x32xf32> to vector<8xf32>
    %39 = vector.shape_cast %38 : vector<8xf32> to vector<8x1xf32>
    %cst_20 = arith.constant 3.200000e+01 : f32
    %40 = vector.broadcast %cst_20 : f32 to vector<8x1xf32>
    %41 = arith.divf %39, %40 : vector<8x1xf32>
    %42 = vector.broadcast %41 : vector<8x1xf32> to vector<8x32xf32>
    %43 = arith.subf %35, %42 : vector<8x32xf32>
    %44 = arith.mulf %43, %43 : vector<8x32xf32>
    %cst_21 = arith.constant dense<0.000000e+00> : vector<8xf32>
    %45 = vector.multi_reduction <add>, %44, %cst_21 [1] : vector<8x32xf32> to vector<8xf32>
    %46 = vector.shape_cast %45 : vector<8xf32> to vector<8x1xf32>
    %cst_22 = arith.constant 3.200000e+01 : f32
    %47 = vector.broadcast %cst_22 : f32 to vector<8x1xf32>
    %48 = arith.divf %46, %47 : vector<8x1xf32>
    %49 = vector.broadcast %41 : vector<8x1xf32> to vector<8x32xf32>
    %50 = arith.subf %35, %49 : vector<8x32xf32>
    %cst_23 = arith.constant 9.99999974E-6 : f32
    %51 = vector.broadcast %cst_23 : f32 to vector<8x1xf32>
    %52 = arith.addf %48, %51 : vector<8x1xf32>
    %53 = math.rsqrt %52 : vector<8x1xf32>
    %54 = vector.broadcast %53 : vector<8x1xf32> to vector<8x32xf32>
    %55 = arith.mulf %50, %54 : vector<8x32xf32>
    %56 = vector.broadcast %36 : vector<1x32xf32> to vector<8x32xf32>
    %57 = arith.mulf %55, %56 : vector<8x32xf32>
    %58 = vector.broadcast %37 : vector<1x32xf32> to vector<8x32xf32>
    %59 = arith.addf %57, %58 : vector<8x32xf32>
    %60 = arith.truncf %59 : vector<8x32xf32> to vector<8x32xbf16>
    %c0_24 = arith.constant 0 : index
    %c0_25 = arith.constant 0 : index
    %61 = vector.load %arg8[%c0_24, %c0_25] : memref<32x64xbf16, #tpu.memory_space<vmem>>, vector<32x64xbf16>
    %cst_26 = arith.constant dense<0.000000e+00> : vector<8x64xf32>
    %62 = tpu.matmul %60, %61, %cst_26 {dimension_numbers = #tpu.dot_dimension_numbers<[1], [0], [0], [1], [0, 0, 1, 1], [], []>} : vector<8x32xbf16>, vector<32x64xbf16>, vector<8x64xf32> -> vector<8x64xf32>
    %c0_27 = arith.constant 0 : index
    %c0_28 = arith.constant 0 : index
    %63 = vector.load %arg9[%c0_27, %c0_28] : memref<1x64xf32, #tpu.memory_space<vmem>>, vector<1x64xf32>
    %64 = vector.broadcast %63 : vector<1x64xf32> to vector<8x64xf32>
    %65 = arith.addf %62, %64 : vector<8x64xf32>
    %cst_29 = arith.constant 5.000000e-01 : f32
    %66 = vector.broadcast %cst_29 : f32 to vector<8x64xf32>
    %67 = arith.mulf %66, %65 : vector<8x64xf32>
    %cst_30 = arith.constant 0.707106769 : f32
    %68 = vector.broadcast %cst_30 : f32 to vector<8x64xf32>
    %69 = arith.mulf %65, %68 : vector<8x64xf32>
    %70 = math.erf %69 : vector<8x64xf32>
    %cst_31 = arith.constant 1.000000e+00 : f32
    %71 = vector.broadcast %cst_31 : f32 to vector<8x64xf32>
    %72 = arith.addf %71, %70 : vector<8x64xf32>
    %73 = arith.mulf %67, %72 : vector<8x64xf32>
    %74 = arith.truncf %73 : vector<8x64xf32> to vector<8x64xbf16>
    %c0_32 = arith.constant 0 : index
    %c0_33 = arith.constant 0 : index
    %75 = vector.load %arg10[%c0_32, %c0_33] : memref<64x32xbf16, #tpu.memory_space<vmem>>, vector<64x32xbf16>
    %cst_34 = arith.constant dense<0.000000e+00> : vector<8x32xf32>
    %76 = tpu.matmul %74, %75, %cst_34 {dimension_numbers = #tpu.dot_dimension_numbers<[1], [0], [0], [1], [0, 0, 1, 1], [], []>} : vector<8x64xbf16>, vector<64x32xbf16>, vector<8x32xf32> -> vector<8x32xf32>
    %c0_35 = arith.constant 0 : index
    %c0_36 = arith.constant 0 : index
    %77 = vector.load %arg11[%c0_35, %c0_36] : memref<1x32xf32, #tpu.memory_space<vmem>>, vector<1x32xf32>
    %78 = vector.broadcast %77 : vector<1x32xf32> to vector<8x32xf32>
    %79 = arith.addf %76, %78 : vector<8x32xf32>
    %80 = arith.addf %59, %79 : vector<8x32xf32>
    %c0_37 = arith.constant 0 : index
    %c0_38 = arith.constant 0 : index
    %81 = vector.load %arg12[%c0_37, %c0_38] : memref<1x32xf32, #tpu.memory_space<vmem>>, vector<1x32xf32>
    %c0_39 = arith.constant 0 : index
    %c0_40 = arith.constant 0 : index
    %82 = vector.load %arg13[%c0_39, %c0_40] : memref<1x32xf32, #tpu.memory_space<vmem>>, vector<1x32xf32>
    %cst_41 = arith.constant dense<0.000000e+00> : vector<8xf32>
    %83 = vector.multi_reduction <add>, %80, %cst_41 [1] : vector<8x32xf32> to vector<8xf32>
    %84 = vector.shape_cast %83 : vector<8xf32> to vector<8x1xf32>
    %cst_42 = arith.constant 3.200000e+01 : f32
    %85 = vector.broadcast %cst_42 : f32 to vector<8x1xf32>
    %86 = arith.divf %84, %85 : vector<8x1xf32>
    %87 = vector.broadcast %86 : vector<8x1xf32> to vector<8x32xf32>
    %88 = arith.subf %80, %87 : vector<8x32xf32>
    %89 = arith.mulf %88, %88 : vector<8x32xf32>
    %cst_43 = arith.constant dense<0.000000e+00> : vector<8xf32>
    %90 = vector.multi_reduction <add>, %89, %cst_43 [1] : vector<8x32xf32> to vector<8xf32>
    %91 = vector.shape_cast %90 : vector<8xf32> to vector<8x1xf32>
    %cst_44 = arith.constant 3.200000e+01 : f32
    %92 = vector.broadcast %cst_44 : f32 to vector<8x1xf32>
    %93 = arith.divf %91, %92 : vector<8x1xf32>
    %94 = vector.broadcast %86 : vector<8x1xf32> to vector<8x32xf32>
    %95 = arith.subf %80, %94 : vector<8x32xf32>
    %cst_45 = arith.constant 9.99999974E-6 : f32
    %96 = vector.broadcast %cst_45 : f32 to vector<8x1xf32>
    %97 = arith.addf %93, %96 : vector<8x1xf32>
    %98 = math.rsqrt %97 : vector<8x1xf32>
    %99 = vector.broadcast %98 : vector<8x1xf32> to vector<8x32xf32>
    %100 = arith.mulf %95, %99 : vector<8x32xf32>
    %101 = vector.broadcast %81 : vector<1x32xf32> to vector<8x32xf32>
    %102 = arith.mulf %100, %101 : vector<8x32xf32>
    %103 = vector.broadcast %82 : vector<1x32xf32> to vector<8x32xf32>
    %104 = arith.addf %102, %103 : vector<8x32xf32>
    %c0_46 = arith.constant 0 : index
    %c0_47 = arith.constant 0 : index
    %c0_48 = arith.constant 0 : index
    %105 = vector.load %arg14[%c0_46, %c0_47, %c0_48] : memref<1x8x32xf32, #tpu.memory_space<vmem>>, vector<1x8x32xf32>
    %106 = vector.shape_cast %105 : vector<1x8x32xf32> to vector<8x32xf32>
    %107 = vector.shape_cast %104 : vector<8x32xf32> to vector<1x8x32xf32>
    tpu.vector_store %arg14[%c0_46, %c0_47, %c0_48], %107 {strides = array<i32>} : memref<1x8x32xf32, #tpu.memory_space<vmem>>, vector<1x8x32xf32>,
    return
  }
  func.func @transform_0(%arg0: i32) -> (i32, i32, i32) {
    %c0_i32 = arith.constant 0 : i32
    %c0_i32_0 = arith.constant 0 : i32
    %c0_i32_1 = arith.constant 0 : i32
    return %arg0, %c0_i32, %c0_i32_0 : i32, i32, i32
  }
  func.func @transform_1(%arg0: i32) -> (i32, i32) {
    %c0_i32 = arith.constant 0 : i32
    %c0_i32_0 = arith.constant 0 : i32
    %c0_i32_1 = arith.constant 0 : i32
    return %c0_i32, %c0_i32_0 : i32, i32
  }
  func.func @transform_2(%arg0: i32) -> (i32, i32) {
    %c0_i32 = arith.constant 0 : i32
    %c0_i32_0 = arith.constant 0 : i32
    %c0_i32_1 = arith.constant 0 : i32
    return %c0_i32, %c0_i32_0 : i32, i32
  }
  func.func @transform_3(%arg0: i32) -> (i32, i32) {
    %c0_i32 = arith.constant 0 : i32
    %c0_i32_0 = arith.constant 0 : i32
    %c0_i32_1 = arith.constant 0 : i32
    return %c0_i32, %c0_i32_0 : i32, i32
  }
  func.func @transform_4(%arg0: i32) -> (i32, i32) {
    %c0_i32 = arith.constant 0 : i32
    %c0_i32_0 = arith.constant 0 : i32
    %c0_i32_1 = arith.constant 0 : i32
    return %c0_i32, %c0_i32_0 : i32, i32
  }
  func.func @transform_5(%arg0: i32) -> (i32, i32) {
    %c0_i32 = arith.constant 0 : i32
    %c0_i32_0 = arith.constant 0 : i32
    %c0_i32_1 = arith.constant 0 : i32
    return %c0_i32, %c0_i32_0 : i32, i32
  }
  func.func @transform_6(%arg0: i32) -> (i32, i32) {
    %c0_i32 = arith.constant 0 : i32
    %c0_i32_0 = arith.constant 0 : i32
    %c0_i32_1 = arith.constant 0 : i32
    return %c0_i32, %c0_i32_0 : i32, i32
  }
  func.func @transform_7(%arg0: i32) -> (i32, i32) {
    %c0_i32 = arith.constant 0 : i32
    %c0_i32_0 = arith.constant 0 : i32
    %c0_i32_1 = arith.constant 0 : i32
    return %c0_i32, %c0_i32_0 : i32, i32
  }
  func.func @transform_8(%arg0: i32) -> (i32, i32) {
    %c0_i32 = arith.constant 0 : i32
    %c0_i32_0 = arith.constant 0 : i32
    %c0_i32_1 = arith.constant 0 : i32
    return %c0_i32, %c0_i32_0 : i32, i32
  }
  func.func @transform_9(%arg0: i32) -> (i32, i32) {
    %c0_i32 = arith.constant 0 : i32
    %c0_i32_0 = arith.constant 0 : i32
    %c0_i32_1 = arith.constant 0 : i32
    return %c0_i32, %c0_i32_0 : i32, i32
  }
  func.func @transform_10(%arg0: i32) -> (i32, i32) {
    %c0_i32 = arith.constant 0 : i32
    %c0_i32_0 = arith.constant 0 : i32
    %c0_i32_1 = arith.constant 0 : i32
    return %c0_i32, %c0_i32_0 : i32, i32
  }
  func.func @transform_11(%arg0: i32) -> (i32, i32) {
    %c0_i32 = arith.constant 0 : i32
    %c0_i32_0 = arith.constant 0 : i32
    %c0_i32_1 = arith.constant 0 : i32
    return %c0_i32, %c0_i32_0 : i32, i32
  }
  func.func @transform_12(%arg0: i32) -> (i32, i32) {
    %c0_i32 = arith.constant 0 : i32
    %c0_i32_0 = arith.constant 0 : i32
    %c0_i32_1 = arith.constant 0 : i32
    return %c0_i32, %c0_i32_0 : i32, i32
  }
  func.func @transform_13(%arg0: i32) -> (i32, i32, i32) {
    %c0_i32 = arith.constant 0 : i32
    %c0_i32_0 = arith.constant 0 : i32
    %c0_i32_1 = arith.constant 0 : i32
    return %arg0, %c0_i32, %c0_i32_0 : i32, i32, i32
  }
}

module attributes {stable_mosaic.version = 11 : i64} {
  func.func @transformer_block_kernel(%arg0: i32, %arg1: memref<1x8x32xf32, #tpu.memory_space<vmem>>, %arg2: memref<32x96xbf16, #tpu.memory_space<vmem>>, %arg3: memref<1x96xf32, #tpu.memory_space<vmem>>, %arg4: memref<32x32xbf16, #tpu.memory_space<vmem>>, %arg5: memref<1x32xf32, #tpu.memory_space<vmem>>, %arg6: memref<1x32xf32, #tpu.memory_space<vmem>>, %arg7: memref<1x32xf32, #tpu.memory_space<vmem>>, %arg8: memref<32x64xbf16, #tpu.memory_space<vmem>>, %arg9: memref<1x64xf32, #tpu.memory_space<vmem>>, %arg10: memref<64x32xbf16, #tpu.memory_space<vmem>>, %arg11: memref<1x32xf32, #tpu.memory_space<vmem>>, %arg12: memref<1x32xf32, #tpu.memory_space<vmem>>, %arg13: memref<1x32xf32, #tpu.memory_space<vmem>>, %arg14: memref<1x8x32xf32, #tpu.memory_space<vmem>>) attributes {dimension_semantics = [#tpu.dimension_semantics<parallel>], iteration_bounds = array<i64: 2>, scalar_prefetch = 0 : i64, scratch_operands = 0 : i64, tpu.core_type = #tpu.core_type<tc>, window_params = [{transform_indices = @transform_0, window_bounds = array<i64: 1, 8, 32>}, {pipeline_mode = #tpu.pipeline_mode<synchronous>, transform_indices = @transform_1, window_bounds = array<i64: 32, 96>}, {pipeline_mode = #tpu.pipeline_mode<synchronous>, transform_indices = @transform_2, window_bounds = array<i64: 1, 96>}, {pipeline_mode = #tpu.pipeline_mode<synchronous>, transform_indices = @transform_3, window_bounds = array<i64: 32, 32>}, {pipeline_mode = #tpu.pipeline_mode<synchronous>, transform_indices = @transform_4, window_bounds = array<i64: 1, 32>}, {pipeline_mode = #tpu.pipeline_mode<synchronous>, transform_indices = @transform_5, window_bounds = array<i64: 1, 32>}, {pipeline_mode = #tpu.pipeline_mode<synchronous>, transform_indices = @transform_6, window_bounds = array<i64: 1, 32>}, {pipeline_mode = #tpu.pipeline_mode<synchronous>, transform_indices = @transform_7, window_bounds = array<i64: 32, 64>}, {pipeline_mode = #tpu.pipeline_mode<synchronous>, transform_indices = @transform_8, window_bounds = array<i64: 1, 64>}, {pipeline_mode = #tpu.pipeline_mode<synchronous>, transform_indices = @transform_9, window_bounds = array<i64: 64, 32>}, {pipeline_mode = #tpu.pipeline_mode<synchronous>, transform_indices = @transform_10, window_bounds = array<i64: 1, 32>}, {pipeline_mode = #tpu.pipeline_mode<synchronous>, transform_indices = @transform_11, window_bounds = array<i64: 1, 32>}, {pipeline_mode = #tpu.pipeline_mode<synchronous>, transform_indices = @transform_12, window_bounds = array<i64: 1, 32>}, {transform_indices = @transform_13, window_bounds = array<i64: 1, 8, 32>}]} {
    %c0 = arith.constant 0 : index
    %c0_0 = arith.constant 0 : index
    %c0_1 = arith.constant 0 : index
    %0 = vector.load %arg1[%c0, %c0_0, %c0_1] : memref<1x8x32xf32, #tpu.memory_space<vmem>>, vector<1x8x32xf32>
    %1 = vector.shape_cast %0 : vector<1x8x32xf32> to vector<8x32xf32>
    %2 = arith.truncf %1 : vector<8x32xf32> to vector<8x32xbf16>
    %c0_2 = arith.constant 0 : index
    %c0_3 = arith.constant 0 : index
    %3 = vector.load %arg2[%c0_2, %c0_3] : memref<32x96xbf16, #tpu.memory_space<vmem>>, vector<32x96xbf16>
    %cst = arith.constant dense<0.000000e+00> : vector<8x96xf32>
    %4 = tpu.matmul %2, %3, %cst {dimension_numbers = #tpu.dot_dimension_numbers<[1], [0], [0], [1], [0, 0, 1, 1], [], []>} : vector<8x32xbf16>, vector<32x96xbf16>, vector<8x96xf32> -> vector<8x96xf32>
    %c0_4 = arith.constant 0 : index
    %c0_5 = arith.constant 0 : index
    %5 = vector.load %arg3[%c0_4, %c0_5] : memref<1x96xf32, #tpu.memory_space<vmem>>, vector<1x96xf32>
    %6 = vector.broadcast %5 : vector<1x96xf32> to vector<8x96xf32>
    %7 = arith.addf %4, %6 : vector<8x96xf32>
    %8 = vector.shape_cast %7 : vector<8x96xf32> to vector<8x12x8xf32>
    %9 = tpu.transpose %8, [1, 0, 2] : vector<8x12x8xf32> -> vector<12x8x8xf32>
    %10 = arith.truncf %9 : vector<12x8x8xf32> to vector<12x8x8xbf16>
    %11 = vector.extract_strided_slice %10 {offsets = [0, 0, 0], sizes = [4, 8, 8], strides = [1, 1, 1]} : vector<12x8x8xbf16> to vector<4x8x8xbf16>
    %12 = vector.extract_strided_slice %10 {offsets = [4, 0, 0], sizes = [4, 8, 8], strides = [1, 1, 1]} : vector<12x8x8xbf16> to vector<4x8x8xbf16>
    %13 = vector.extract_strided_slice %10 {offsets = [8, 0, 0], sizes = [4, 8, 8], strides = [1, 1, 1]} : vector<12x8x8xbf16> to vector<4x8x8xbf16>
    "tpu.trace_start"() <{level = 10 : i32, message = "hqe,hke->hqk"}> : () -> ()
    %cst_6 = arith.constant dense<0.000000e+00> : vector<4x8x8xf32>
    %14 = tpu.matmul %11, %12, %cst_6 {dimension_numbers = #tpu.dot_dimension_numbers<[2], [2], [1], [1], [0, 0, 0, 1, 1, 1], [0], [0]>} : vector<4x8x8xbf16>, vector<4x8x8xbf16>, vector<4x8x8xf32> -> vector<4x8x8xf32>
    "tpu.trace_stop"() : () -> ()
    %cst_7 = arith.constant dense<0xFF800000> : vector<4x8xf32>
    %15 = vector.multi_reduction <maximumf>, %14, %cst_7 [2] : vector<4x8x8xf32> to vector<4x8xf32>
    %16 = vector.shape_cast %15 : vector<4x8xf32> to vector<4x8x1xf32>
    %17 = vector.broadcast %16 : vector<4x8x1xf32> to vector<4x8x8xf32>
    %18 = arith.subf %14, %17 : vector<4x8x8xf32>
    %19 = math.exp %18 : vector<4x8x8xf32>
    %cst_8 = arith.constant dense<0.000000e+00> : vector<4x8xf32>
    %20 = vector.multi_reduction <add>, %19, %cst_8 [2] : vector<4x8x8xf32> to vector<4x8xf32>
    %21 = vector.shape_cast %20 : vector<4x8xf32> to vector<4x8x1xf32>
    %22 = arith.truncf %19 : vector<4x8x8xf32> to vector<4x8x8xbf16>
    "tpu.trace_start"() <{level = 10 : i32, message = "hqk,hke->hqe"}> : () -> ()
    %cst_9 = arith.constant dense<0.000000e+00> : vector<4x8x8xf32>
    %23 = tpu.matmul %22, %13, %cst_9 {dimension_numbers = #tpu.dot_dimension_numbers<[2], [1], [1], [2], [0, 0, 0, 1, 1, 2], [0], [0]>} : vector<4x8x8xbf16>, vector<4x8x8xbf16>, vector<4x8x8xf32> -> vector<4x8x8xf32>
    "tpu.trace_stop"() : () -> ()
    %24 = tpu.reciprocal %21 {approx = true} : vector<4x8x1xf32> -> vector<4x8x1xf32>
    %25 = vector.broadcast %24 : vector<4x8x1xf32> to vector<4x8x8xf32>
    %26 = arith.mulf %23, %25 : vector<4x8x8xf32>
    %27 = tpu.transpose %26, [1, 0, 2] : vector<4x8x8xf32> -> vector<8x4x8xf32>
    %28 = vector.shape_cast %27 : vector<8x4x8xf32> to vector<8x32xf32>
    %29 = arith.truncf %28 : vector<8x32xf32> to vector<8x32xbf16>
    %c0_10 = arith.constant 0 : index
    %c0_11 = arith.constant 0 : index
    %30 = vector.load %arg4[%c0_10, %c0_11] : memref<32x32xbf16, #tpu.memory_space<vmem>>, vector<32x32xbf16>
    %cst_12 = arith.constant dense<0.000000e+00> : vector<8x32xf32>
    %31 = tpu.matmul %29, %30, %cst_12 {dimension_numbers = #tpu.dot_dimension_numbers<[1], [0], [0], [1], [0, 0, 1, 1], [], []>} : vector<8x32xbf16>, vector<32x32xbf16>, vector<8x32xf32> -> vector<8x32xf32>
    %c0_13 = arith.constant 0 : index
    %c0_14 = arith.constant 0 : index
    %32 = vector.load %arg5[%c0_13, %c0_14] : memref<1x32xf32, #tpu.memory_space<vmem>>, vector<1x32xf32>
    %33 = vector.broadcast %32 : vector<1x32xf32> to vector<8x32xf32>
    %34 = arith.addf %31, %33 : vector<8x32xf32>
    %35 = arith.addf %1, %34 : vector<8x32xf32>
    %c0_15 = arith.constant 0 : index
    %c0_16 = arith.constant 0 : index
    %36 = vector.load %arg6[%c0_15, %c0_16] : memref<1x32xf32, #tpu.memory_space<vmem>>, vector<1x32xf32>
    %c0_17 = arith.constant 0 : index
    %c0_18 = arith.constant 0 : index
    %37 = vector.load %arg7[%c0_17, %c0_18] : memref<1x32xf32, #tpu.memory_space<vmem>>, vector<1x32xf32>
    %cst_19 = arith.constant dense<0.000000e+00> : vector<8xf32>
    %38 = vector.multi_reduction <add>, %35, %cst_19 [1] : vector<8x32xf32> to vector<8xf32>
    %39 = vector.shape_cast %38 : vector<8xf32> to vector<8x1xf32>
    %cst_20 = arith.constant 3.200000e+01 : f32
    %40 = vector.broadcast %cst_20 : f32 to vector<8x1xf32>
    %41 = arith.divf %39, %40 : vector<8x1xf32>
    %42 = vector.broadcast %41 : vector<8x1xf32> to vector<8x32xf32>
    %43 = arith.subf %35, %42 : vector<8x32xf32>
    %44 = arith.mulf %43, %43 : vector<8x32xf32>
    %cst_21 = arith.constant dense<0.000000e+00> : vector<8xf32>
    %45 = vector.multi_reduction <add>, %44, %cst_21 [1] : vector<8x32xf32> to vector<8xf32>
    %46 = vector.shape_cast %45 : vector<8xf32> to vector<8x1xf32>
    %cst_22 = arith.constant 3.200000e+01 : f32
    %47 = vector.broadcast %cst_22 : f32 to vector<8x1xf32>
    %48 = arith.divf %46, %47 : vector<8x1xf32>
    %49 = vector.broadcast %41 : vector<8x1xf32> to vector<8x32xf32>
    %50 = arith.subf %35, %49 : vector<8x32xf32>
    %cst_23 = arith.constant 9.99999974E-6 : f32
    %51 = vector.broadcast %cst_23 : f32 to vector<8x1xf32>
    %52 = arith.addf %48, %51 : vector<8x1xf32>
    %53 = math.rsqrt %52 : vector<8x1xf32>
    %54 = vector.broadcast %53 : vector<8x1xf32> to vector<8x32xf32>
    %55 = arith.mulf %50, %54 : vector<8x32xf32>
    %56 = vector.broadcast %36 : vector<1x32xf32> to vector<8x32xf32>
    %57 = arith.mulf %55, %56 : vector<8x32xf32>
    %58 = vector.broadcast %37 : vector<1x32xf32> to vector<8x32xf32>
    %59 = arith.addf %57, %58 : vector<8x32xf32>
    %60 = arith.truncf %59 : vector<8x32xf32> to vector<8x32xbf16>
    %c0_24 = arith.constant 0 : index
    %c0_25 = arith.constant 0 : index
    %61 = vector.load %arg8[%c0_24, %c0_25] : memref<32x64xbf16, #tpu.memory_space<vmem>>, vector<32x64xbf16>
    %cst_26 = arith.constant dense<0.000000e+00> : vector<8x64xf32>
    %62 = tpu.matmul %60, %61, %cst_26 {dimension_numbers = #tpu.dot_dimension_numbers<[1], [0], [0], [1], [0, 0, 1, 1], [], []>} : vector<8x32xbf16>, vector<32x64xbf16>, vector<8x64xf32> -> vector<8x64xf32>
    %c0_27 = arith.constant 0 : index
    %c0_28 = arith.constant 0 : index
    %63 = vector.load %arg9[%c0_27, %c0_28] : memref<1x64xf32, #tpu.memory_space<vmem>>, vector<1x64xf32>
    %64 = vector.broadcast %63 : vector<1x64xf32> to vector<8x64xf32>
    %65 = arith.addf %62, %64 : vector<8x64xf32>
    %cst_29 = arith.constant 5.000000e-01 : f32
    %66 = vector.broadcast %cst_29 : f32 to vector<8x64xf32>
    %67 = arith.mulf %66, %65 : vector<8x64xf32>
    %cst_30 = arith.constant 0.707106769 : f32
    %68 = vector.broadcast %cst_30 : f32 to vector<8x64xf32>
    %69 = arith.mulf %65, %68 : vector<8x64xf32>
    %70 = math.erf %69 : vector<8x64xf32>
    %cst_31 = arith.constant 1.000000e+00 : f32
    %71 = vector.broadcast %cst_31 : f32 to vector<8x64xf32>
    %72 = arith.addf %71, %70 : vector<8x64xf32>
    %73 = arith.mulf %67, %72 : vector<8x64xf32>
    %74 = arith.truncf %73 : vector<8x64xf32> to vector<8x64xbf16>
    %c0_32 = arith.constant 0 : index
    %c0_33 = arith.constant 0 : index
    %75 = vector.load %arg10[%c0_32, %c0_33] : memref<64x32xbf16, #tpu.memory_space<vmem>>, vector<64x32xbf16>
    %cst_34 = arith.constant dense<0.000000e+00> : vector<8x32xf32>
    %76 = tpu.matmul %74, %75, %cst_34 {dimension_numbers = #tpu.dot_dimension_numbers<[1], [0], [0], [1], [0, 0, 1, 1], [], []>} : vector<8x64xbf16>, vector<64x32xbf16>, vector<8x32xf32> -> vector<8x32xf32>
    %c0_35 = arith.constant 0 : index
    %c0_36 = arith.constant 0 : index
    %77 = vector.load %arg11[%c0_35, %c0_36] : memref<1x32xf32, #tpu.memory_space<vmem>>, vector<1x32xf32>
    %78 = vector.broadcast %77 : vector<1x32xf32> to vector<8x32xf32>
    %79 = arith.addf %76, %78 : vector<8x32xf32>
    %80 = arith.addf %59, %79 : vector<8x32xf32>
    %c0_37 = arith.constant 0 : index
    %c0_38 = arith.constant 0 : index
    %81 = vector.load %arg12[%c0_37, %c0_38] : memref<1x32xf32, #tpu.memory_space<vmem>>, vector<1x32xf32>
    %c0_39 = arith.constant 0 : index
    %c0_40 = arith.constant 0 : index
    %82 = vector.load %arg13[%c0_39, %c0_40] : memref<1x32xf32, #tpu.memory_space<vmem>>, vector<1x32xf32>
    %cst_41 = arith.constant dense<0.000000e+00> : vector<8xf32>
    %83 = vector.multi_reduction <add>, %80, %cst_41 [1] : vector<8x32xf32> to vector<8xf32>
    %84 = vector.shape_cast %83 : vector<8xf32> to vector<8x1xf32>
    %cst_42 = arith.constant 3.200000e+01 : f32
    %85 = vector.broadcast %cst_42 : f32 to vector<8x1xf32>
    %86 = arith.divf %84, %85 : vector<8x1xf32>
    %87 = vector.broadcast %86 : vector<8x1xf32> to vector<8x32xf32>
    %88 = arith.subf %80, %87 : vector<8x32xf32>
    %89 = arith.mulf %88, %88 : vector<8x32xf32>
    %cst_43 = arith.constant dense<0.000000e+00> : vector<8xf32>
    %90 = vector.multi_reduction <add>, %89, %cst_43 [1] : vector<8x32xf32> to vector<8xf32>
    %91 = vector.shape_cast %90 : vector<8xf32> to vector<8x1xf32>
    %cst_44 = arith.constant 3.200000e+01 : f32
    %92 = vector.broadcast %cst_44 : f32 to vector<8x1xf32>
    %93 = arith.divf %91, %92 : vector<8x1xf32>
    %94 = vector.broadcast %86 : vector<8x1xf32> to vector<8x32xf32>
    %95 = arith.subf %80, %94 : vector<8x32xf32>
    %cst_45 = arith.constant 9.99999974E-6 : f32
    %96 = vector.broadcast %cst_45 : f32 to vector<8x1xf32>
    %97 = arith.addf %93, %96 : vector<8x1xf32>
    %98 = math.rsqrt %97 : vector<8x1xf32>
    %99 = vector.broadcast %98 : vector<8x1xf32> to vector<8x32xf32>
    %100 = arith.mulf %95, %99 : vector<8x32xf32>
    %101 = vector.broadcast %81 : vector<1x32xf32> to vector<8x32xf32>
    %102 = arith.mulf %100, %101 : vector<8x32xf32>
    %103 = vector.broadcast %82 : vector<1x32xf32> to vector<8x32xf32>
    %104 = arith.addf %102, %103 : vector<8x32xf32>
    %c0_46 = arith.constant 0 : index
    %c0_47 = arith.constant 0 : index
    %c0_48 = arith.constant 0 : index
    %105 = vector.load %arg14[%c0_46, %c0_47, %c0_48] : memref<1x8x32xf32, #tpu.memory_space<vmem>>, vector<1x8x32xf32>
    %106 = vector.shape_cast %105 : vector<1x8x32xf32> to vector<8x32xf32>
    %107 = vector.shape_cast %104 : vector<8x32xf32> to vector<1x8x32xf32>
    tpu.vector_store %arg14[%c0_46, %c0_47, %c0_48], %107 {strides = array<i32>} : memref<1x8x32xf32, #tpu.memory_space<vmem>>, vector<1x8x32xf32>,
    return
  }
  func.func @transform_0(%arg0: i32) -> (i32, i32, i32) {
    %c0_i32 = arith.constant 0 : i32
    %c0_i32_0 = arith.constant 0 : i32
    %c0_i32_1 = arith.constant 0 : i32
    return %arg0, %c0_i32, %c0_i32_0 : i32, i32, i32
  }
  func.func @transform_1(%arg0: i32) -> (i32, i32) {
    %c0_i32 = arith.constant 0 : i32
    %c0_i32_0 = arith.constant 0 : i32
    %c0_i32_1 = arith.constant 0 : i32
    return %c0_i32, %c0_i32_0 : i32, i32
  }
  func.func @transform_2(%arg0: i32) -> (i32, i32) {
    %c0_i32 = arith.constant 0 : i32
    %c0_i32_0 = arith.constant 0 : i32
    %c0_i32_1 = arith.constant 0 : i32
    return %c0_i32, %c0_i32_0 : i32, i32
  }
  func.func @transform_3(%arg0: i32) -> (i32, i32) {
    %c0_i32 = arith.constant 0 : i32
    %c0_i32_0 = arith.constant 0 : i32
    %c0_i32_1 = arith.constant 0 : i32
    return %c0_i32, %c0_i32_0 : i32, i32
  }
  func.func @transform_4(%arg0: i32) -> (i32, i32) {
    %c0_i32 = arith.constant 0 : i32
    %c0_i32_0 = arith.constant 0 : i32
    %c0_i32_1 = arith.constant 0 : i32
    return %c0_i32, %c0_i32_0 : i32, i32
  }
  func.func @transform_5(%arg0: i32) -> (i32, i32) {
    %c0_i32 = arith.constant 0 : i32
    %c0_i32_0 = arith.constant 0 : i32
    %c0_i32_1 = arith.constant 0 : i32
    return %c0_i32, %c0_i32_0 : i32, i32
  }
  func.func @transform_6(%arg0: i32) -> (i32, i32) {
    %c0_i32 = arith.constant 0 : i32
    %c0_i32_0 = arith.constant 0 : i32
    %c0_i32_1 = arith.constant 0 : i32
    return %c0_i32, %c0_i32_0 : i32, i32
  }
  func.func @transform_7(%arg0: i32) -> (i32, i32) {
    %c0_i32 = arith.constant 0 : i32
    %c0_i32_0 = arith.constant 0 : i32
    %c0_i32_1 = arith.constant 0 : i32
    return %c0_i32, %c0_i32_0 : i32, i32
  }
  func.func @transform_8(%arg0: i32) -> (i32, i32) {
    %c0_i32 = arith.constant 0 : i32
    %c0_i32_0 = arith.constant 0 : i32
    %c0_i32_1 = arith.constant 0 : i32
    return %c0_i32, %c0_i32_0 : i32, i32
  }
  func.func @transform_9(%arg0: i32) -> (i32, i32) {
    %c0_i32 = arith.constant 0 : i32
    %c0_i32_0 = arith.constant 0 : i32
    %c0_i32_1 = arith.constant 0 : i32
    return %c0_i32, %c0_i32_0 : i32, i32
  }
  func.func @transform_10(%arg0: i32) -> (i32, i32) {
    %c0_i32 = arith.constant 0 : i32
    %c0_i32_0 = arith.constant 0 : i32
    %c0_i32_1 = arith.constant 0 : i32
    return %c0_i32, %c0_i32_0 : i32, i32
  }
  func.func @transform_11(%arg0: i32) -> (i32, i32) {
    %c0_i32 = arith.constant 0 : i32
    %c0_i32_0 = arith.constant 0 : i32
    %c0_i32_1 = arith.constant 0 : i32
    return %c0_i32, %c0_i32_0 : i32, i32
  }
  func.func @transform_12(%arg0: i32) -> (i32, i32) {
    %c0_i32 = arith.constant 0 : i32
    %c0_i32_0 = arith.constant 0 : i32
    %c0_i32_1 = arith.constant 0 : i32
    return %c0_i32, %c0_i32_0 : i32, i32
  }
  func.func @transform_13(%arg0: i32) -> (i32, i32, i32) {
    %c0_i32 = arith.constant 0 : i32
    %c0_i32_0 = arith.constant 0 : i32
    %c0_i32_1 = arith.constant 0 : i32
    return %arg0, %c0_i32, %c0_i32_0 : i32, i32, i32
  }
}

</mosaic_0001>

<llo_original>
// kernel: tpu_custom_call.1
$region0: #{tpu_custom_call.1}
  #allocation0 [shape = 'u32[]', space=smem, size = 0x4, offset = 0x4, fixed_abs, tag = 'smem constant byte address 0x4 - core index']
  #allocation1 [shape = 'u32[144,128]{1,0:T(1,128)}', space=vmem, size = 0x12000, scoped, tag = 'internal scratch']
  %s0 = inlined_call_operand.vmem [shape: f32[2,8,32], index: 0, kind: input, shape index: {}]
  %s1 = inlined_call_operand.vmem [shape: bf16[32,96], index: 1, kind: input, shape index: {}]
  %s2 = inlined_call_operand.vmem [shape: f32[1,96], index: 2, kind: input, shape index: {}]
  %s3 = inlined_call_operand.vmem [shape: bf16[32,32], index: 3, kind: input, shape index: {}]
  %s4 = inlined_call_operand.vmem [shape: f32[1,32], index: 4, kind: input, shape index: {}]
  %s5 = inlined_call_operand.vmem [shape: f32[1,32], index: 5, kind: input, shape index: {}]
  %s6 = inlined_call_operand.vmem [shape: f32[1,32], index: 6, kind: input, shape index: {}]
  %s7 = inlined_call_operand.hbm [shape: bf16[32,64], index: 7, kind: input, shape index: {}]
  %s8 = inlined_call_operand.vmem [shape: f32[1,64], index: 8, kind: input, shape index: {}]
  %s9 = inlined_call_operand.vmem [shape: bf16[64,32], index: 9, kind: input, shape index: {}]
  %s10 = inlined_call_operand.vmem [shape: f32[1,32], index: 10, kind: input, shape index: {}]
  %s11 = inlined_call_operand.vmem [shape: f32[1,32], index: 11, kind: input, shape index: {}]
  %s12 = inlined_call_operand.vmem [shape: f32[1,32], index: 12, kind: input, shape index: {}]
  %s13 = inlined_call_operand.hbm [shape: f32[2,8,32], index: 13, kind: output, shape index: {}]
  %s14 = sld [smem:[#allocation0]]
  $region89: #{tpu_custom_call.1} parent=0
    _
  %s16 = ssub.s32 1, %s14
  %s17 = scalar_select 0, %s16, %s14
  $region1: #{tpu_custom_call.1} parent=0
    #allocation2 [shape = 'u8[8192]{0}', space=vmem, size = 0x2000, scoped, tag = 'input window, operand 7, single buffered']
    #allocation3 [shape = 's32[2]{0}', space=sflag, size = 0x8, scoped, tag = 'scoped memory for tpu_custom_call.1']
    #allocation4 [shape = 's32[2]{0}', space=sflag, size = 0x8, scoped, tag = 'scoped memory for tpu_custom_call.1']
    #allocation5 [shape = 'u8[8192]{0}', space=vmem, size = 0x2000, scoped, tag = 'output window, operand 0']
    %18 = vsyncpa [#allocation3], 0
    %19 = vsyncpa [#allocation4], 0
    %s20 = scalar_lea.sflag [#allocation4], 1
    %21 = vsyncpa %s20, 0
    loop: start=0, step=1, limit=4
    $region2: #{tpu_custom_call.1} parent=1 // loop_pre_header
      _
    $region3: #{tpu_custom_call.1} parent=1 // loop_header
      %s23 = sphi 0, %s27
      %p24 = scmp.ge.s32.totalorder %s23, 4
      %s33 = sphi 0, %s35
      %s36 = sphi 0, %s33
      %s37 = sphi 0, %s36
      %s53 = sphi 0, %s37
      %s57 = sphi 0, %s57
      %s59 = sphi 0, %s57
      %s60 = sphi 0, %s59
      %s74 = sphi 0, %s60
      %s78 = sphi 0, %s78
      %s80 = sphi 0, %s78
      %s81 = sphi 0, %s80
      %s95 = sphi 0, %s81
      %s99 = sphi 0, %s99
      %s101 = sphi 0, %s99
      %s102 = sphi 0, %s101
      %s116 = sphi 0, %s102
      %s120 = sphi 0, %s120
      %s122 = sphi 0, %s120
      %s123 = sphi 0, %s122
      %s137 = sphi 0, %s123
      %s141 = sphi 0, %s141
      %s143 = sphi 0, %s141
      %s144 = sphi 0, %s143
      %s158 = sphi 0, %s144
      %s162 = sphi 0, %s162
      %s164 = sphi 0, %s162
      %s165 = sphi 0, %s164
      %s179 = sphi 0, %s165
      %s183 = sphi 0, %s183
      %s185 = sphi 0, %s183
      %s186 = sphi 0, %s185
      %s200 = sphi 0, %s186
      %s204 = sphi 0, %s204
      %s206 = sphi 0, %s204
      %s207 = sphi 0, %s206
      %s221 = sphi 0, %s207
      %s225 = sphi 0, %s225
      %s227 = sphi 0, %s225
      %s228 = sphi 0, %s227
      %s242 = sphi 0, %s228
      %s246 = sphi 0, %s246
      %s248 = sphi 0, %s246
      %s249 = sphi 0, %s248
      %s263 = sphi 0, %s249
      %s267 = sphi 0, %s267
      %s269 = sphi 0, %s267
      %s270 = sphi 0, %s269
      %s284 = sphi 0, %s270
      %s288 = sphi 0, %s288
      %s290 = sphi 0, %s288
      %s291 = sphi 0, %s290
      %s305 = sphi 0, %s291
      %s311 = sphi 0, %s313
      %s314 = sphi 0, %s311
      %s315 = sphi 0, %s314
      %s331 = sphi 0, %s315
    $region4: #{tpu_custom_call.1} parent=1 // loop_header_branch
      %26 = sbr.rel (%p24) target = $region8
    $region5: #{tpu_custom_call.1} parent=1 // loop_body
      %s28 = ssub.s32 %s23, 1
      %s29 = ssub.s32 %s23, 2
      %s30 = sadd.s32 %s23, 1
      %s31 = ssub.s32 %s23, %s30
      %p32 = scmp.eq.s32.totalorder %s31, 0
      %s34 = sadd.s32 %s33, 1
      %s35 = scalar_select %p32, %s33, %s34
      %p38 = pneg %p32
      %p39 = scmp.eq.s32.totalorder %s23, 1
      %p40 = por %p38, %p39
      %p41 = scmp.ne.s32.totalorder %s33, %s36
      %p42 = scmp.eq.s32.totalorder %s23, 0
      %p43 = por %p41, %p42
      %p44 = scmp.ne.s32.totalorder %s33, %s36
      %p45 = scmp.eq.s32.totalorder %s28, 1
      %p46 = por %p44, %p45
      %p47 = scmp.ne.s32.totalorder %s36, %s37
      %p48 = scmp.eq.s32.totalorder %s28, 0
      %p49 = por %p47, %p48
      %p50 = scmp.ne.s32.totalorder %s36, %s37
      %p51 = scmp.eq.s32.totalorder %s29, 1
      %p52 = por %p50, %p51
      %p54 = scmp.ne.s32.totalorder %s37, %s53
      %p55 = scmp.eq.s32.totalorder %s29, 0
      %p56 = por %p54, %p55
      %s58 = sadd.s32 %s57, 1
      %p61 = scmp.eq.s32.totalorder %s23, 1
      %p62 = scmp.ne.s32.totalorder %s57, %s59
      %p63 = scmp.eq.s32.totalorder %s23, 0
      %p64 = por %p62, %p63
      %p65 = scmp.ne.s32.totalorder %s57, %s59
      %p66 = scmp.eq.s32.totalorder %s28, 1
      %p67 = por %p65, %p66
      %p68 = scmp.ne.s32.totalorder %s59, %s60
      %p69 = scmp.eq.s32.totalorder %s28, 0
      %p70 = por %p68, %p69
      %p71 = scmp.ne.s32.totalorder %s59, %s60
      %p72 = scmp.eq.s32.totalorder %s29, 1
      %p73 = por %p71, %p72
      %p75 = scmp.ne.s32.totalorder %s60, %s74
      %p76 = scmp.eq.s32.totalorder %s29, 0
      %p77 = por %p75, %p76
      %s79 = sadd.s32 %s78, 1
      %p82 = scmp.eq.s32.totalorder %s23, 1
      %p83 = scmp.ne.s32.totalorder %s78, %s80
      %p84 = scmp.eq.s32.totalorder %s23, 0
      %p85 = por %p83, %p84
      %p86 = scmp.ne.s32.totalorder %s78, %s80
      %p87 = scmp.eq.s32.totalorder %s28, 1
      %p88 = por %p86, %p87
      %p89 = scmp.ne.s32.totalorder %s80, %s81
      %p90 = scmp.eq.s32.totalorder %s28, 0
      %p91 = por %p89, %p90
      %p92 = scmp.ne.s32.totalorder %s80, %s81
      %p93 = scmp.eq.s32.totalorder %s29, 1
      %p94 = por %p92, %p93
      %p96 = scmp.ne.s32.totalorder %s81, %s95
      %p97 = scmp.eq.s32.totalorder %s29, 0
      %p98 = por %p96, %p97
      %s100 = sadd.s32 %s99, 1
      %p103 = scmp.eq.s32.totalorder %s23, 1
      %p104 = scmp.ne.s32.totalorder %s99, %s101
      %p105 = scmp.eq.s32.totalorder %s23, 0
      %p106 = por %p104, %p105
      %p107 = scmp.ne.s32.totalorder %s99, %s101
      %p108 = scmp.eq.s32.totalorder %s28, 1
      %p109 = por %p107, %p108
      %p110 = scmp.ne.s32.totalorder %s101, %s102
      %p111 = scmp.eq.s32.totalorder %s28, 0
      %p112 = por %p110, %p111
      %p113 = scmp.ne.s32.totalorder %s101, %s102
      %p114 = scmp.eq.s32.totalorder %s29, 1
      %p115 = por %p113, %p114
      %p117 = scmp.ne.s32.totalorder %s102, %s116
      %p118 = scmp.eq.s32.totalorder %s29, 0
      %p119 = por %p117, %p118
      %s121 = sadd.s32 %s120, 1
      %p124 = scmp.eq.s32.totalorder %s23, 1
      %p125 = scmp.ne.s32.totalorder %s120, %s122
      %p126 = scmp.eq.s32.totalorder %s23, 0
      %p127 = por %p125, %p126
      %p128 = scmp.ne.s32.totalorder %s120, %s122
      %p129 = scmp.eq.s32.totalorder %s28, 1
      %p130 = por %p128, %p129
      %p131 = scmp.ne.s32.totalorder %s122, %s123
      %p132 = scmp.eq.s32.totalorder %s28, 0
      %p133 = por %p131, %p132
      %p134 = scmp.ne.s32.totalorder %s122, %s123
      %p135 = scmp.eq.s32.totalorder %s29, 1
      %p136 = por %p134, %p135
      %p138 = scmp.ne.s32.totalorder %s123, %s137
      %p139 = scmp.eq.s32.totalorder %s29, 0
      %p140 = por %p138, %p139
      %s142 = sadd.s32 %s141, 1
      %p145 = scmp.eq.s32.totalorder %s23, 1
      %p146 = scmp.ne.s32.totalorder %s141, %s143
      %p147 = scmp.eq.s32.totalorder %s23, 0
      %p148 = por %p146, %p147
      %p149 = scmp.ne.s32.totalorder %s141, %s143
      %p150 = scmp.eq.s32.totalorder %s28, 1
      %p151 = por %p149, %p150
      %p152 = scmp.ne.s32.totalorder %s143, %s144
      %p153 = scmp.eq.s32.totalorder %s28, 0
      %p154 = por %p152, %p153
      %p155 = scmp.ne.s32.totalorder %s143, %s144
      %p156 = scmp.eq.s32.totalorder %s29, 1
      %p157 = por %p155, %p156
      %p159 = scmp.ne.s32.totalorder %s144, %s158
      %p160 = scmp.eq.s32.totalorder %s29, 0
      %p161 = por %p159, %p160
      %s163 = sadd.s32 %s162, 1
      %p166 = scmp.eq.s32.totalorder %s23, 1
      %p167 = scmp.ne.s32.totalorder %s162, %s164
      %p168 = scmp.eq.s32.totalorder %s23, 0
      %p169 = por %p167, %p168
      %p170 = scmp.ne.s32.totalorder %s162, %s164
      %p171 = scmp.eq.s32.totalorder %s28, 1
      %p172 = por %p170, %p171
      %p173 = scmp.ne.s32.totalorder %s164, %s165
      %p174 = scmp.eq.s32.totalorder %s28, 0
      %p175 = por %p173, %p174
      %p176 = scmp.ne.s32.totalorder %s164, %s165
      %p177 = scmp.eq.s32.totalorder %s29, 1
      %p178 = por %p176, %p177
      %p180 = scmp.ne.s32.totalorder %s165, %s179
      %p181 = scmp.eq.s32.totalorder %s29, 0
      %p182 = por %p180, %p181
      %s184 = sadd.s32 %s183, 1
      %p187 = scmp.eq.s32.totalorder %s23, 1
      %p188 = scmp.ne.s32.totalorder %s183, %s185
      %p189 = scmp.eq.s32.totalorder %s23, 0
      %p190 = por %p188, %p189
      %p191 = scmp.ne.s32.totalorder %s183, %s185
      %p192 = scmp.eq.s32.totalorder %s28, 1
      %p193 = por %p191, %p192
      %p194 = scmp.ne.s32.totalorder %s185, %s186
      %p195 = scmp.eq.s32.totalorder %s28, 0
      %p196 = por %p194, %p195
      %p197 = scmp.ne.s32.totalorder %s185, %s186
      %p198 = scmp.eq.s32.totalorder %s29, 1
      %p199 = por %p197, %p198
      %p201 = scmp.ne.s32.totalorder %s186, %s200
      %p202 = scmp.eq.s32.totalorder %s29, 0
      %p203 = por %p201, %p202
      %s205 = sadd.s32 %s204, 1
      %p208 = scmp.eq.s32.totalorder %s23, 1
      %p209 = scmp.ne.s32.totalorder %s204, %s206
      %p210 = scmp.eq.s32.totalorder %s23, 0
      %p211 = por %p209, %p210
      %p212 = scmp.ne.s32.totalorder %s204, %s206
      %p213 = scmp.eq.s32.totalorder %s28, 1
      %p214 = por %p212, %p213
      %p215 = scmp.ne.s32.totalorder %s206, %s207
      %p216 = scmp.eq.s32.totalorder %s28, 0
      %p217 = por %p215, %p216
      %p218 = scmp.ne.s32.totalorder %s206, %s207
      %p219 = scmp.eq.s32.totalorder %s29, 1
      %p220 = por %p218, %p219
      %p222 = scmp.ne.s32.totalorder %s207, %s221
      %p223 = scmp.eq.s32.totalorder %s29, 0
      %p224 = por %p222, %p223
      %s226 = sadd.s32 %s225, 1
      %p229 = scmp.eq.s32.totalorder %s23, 1
      %p230 = scmp.ne.s32.totalorder %s225, %s227
      %p231 = scmp.eq.s32.totalorder %s23, 0
      %p232 = por %p230, %p231
      %p233 = scmp.ne.s32.totalorder %s225, %s227
      %p234 = scmp.eq.s32.totalorder %s28, 1
      %p235 = por %p233, %p234
      %p236 = scmp.ne.s32.totalorder %s227, %s228
      %p237 = scmp.eq.s32.totalorder %s28, 0
      %p238 = por %p236, %p237
      %p239 = scmp.ne.s32.totalorder %s227, %s228
      %p240 = scmp.eq.s32.totalorder %s29, 1
      %p241 = por %p239, %p240
      %p243 = scmp.ne.s32.totalorder %s228, %s242
      %p244 = scmp.eq.s32.totalorder %s29, 0
      %p245 = por %p243, %p244
      %s247 = sadd.s32 %s246, 1
      %p250 = scmp.eq.s32.totalorder %s23, 1
      %p251 = scmp.ne.s32.totalorder %s246, %s248
      %p252 = scmp.eq.s32.totalorder %s23, 0
      %p253 = por %p251, %p252
      %p254 = scmp.ne.s32.totalorder %s246, %s248
      %p255 = scmp.eq.s32.totalorder %s28, 1
      %p256 = por %p254, %p255
      %p257 = scmp.ne.s32.totalorder %s248, %s249
      %p258 = scmp.eq.s32.totalorder %s28, 0
      %p259 = por %p257, %p258
      %p260 = scmp.ne.s32.totalorder %s248, %s249
      %p261 = scmp.eq.s32.totalorder %s29, 1
      %p262 = por %p260, %p261
      %p264 = scmp.ne.s32.totalorder %s249, %s263
      %p265 = scmp.eq.s32.totalorder %s29, 0
      %p266 = por %p264, %p265
      %s268 = sadd.s32 %s267, 1
      %p271 = scmp.eq.s32.totalorder %s23, 1
      %p272 = scmp.ne.s32.totalorder %s267, %s269
      %p273 = scmp.eq.s32.totalorder %s23, 0
      %p274 = por %p272, %p273
      %p275 = scmp.ne.s32.totalorder %s267, %s269
      %p276 = scmp.eq.s32.totalorder %s28, 1
      %p277 = por %p275, %p276
      %p278 = scmp.ne.s32.totalorder %s269, %s270
      %p279 = scmp.eq.s32.totalorder %s28, 0
      %p280 = por %p278, %p279
      %p281 = scmp.ne.s32.totalorder %s269, %s270
      %p282 = scmp.eq.s32.totalorder %s29, 1
      %p283 = por %p281, %p282
      %p285 = scmp.ne.s32.totalorder %s270, %s284
      %p286 = scmp.eq.s32.totalorder %s29, 0
      %p287 = por %p285, %p286
      %s289 = sadd.s32 %s288, 1
      %p292 = scmp.eq.s32.totalorder %s23, 1
      %p293 = scmp.ne.s32.totalorder %s288, %s290
      %p294 = scmp.eq.s32.totalorder %s23, 0
      %p295 = por %p293, %p294
      %p296 = scmp.ne.s32.totalorder %s288, %s290
      %p297 = scmp.eq.s32.totalorder %s28, 1
      %p298 = por %p296, %p297
      %p299 = scmp.ne.s32.totalorder %s290, %s291
      %p300 = scmp.eq.s32.totalorder %s28, 0
      %p301 = por %p299, %p300
      %p302 = scmp.ne.s32.totalorder %s290, %s291
      %p303 = scmp.eq.s32.totalorder %s29, 1
      %p304 = por %p302, %p303
      %p306 = scmp.ne.s32.totalorder %s291, %s305
      %p307 = scmp.eq.s32.totalorder %s29, 0
      %p308 = por %p306, %p307
      %s309 = ssub.s32 %s23, %s30
      %p310 = scmp.eq.s32.totalorder %s309, 0
      %s312 = sadd.s32 %s311, 1
      %s313 = scalar_select %p310, %s311, %s312
      %p316 = pneg %p310
      %p317 = scmp.eq.s32.totalorder %s23, 1
      %p318 = por %p316, %p317
      %p319 = scmp.ne.s32.totalorder %s311, %s314
      %p320 = scmp.eq.s32.totalorder %s23, 0
      %p321 = por %p319, %p320
      %p322 = scmp.ne.s32.totalorder %s311, %s314
      %p323 = scmp.eq.s32.totalorder %s28, 1
      %p324 = por %p322, %p323
      %p325 = scmp.ne.s32.totalorder %s314, %s315
      %p326 = scmp.eq.s32.totalorder %s28, 0
      %p327 = por %p325, %p326
      %p328 = scmp.ne.s32.totalorder %s314, %s315
      %p329 = scmp.eq.s32.totalorder %s29, 1
      %p330 = por %p328, %p329
      %p332 = scmp.ne.s32.totalorder %s315, %s331
      %p333 = scmp.eq.s32.totalorder %s29, 0
      %p334 = por %p332, %p333
      %p335 = scmp.le.s32.totalorder 1, %s23
      %p336 = scmp.lt.s32.totalorder %s23, 3
      %p337 = pnand %p335, %p336
      %p338 = pneg %p337
      // Predicated region
      $region9: #{tpu_custom_call.1} parent=5 // pred_check
        _
      $region10: #{tpu_custom_call.1} parent=5 // pred_check_branch
        %340 = sbr.rel (%p337) target = $region12
      $region11: #{tpu_custom_call.1} parent=5 // pred_region
        %s341 = ssub.s32 %s23, 1
        // Predicated region
        $region13: #{tpu_custom_call.1} parent=11 // pred_check
          %p342 = pneg %p70
        $region14: #{tpu_custom_call.1} parent=11 // pred_check_branch
          %344 = sbr.rel (%p342) target = $region16
        $region15: #{tpu_custom_call.1} parent=11 // pred_region
          _
        $region16: #{tpu_custom_call.1} parent=11 // pred_fallthru
          _
        // Predicated region
        $region17: #{tpu_custom_call.1} parent=11 // pred_check
          %p345 = pneg %p91
        $region18: #{tpu_custom_call.1} parent=11 // pred_check_branch
          %347 = sbr.rel (%p345) target = $region20
        $region19: #{tpu_custom_call.1} parent=11 // pred_region
          _
        $region20: #{tpu_custom_call.1} parent=11 // pred_fallthru
          _
        // Predicated region
        $region21: #{tpu_custom_call.1} parent=11 // pred_check
          %p348 = pneg %p112
        $region22: #{tpu_custom_call.1} parent=11 // pred_check_branch
          %350 = sbr.rel (%p348) target = $region24
        $region23: #{tpu_custom_call.1} parent=11 // pred_region
          _
        $region24: #{tpu_custom_call.1} parent=11 // pred_fallthru
          _
        // Predicated region
        $region25: #{tpu_custom_call.1} parent=11 // pred_check
          %p351 = pneg %p133
        $region26: #{tpu_custom_call.1} parent=11 // pred_check_branch
          %353 = sbr.rel (%p351) target = $region28
        $region27: #{tpu_custom_call.1} parent=11 // pred_region
          _
        $region28: #{tpu_custom_call.1} parent=11 // pred_fallthru
          _
        // Predicated region
        $region29: #{tpu_custom_call.1} parent=11 // pred_check
          %p354 = pneg %p154
        $region30: #{tpu_custom_call.1} parent=11 // pred_check_branch
          %356 = sbr.rel (%p354) target = $region32
        $region31: #{tpu_custom_call.1} parent=11 // pred_region
          _
        $region32: #{tpu_custom_call.1} parent=11 // pred_fallthru
          _
        // Predicated region
        $region33: #{tpu_custom_call.1} parent=11 // pred_check
          %p357 = pneg %p175
        $region34: #{tpu_custom_call.1} parent=11 // pred_check_branch
          %359 = sbr.rel (%p357) target = $region36
        $region35: #{tpu_custom_call.1} parent=11 // pred_region
          _
        $region36: #{tpu_custom_call.1} parent=11 // pred_fallthru
          _
        // Predicated region
        $region37: #{tpu_custom_call.1} parent=11 // pred_check
          %p360 = pneg %p196
        $region38: #{tpu_custom_call.1} parent=11 // pred_check_branch
          %362 = sbr.rel (%p360) target = $region40
        $region39: #{tpu_custom_call.1} parent=11 // pred_region
          %s364 = ssub.s32 256, 256
          %365 = vsyncadd [#allocation3], %s364
          %s366 = sshll.u32 [#allocation2], 4
          %s367 = int_to_ptr.vmem [resolvable:$true] %s366
          %372 = dma.hbm_to_vmem [thread:$0]  %s7, 256, %s367, [#allocation3], 64, 64, 4
        $region40: #{tpu_custom_call.1} parent=11 // pred_fallthru
          _
        // Predicated region
        $region41: #{tpu_custom_call.1} parent=11 // pred_check
          %p373 = pneg %p217
        $region42: #{tpu_custom_call.1} parent=11 // pred_check_branch
          %375 = sbr.rel (%p373) target = $region44
        $region43: #{tpu_custom_call.1} parent=11 // pred_region
          _
        $region44: #{tpu_custom_call.1} parent=11 // pred_fallthru
          _
        // Predicated region
        $region45: #{tpu_custom_call.1} parent=11 // pred_check
          %p376 = pneg %p238
        $region46: #{tpu_custom_call.1} parent=11 // pred_check_branch
          %378 = sbr.rel (%p376) target = $region48
        $region47: #{tpu_custom_call.1} parent=11 // pred_region
          _
        $region48: #{tpu_custom_call.1} parent=11 // pred_fallthru
          _
        // Predicated region
        $region49: #{tpu_custom_call.1} parent=11 // pred_check
          %p379 = pneg %p259
        $region50: #{tpu_custom_call.1} parent=11 // pred_check_branch
          %381 = sbr.rel (%p379) target = $region52
        $region51: #{tpu_custom_call.1} parent=11 // pred_region
          _
        $region52: #{tpu_custom_call.1} parent=11 // pred_fallthru
          _
        // Predicated region
        $region53: #{tpu_custom_call.1} parent=11 // pred_check
          %p382 = pneg %p280
        $region54: #{tpu_custom_call.1} parent=11 // pred_check_branch
          %384 = sbr.rel (%p382) target = $region56
        $region55: #{tpu_custom_call.1} parent=11 // pred_region
          _
        $region56: #{tpu_custom_call.1} parent=11 // pred_fallthru
          _
        // Predicated region
        $region57: #{tpu_custom_call.1} parent=11 // pred_check
          %p385 = pneg %p301
        $region58: #{tpu_custom_call.1} parent=11 // pred_check_branch
          %387 = sbr.rel (%p385) target = $region60
        $region59: #{tpu_custom_call.1} parent=11 // pred_region
          _
        $region60: #{tpu_custom_call.1} parent=11 // pred_fallthru
          _
      $region12: #{tpu_custom_call.1} parent=5 // pred_fallthru
        _
      %p388 = scmp.lt.s32.totalorder %s23, 2
      // Predicated region
      $region61: #{tpu_custom_call.1} parent=5 // pred_check
        %p389 = pneg %p388
      $region62: #{tpu_custom_call.1} parent=5 // pred_check_branch
        %391 = sbr.rel (%p389) target = $region64
      $region63: #{tpu_custom_call.1} parent=5 // pred_region
        // Predicated region
        $region65: #{tpu_custom_call.1} parent=63 // pred_check
          %p392 = pneg %p43
        $region66: #{tpu_custom_call.1} parent=63 // pred_check_branch
          %394 = sbr.rel (%p392) target = $region68
        $region67: #{tpu_custom_call.1} parent=63 // pred_region
          %p395 = scmp.lt.s32.totalorder %s23, 1
          %s396 = scalar_select %p395, %s23, 1
          %s397 = smul.addr %s396, 8
          %s398 = scalar_lea.vmem %s0, %s397
        $region68: #{tpu_custom_call.1} parent=63 // pred_fallthru
          _
      $region64: #{tpu_custom_call.1} parent=5 // pred_fallthru
        _
      %p399 = scmp.le.s32.totalorder 1, %s23
      %p400 = scmp.lt.s32.totalorder %s23, 3
      %p401 = pnand %p399, %p400
      %p402 = pneg %p401
      // Predicated region
      $region69: #{tpu_custom_call.1} parent=5 // pred_check
        _
      $region70: #{tpu_custom_call.1} parent=5 // pred_check_branch
        %404 = sbr.rel (%p401) target = $region72
      $region71: #{tpu_custom_call.1} parent=5 // pred_region
        %s405 = ssub.s32 %s23, 1
        // Predicated region
        $region73: #{tpu_custom_call.1} parent=71 // pred_check
          %p406 = pneg %p196
        $region74: #{tpu_custom_call.1} parent=71 // pred_check_branch
          %408 = sbr.rel (%p406) target = $region76
        $region75: #{tpu_custom_call.1} parent=71 // pred_region
          %409 = dma.done [#allocation3], 256
        $region76: #{tpu_custom_call.1} parent=71 // pred_fallthru
          _
        %p410 = scmp.lt.s32.totalorder %s28, 1
        %s411 = scalar_select %p410, %s28, 1
        %s412 = smul.addr %s411, 8
        %s413 = scalar_lea.vmem %s0, %s412
        %p414 = pneg %p49
        %p415 = pneg %p46
        %p416 = pneg %p70
        %p417 = pneg %p67
        %p418 = pneg %p91
        %p419 = pneg %p88
        %p420 = pneg %p112
        %p421 = pneg %p109
        %p422 = pneg %p133
        %p423 = pneg %p130
        %p424 = pneg %p154
        %p425 = pneg %p151
        %p426 = pneg %p175
        %p427 = pneg %p172
        %p428 = pneg %p196
        %p429 = pneg %p193
        %p430 = pneg %p217
        %p431 = pneg %p214
        %p432 = pneg %p238
        %p433 = pneg %p235
        %p434 = pneg %p259
        %p435 = pneg %p256
        %p436 = pneg %p280
        %p437 = pneg %p277
        %p438 = pneg %p301
        %p439 = pneg %p298
        %p440 = pneg %p327
        %p441 = pneg %p324
        %s442 = sand.u32 %s314, 1
        %s443 = scalar_lea.sflag [#allocation4], %s442
        %s444 = sand.u32 %s314, 1
        %s445 = smul.addr %s444, 8
        %s446 = scalar_lea.vmem [#allocation5], %s445
        %p447 = scmp.lt.s32.totalorder %s28, 1
        %s448 = scalar_select %p447, %s28, 1
        %s449 = smul.addr %s448, 8
        %s450 = scalar_lea.vmem %s0, %s449
        %v452 = vld [vmem:[%s450] sm:$0xff]
        %v453 = vpack.c.bf16 %v452, %v452
        %v454 = vld [vmem:[%s1] sm:$0xf]
        %v455 = vld [vmem:[%s1 + $0x4] sm:$0xf]
        %v456 = vld [vmem:[%s1 + $0x8] sm:$0xf]
        %v457 = vld [vmem:[%s1 + $0xc] sm:$0xf]
        %v458 = vld [vmem:[%s2] sm:$0x1]
        %v460 = vlaneseq
        %v461 = vshrl.u32 %v460, 7
        %v462 = vsub.s32 0, %v461
        %v463 = vrot.slane %v458, %v462
        %v469 = vunpack.c.l.b16 %v454
        %v470 = vunpack.c.l.b16 %v455
        %v471 = vunpack.c.l.b16 %v456
        %v472 = vunpack.c.l.b16 %v457
        %v473 = vpack.c.b16 %v470, %v469
        %v474 = vpack.c.b16 %v472, %v471
        %vm477 = vcmask 261120
        %v479 = vsel %vm477, %v453, 0
        %481 = vmatprep.subr.bf16.mxu0 0
        %482 = vmatpush1.bf16.msra.mxu0 %v473
        %483 = vmatprep.subr.bf16.mxu0 0
        %484 = vmatpush1.bf16.msra.mxu0 %v474
        %485 = vmatprep.subr.bf16.mxu0 0
        %486 = vmatpush1.bf16.msra.mxu0 0
        %487 = vmatprep.subr.bf16.mxu0 0
        %488 = vmatpush1.bf16.msra.mxu0 0
        %489 = vmatprep.subr.bf16.mxu0 0
        %490 = vmatpush1.bf16.msra.mxu0 0
        %491 = vmatprep.subr.bf16.mxu0 0
        %492 = vmatpush1.bf16.msra.mxu0 0
        %493 = vmatprep.subr.bf16.mxu0 0
        %494 = vmatpush1.bf16.msra.mxu0 0
        %495 = vmatprep.subr.bf16.mxu0 0
        %496 = vmatpush1.bf16.msra.mxu0 0
        %497 = vmatprep.subr.bf16.mxu0 0
        %498 = vmatpush1.bf16.msra.mxu0 0
        %499 = vmatprep.subr.bf16.mxu0 0
        %500 = vmatpush1.bf16.msra.mxu0 0
        %501 = vmatprep.subr.bf16.mxu0 0
        %502 = vmatpush1.bf16.msra.mxu0 0
        %503 = vmatprep.subr.bf16.mxu0 0
        %504 = vmatpush1.bf16.msra.mxu0 0
        %505 = vmatprep.subr.bf16.mxu0 0
        %506 = vmatpush1.bf16.msra.mxu0 0
        %507 = vmatprep.subr.bf16.mxu0 0
        %508 = vmatpush1.bf16.msra.mxu0 0
        %509 = vmatprep.subr.bf16.mxu0 0
        %510 = vmatpush1.bf16.msra.mxu0 0
        %511 = vmatprep.subr.bf16.mxu0 0
        %512 = vmatpush1.bf16.msra.mxu0 0
        %513 = vmatprep.mubr.bf16.mxu0 0
        %514 = vmatmul.mubr.bf16.gmra.mrb[0].mxu0 %v479
        %v515 = vpop.f32.mrb[0].mxu0
        %v516 = vadd.f32 %v463, %v515
        %v517 = vpop.f32.mrb[0].mxu0
        %v518 = vpop.f32.mrb[0].mxu0
        %v519 = vpop.f32.mrb[0].mxu0
        %520 = vdwg.mxu0
        %522 = vrot.lane.b32.xlu0 %v516, 120
        %v523 = vpop.permute.xlu0 %522
        %525 = vrot.lane.b32.xlu0 %v516, 112
        %v526 = vpop.permute.xlu0 %525
        %528 = vrot.lane.b32.xlu0 %v516, 104
        %v529 = vpop.permute.xlu0 %528
        %531 = vrot.lane.b32.xlu0 %v516, 96
        %v532 = vpop.permute.xlu0 %531
        %534 = vrot.lane.b32.xlu0 %v516, 88
        %v535 = vpop.permute.xlu0 %534
        %537 = vrot.lane.b32.xlu0 %v516, 80
        %v538 = vpop.permute.xlu0 %537
        %540 = vrot.lane.b32.xlu0 %v516, 72
        %v541 = vpop.permute.xlu0 %540
        %543 = vrot.lane.b32.xlu0 %v516, 64
        %v544 = vpop.permute.xlu0 %543
        %546 = vrot.lane.b32.xlu0 %v516, 56
        %v547 = vpop.permute.xlu0 %546
        %549 = vrot.lane.b32.xlu0 %v516, 48
        %v550 = vpop.permute.xlu0 %549
        %552 = vrot.lane.b32.xlu0 %v516, 40
        %v553 = vpop.permute.xlu0 %552
        %v555 = vcombine.low %v516, %v526
        %v556 = vcombine.high %v516, %v526
        %v558 = vunpack.c.l.s4 1983009808
        %v559 = vunpack.c.0.s8 %v558
        %v560 = vlaneseq
        %v561 = vshrl.u32 %v560, 7
        %v562 = vsub.s32 %v559, %v561
        %v563 = vrot.slane %v555, %v562
        %v565 = vunpack.c.l.s4 1983009808
        %v566 = vunpack.c.0.s8 %v565
        %v567 = vlaneseq
        %v568 = vshrl.u32 %v567, 7
        %v569 = vsub.s32 %v566, %v568
        %v570 = vrot.slane %v556, %v569
        %v571 = vcombine.low %v523, %v529
        %v572 = vcombine.high %v523, %v529
        %v574 = vunpack.c.l.s4 1983009808
        %v575 = vunpack.c.0.s8 %v574
        %v576 = vlaneseq
        %v577 = vshrl.u32 %v576, 7
        %v578 = vsub.s32 %v575, %v577
        %v579 = vrot.slane %v571, %v578
        %v581 = vunpack.c.l.s4 1983009808
        %v582 = vunpack.c.0.s8 %v581
        %v583 = vlaneseq
        %v584 = vshrl.u32 %v583, 7
        %v585 = vsub.s32 %v582, %v584
        %v586 = vrot.slane %v572, %v585
        %v587 = vcombine.low %v532, %v538
        %v588 = vcombine.high %v532, %v538
        %v590 = vunpack.c.l.s4 1983009808
        %v591 = vunpack.c.0.s8 %v590
        %v592 = vlaneseq
        %v593 = vshrl.u32 %v592, 7
        %v594 = vsub.s32 %v591, %v593
        %v595 = vrot.slane %v587, %v594
        %v597 = vunpack.c.l.s4 1983009808
        %v598 = vunpack.c.0.s8 %v597
        %v599 = vlaneseq
        %v600 = vshrl.u32 %v599, 7
        %v601 = vsub.s32 %v598, %v600
        %v602 = vrot.slane %v588, %v601
        %v603 = vcombine.low %v535, %v541
        %v604 = vcombine.high %v535, %v541
        %v606 = vunpack.c.l.s4 1983009808
        %v607 = vunpack.c.0.s8 %v606
        %v608 = vlaneseq
        %v609 = vshrl.u32 %v608, 7
        %v610 = vsub.s32 %v607, %v609
        %v611 = vrot.slane %v603, %v610
        %v613 = vunpack.c.l.s4 1983009808
        %v614 = vunpack.c.0.s8 %v613
        %v615 = vlaneseq
        %v616 = vshrl.u32 %v615, 7
        %v617 = vsub.s32 %v614, %v616
        %v618 = vrot.slane %v604, %v617
        %v619 = vcombine.low %v563, %v579
        %v620 = vcombine.high %v563, %v579
        %v622 = vunpack.c.l.s4 1934713408
        %v623 = vunpack.c.0.s8 %v622
        %v624 = vlaneseq
        %v625 = vshrl.u32 %v624, 7
        %v626 = vsub.s32 %v623, %v625
        %v627 = vrot.slane %v619, %v626
        %v629 = vunpack.c.l.s4 1934713408
        %v630 = vunpack.c.0.s8 %v629
        %v631 = vlaneseq
        %v632 = vshrl.u32 %v631, 7
        %v633 = vsub.s32 %v630, %v632
        %v634 = vrot.slane %v620, %v633
        %v635 = vcombine.low %v570, %v586
        %v636 = vcombine.high %v570, %v586
        %v638 = vunpack.c.l.s4 1934713408
        %v639 = vunpack.c.0.s8 %v638
        %v640 = vlaneseq
        %v641 = vshrl.u32 %v640, 7
        %v642 = vsub.s32 %v639, %v641
        %v643 = vrot.slane %v635, %v642
        %v645 = vunpack.c.l.s4 1934713408
        %v646 = vunpack.c.0.s8 %v645
        %v647 = vlaneseq
        %v648 = vshrl.u32 %v647, 7
        %v649 = vsub.s32 %v646, %v648
        %v650 = vrot.slane %v636, %v649
        %v651 = vcombine.low %v595, %v611
        %v652 = vcombine.high %v595, %v611
        %v654 = vunpack.c.l.s4 1934713408
        %v655 = vunpack.c.0.s8 %v654
        %v656 = vlaneseq
        %v657 = vshrl.u32 %v656, 7
        %v658 = vsub.s32 %v655, %v657
        %v659 = vrot.slane %v651, %v658
        %v661 = vunpack.c.l.s4 1934713408
        %v662 = vunpack.c.0.s8 %v661
        %v663 = vlaneseq
        %v664 = vshrl.u32 %v663, 7
        %v665 = vsub.s32 %v662, %v664
        %v666 = vrot.slane %v652, %v665
        %v667 = vcombine.low %v602, %v618
        %v668 = vcombine.high %v602, %v618
        %v670 = vunpack.c.l.s4 1934713408
        %v671 = vunpack.c.0.s8 %v670
        %v672 = vlaneseq
        %v673 = vshrl.u32 %v672, 7
        %v674 = vsub.s32 %v671, %v673
        %v675 = vrot.slane %v667, %v674
        %v677 = vunpack.c.l.s4 1934713408
        %v678 = vunpack.c.0.s8 %v677
        %v679 = vlaneseq
        %v680 = vshrl.u32 %v679, 7
        %v681 = vsub.s32 %v678, %v680
        %v682 = vrot.slane %v668, %v681
        %v683 = vcombine.low %v627, %v659
        %v684 = vcombine.high %v627, %v659
        %v685 = vcombine.low %v634, %v666
        %v686 = vcombine.high %v634, %v666
        %v687 = vcombine.low %v643, %v675
        %v688 = vcombine.high %v643, %v675
        %v689 = vcombine.low %v650, %v682
        %v690 = vcombine.high %v650, %v682
        %v691 = vcombine.low %v544, %v550
        %v692 = vcombine.high %v544, %v550
        %v694 = vunpack.c.l.s4 1983009808
        %v695 = vunpack.c.0.s8 %v694
        %v696 = vlaneseq
        %v697 = vshrl.u32 %v696, 7
        %v698 = vsub.s32 %v695, %v697
        %v699 = vrot.slane %v691, %v698
        %v701 = vunpack.c.l.s4 1983009808
        %v702 = vunpack.c.0.s8 %v701
        %v703 = vlaneseq
        %v704 = vshrl.u32 %v703, 7
        %v705 = vsub.s32 %v702, %v704
        %v706 = vrot.slane %v692, %v705
        %v707 = vcombine.low %v547, %v553
        %v708 = vcombine.high %v547, %v553
        %v710 = vunpack.c.l.s4 1983009808
        %v711 = vunpack.c.0.s8 %v710
        %v712 = vlaneseq
        %v713 = vshrl.u32 %v712, 7
        %v714 = vsub.s32 %v711, %v713
        %v715 = vrot.slane %v707, %v714
        %v717 = vunpack.c.l.s4 1983009808
        %v718 = vunpack.c.0.s8 %v717
        %v719 = vlaneseq
        %v720 = vshrl.u32 %v719, 7
        %v721 = vsub.s32 %v718, %v720
        %v722 = vrot.slane %v708, %v721
        %v723 = vcombine.low %v699, %v715
        %v724 = vcombine.high %v699, %v715
        %v726 = vunpack.c.l.s4 1934713408
        %v727 = vunpack.c.0.s8 %v726
        %v728 = vlaneseq
        %v729 = vshrl.u32 %v728, 7
        %v730 = vsub.s32 %v727, %v729
        %v731 = vrot.slane %v723, %v730
        %v733 = vunpack.c.l.s4 1934713408
        %v734 = vunpack.c.0.s8 %v733
        %v735 = vlaneseq
        %v736 = vshrl.u32 %v735, 7
        %v737 = vsub.s32 %v734, %v736
        %v738 = vrot.slane %v724, %v737
        %v739 = vcombine.low %v706, %v722
        %v740 = vcombine.high %v706, %v722
        %v742 = vunpack.c.l.s4 1934713408
        %v743 = vunpack.c.0.s8 %v742
        %v744 = vlaneseq
        %v745 = vshrl.u32 %v744, 7
        %v746 = vsub.s32 %v743, %v745
        %v747 = vrot.slane %v739, %v746
        %v749 = vunpack.c.l.s4 1934713408
        %v750 = vunpack.c.0.s8 %v749
        %v751 = vlaneseq
        %v752 = vshrl.u32 %v751, 7
        %v753 = vsub.s32 %v750, %v752
        %v754 = vrot.slane %v740, %v753
        %v755 = vcombine.high %v731, 0.0
        %v756 = vcombine.high %v738, 0.0
        %v757 = vcombine.high %v747, 0.0
        %v758 = vcombine.high %v754, 0.0
        %v759 = vcombine.low %v683, %v685
        %v760 = vcombine.high %v683, %v685
        %v762 = vunpack.c.l.s4 1983009808
        %v763 = vunpack.c.0.s8 %v762
        %v764 = vlaneseq
        %v765 = vshrl.u32 %v764, 7
        %v766 = vsub.s32 %v763, %v765
        %v767 = vrot.slane %v759, %v766
        %v769 = vunpack.c.l.s4 1983009808
        %v770 = vunpack.c.0.s8 %v769
        %v771 = vlaneseq
        %v772 = vshrl.u32 %v771, 7
        %v773 = vsub.s32 %v770, %v772
        %v774 = vrot.slane %v760, %v773
        %v775 = vcombine.low %v684, %v686
        %v776 = vcombine.high %v684, %v686
        %v778 = vunpack.c.l.s4 1983009808
        %v779 = vunpack.c.0.s8 %v778
        %v780 = vlaneseq
        %v781 = vshrl.u32 %v780, 7
        %v782 = vsub.s32 %v779, %v781
        %v783 = vrot.slane %v775, %v782
        %v785 = vunpack.c.l.s4 1983009808
        %v786 = vunpack.c.0.s8 %v785
        %v787 = vlaneseq
        %v788 = vshrl.u32 %v787, 7
        %v789 = vsub.s32 %v786, %v788
        %v790 = vrot.slane %v776, %v789
        %v791 = vcombine.low %v687, %v689
        %v792 = vcombine.high %v687, %v689
        %v794 = vunpack.c.l.s4 1983009808
        %v795 = vunpack.c.0.s8 %v794
        %v796 = vlaneseq
        %v797 = vshrl.u32 %v796, 7
        %v798 = vsub.s32 %v795, %v797
        %v799 = vrot.slane %v791, %v798
        %v801 = vunpack.c.l.s4 1983009808
        %v802 = vunpack.c.0.s8 %v801
        %v803 = vlaneseq
        %v804 = vshrl.u32 %v803, 7
        %v805 = vsub.s32 %v802, %v804
        %v806 = vrot.slane %v792, %v805
        %v807 = vcombine.low %v688, %v690
        %v808 = vcombine.high %v688, %v690
        %v810 = vunpack.c.l.s4 1983009808
        %v811 = vunpack.c.0.s8 %v810
        %v812 = vlaneseq
        %v813 = vshrl.u32 %v812, 7
        %v814 = vsub.s32 %v811, %v813
        %v815 = vrot.slane %v807, %v814
        %v817 = vunpack.c.l.s4 1983009808
        %v818 = vunpack.c.0.s8 %v817
        %v819 = vlaneseq
        %v820 = vshrl.u32 %v819, 7
        %v821 = vsub.s32 %v818, %v820
        %v822 = vrot.slane %v808, %v821
        %v823 = vcombine.low %v767, %v783
        %v824 = vcombine.high %v767, %v783
        %v826 = vunpack.c.l.s4 1934713408
        %v827 = vunpack.c.0.s8 %v826
        %v828 = vlaneseq
        %v829 = vshrl.u32 %v828, 7
        %v830 = vsub.s32 %v827, %v829
        %v831 = vrot.slane %v823, %v830
        %v833 = vunpack.c.l.s4 1934713408
        %v834 = vunpack.c.0.s8 %v833
        %v835 = vlaneseq
        %v836 = vshrl.u32 %v835, 7
        %v837 = vsub.s32 %v834, %v836
        %v838 = vrot.slane %v824, %v837
        %v839 = vcombine.low %v774, %v790
        %v840 = vcombine.high %v774, %v790
        %v842 = vunpack.c.l.s4 1934713408
        %v843 = vunpack.c.0.s8 %v842
        %v844 = vlaneseq
        %v845 = vshrl.u32 %v844, 7
        %v846 = vsub.s32 %v843, %v845
        %v847 = vrot.slane %v839, %v846
        %v849 = vunpack.c.l.s4 1934713408
        %v850 = vunpack.c.0.s8 %v849
        %v851 = vlaneseq
        %v852 = vshrl.u32 %v851, 7
        %v853 = vsub.s32 %v850, %v852
        %v854 = vrot.slane %v840, %v853
        %v855 = vcombine.low %v799, %v815
        %v856 = vcombine.high %v799, %v815
        %v858 = vunpack.c.l.s4 1934713408
        %v859 = vunpack.c.0.s8 %v858
        %v860 = vlaneseq
        %v861 = vshrl.u32 %v860, 7
        %v862 = vsub.s32 %v859, %v861
        %v863 = vrot.slane %v855, %v862
        %v865 = vunpack.c.l.s4 1934713408
        %v866 = vunpack.c.0.s8 %v865
        %v867 = vlaneseq
        %v868 = vshrl.u32 %v867, 7
        %v869 = vsub.s32 %v866, %v868
        %v870 = vrot.slane %v856, %v869
        %v871 = vcombine.low %v806, %v822
        %v872 = vcombine.high %v806, %v822
        %v874 = vunpack.c.l.s4 1934713408
        %v875 = vunpack.c.0.s8 %v874
        %v876 = vlaneseq
        %v877 = vshrl.u32 %v876, 7
        %v878 = vsub.s32 %v875, %v877
        %v879 = vrot.slane %v871, %v878
        %v881 = vunpack.c.l.s4 1934713408
        %v882 = vunpack.c.0.s8 %v881
        %v883 = vlaneseq
        %v884 = vshrl.u32 %v883, 7
        %v885 = vsub.s32 %v882, %v884
        %v886 = vrot.slane %v872, %v885
        %v887 = vcombine.low %v831, %v863
        %v888 = vcombine.high %v831, %v863
        %v889 = vcombine.low %v838, %v870
        %v890 = vcombine.high %v838, %v870
        %v891 = vcombine.low %v847, %v879
        %v892 = vcombine.high %v847, %v879
        %v893 = vcombine.low %v854, %v886
        %v894 = vcombine.high %v854, %v886
        %v895 = vcombine.low %v731, %v738
        %v897 = vunpack.c.l.s4 1983009808
        %v898 = vunpack.c.0.s8 %v897
        %v899 = vlaneseq
        %v900 = vshrl.u32 %v899, 7
        %v901 = vsub.s32 %v898, %v900
        %v902 = vrot.slane %v895, %v901
        %v903 = vcombine.low %v755, %v756
        %v905 = vunpack.c.l.s4 1983009808
        %v906 = vunpack.c.0.s8 %v905
        %v907 = vlaneseq
        %v908 = vshrl.u32 %v907, 7
        %v909 = vsub.s32 %v906, %v908
        %v910 = vrot.slane %v903, %v909
        %v911 = vcombine.low %v747, %v754
        %v913 = vunpack.c.l.s4 1983009808
        %v914 = vunpack.c.0.s8 %v913
        %v915 = vlaneseq
        %v916 = vshrl.u32 %v915, 7
        %v917 = vsub.s32 %v914, %v916
        %v918 = vrot.slane %v911, %v917
        %v919 = vcombine.low %v757, %v758
        %v921 = vunpack.c.l.s4 1983009808
        %v922 = vunpack.c.0.s8 %v921
        %v923 = vlaneseq
        %v924 = vshrl.u32 %v923, 7
        %v925 = vsub.s32 %v922, %v924
        %v926 = vrot.slane %v919, %v925
        %v927 = vcombine.low %v902, %v910
        %v928 = vcombine.high %v902, %v910
        %v930 = vunpack.c.l.s4 1934713408
        %v931 = vunpack.c.0.s8 %v930
        %v932 = vlaneseq
        %v933 = vshrl.u32 %v932, 7
        %v934 = vsub.s32 %v931, %v933
        %v935 = vrot.slane %v927, %v934
        %v937 = vunpack.c.l.s4 1934713408
        %v938 = vunpack.c.0.s8 %v937
        %v939 = vlaneseq
        %v940 = vshrl.u32 %v939, 7
        %v941 = vsub.s32 %v938, %v940
        %v942 = vrot.slane %v928, %v941
        %v943 = vcombine.low %v918, %v926
        %v944 = vcombine.high %v918, %v926
        %v946 = vunpack.c.l.s4 1934713408
        %v947 = vunpack.c.0.s8 %v946
        %v948 = vlaneseq
        %v949 = vshrl.u32 %v948, 7
        %v950 = vsub.s32 %v947, %v949
        %v951 = vrot.slane %v943, %v950
        %v953 = vunpack.c.l.s4 1934713408
        %v954 = vunpack.c.0.s8 %v953
        %v955 = vlaneseq
        %v956 = vshrl.u32 %v955, 7
        %v957 = vsub.s32 %v954, %v956
        %v958 = vrot.slane %v944, %v957
        %v959 = vcombine.low %v935, %v951
        %v960 = vcombine.high %v935, %v951
        %v961 = vcombine.low %v942, %v958
        %v962 = vcombine.high %v942, %v958
        %v963 = vpack.c.bf16 %v887, %v887
        %v964 = vpack.c.bf16 %v888, %v888
        %v965 = vpack.c.bf16 %v889, %v889
        %v966 = vpack.c.bf16 %v890, %v890
        %v967 = vpack.c.bf16 %v891, %v891
        %v968 = vpack.c.bf16 %v892, %v892
        %v969 = vpack.c.bf16 %v893, %v893
        %v970 = vpack.c.bf16 %v894, %v894
        %v971 = vpack.c.bf16 %v959, %v959
        %v972 = vpack.c.bf16 %v960, %v960
        %v973 = vpack.c.bf16 %v961, %v961
        %v974 = vpack.c.bf16 %v962, %v962
        %vm975 = vcmask 64512
        %v977 = vsel %vm975, %v963, 0
        %v980 = vsel %vm975, %v967, 0
        %982 = vmatprep.subr.bf16.mxu0 0
        %983 = vmatpush1.bf16.xpose.msra.mxu0 %v980
        %984 = vmatprep.subr.bf16.mxu0 0
        %985 = vmatpush1.bf16.xpose.msra.mxu0 0
        %986 = vmatprep.subr.bf16.mxu0 0
        %987 = vmatpush1.bf16.xpose.msra.mxu0 0
        %988 = vmatprep.subr.bf16.mxu0 0
        %989 = vmatpush1.bf16.xpose.msra.mxu0 0
        %990 = vmatprep.subr.bf16.mxu0 0
        %991 = vmatpush1.bf16.xpose.msra.mxu0 0
        %992 = vmatprep.subr.bf16.mxu0 0
        %993 = vmatpush1.bf16.xpose.msra.mxu0 0
        %994 = vmatprep.subr.bf16.mxu0 0
        %995 = vmatpush1.bf16.xpose.msra.mxu0 0
        %996 = vmatprep.subr.bf16.mxu0 0
        %997 = vmatpush1.bf16.xpose.msra.mxu0 0
        %998 = vmatprep.subr.bf16.mxu0 0
        %999 = vmatpush1.bf16.xpose.msra.mxu0 0
        %1000 = vmatprep.subr.bf16.mxu0 0
        %1001 = vmatpush1.bf16.xpose.msra.mxu0 0
        %1002 = vmatprep.subr.bf16.mxu0 0
        %1003 = vmatpush1.bf16.xpose.msra.mxu0 0
        %1004 = vmatprep.subr.bf16.mxu0 0
        %1005 = vmatpush1.bf16.xpose.msra.mxu0 0
        %1006 = vmatprep.subr.bf16.mxu0 0
        %1007 = vmatpush1.bf16.xpose.msra.mxu0 0
        %1008 = vmatprep.subr.bf16.mxu0 0
        %1009 = vmatpush1.bf16.xpose.msra.mxu0 0
        %1010 = vmatprep.subr.bf16.mxu0 0
        %1011 = vmatpush1.bf16.xpose.msra.mxu0 0
        %1012 = vmatprep.subr.bf16.mxu0 0
        %1013 = vmatpush1.bf16.xpose.msra.mxu0 0
        %1014 = vmatprep.mubr.bf16.mxu0 0
        %1015 = vmatmul.mubr.bf16.gmra.mrb[0].mxu0 %v977
        %v1016 = vpop.f32.mrb[0].mxu0
        %v1017 = vadd.f32 0.0, %v1016
        %v1018 = vpop.f32.mrb[0].mxu0
        %v1019 = vpop.f32.mrb[0].mxu0
        %v1020 = vpop.f32.mrb[0].mxu0
        %1021 = vdwg.mxu0
        %v1023 = vsel %vm975, %v964, 0
        %v1026 = vsel %vm975, %v968, 0
        %1028 = vmatprep.subr.bf16.mxu0 0
        %1029 = vmatpush1.bf16.xpose.msra.mxu0 %v1026
        %1030 = vmatprep.subr.bf16.mxu0 0
        %1031 = vmatpush1.bf16.xpose.msra.mxu0 0
        %1032 = vmatprep.subr.bf16.mxu0 0
        %1033 = vmatpush1.bf16.xpose.msra.mxu0 0
        %1034 = vmatprep.subr.bf16.mxu0 0
        %1035 = vmatpush1.bf16.xpose.msra.mxu0 0
        %1036 = vmatprep.subr.bf16.mxu0 0
        %1037 = vmatpush1.bf16.xpose.msra.mxu0 0
        %1038 = vmatprep.subr.bf16.mxu0 0
        %1039 = vmatpush1.bf16.xpose.msra.mxu0 0
        %1040 = vmatprep.subr.bf16.mxu0 0
        %1041 = vmatpush1.bf16.xpose.msra.mxu0 0
        %1042 = vmatprep.subr.bf16.mxu0 0
        %1043 = vmatpush1.bf16.xpose.msra.mxu0 0
        %1044 = vmatprep.subr.bf16.mxu0 0
        %1045 = vmatpush1.bf16.xpose.msra.mxu0 0
        %1046 = vmatprep.subr.bf16.mxu0 0
        %1047 = vmatpush1.bf16.xpose.msra.mxu0 0
        %1048 = vmatprep.subr.bf16.mxu0 0
        %1049 = vmatpush1.bf16.xpose.msra.mxu0 0
        %1050 = vmatprep.subr.bf16.mxu0 0
        %1051 = vmatpush1.bf16.xpose.msra.mxu0 0
        %1052 = vmatprep.subr.bf16.mxu0 0
        %1053 = vmatpush1.bf16.xpose.msra.mxu0 0
        %1054 = vmatprep.subr.bf16.mxu0 0
        %1055 = vmatpush1.bf16.xpose.msra.mxu0 0
        %1056 = vmatprep.subr.bf16.mxu0 0
        %1057 = vmatpush1.bf16.xpose.msra.mxu0 0
        %1058 = vmatprep.subr.bf16.mxu0 0
        %1059 = vmatpush1.bf16.xpose.msra.mxu0 0
        %1060 = vmatprep.mubr.bf16.mxu0 0
        %1061 = vmatmul.mubr.bf16.gmra.mrb[0].mxu0 %v1023
        %v1062 = vpop.f32.mrb[0].mxu0
        %v1063 = vadd.f32 0.0, %v1062
        %v1064 = vpop.f32.mrb[0].mxu0
        %v1065 = vpop.f32.mrb[0].mxu0
        %v1066 = vpop.f32.mrb[0].mxu0
        %1067 = vdwg.mxu0
        %v1069 = vsel %vm975, %v965, 0
        %v1072 = vsel %vm975, %v969, 0
        %1074 = vmatprep.subr.bf16.mxu0 0
        %1075 = vmatpush1.bf16.xpose.msra.mxu0 %v1072
        %1076 = vmatprep.subr.bf16.mxu0 0
        %1077 = vmatpush1.bf16.xpose.msra.mxu0 0
        %1078 = vmatprep.subr.bf16.mxu0 0
        %1079 = vmatpush1.bf16.xpose.msra.mxu0 0
        %1080 = vmatprep.subr.bf16.mxu0 0
        %1081 = vmatpush1.bf16.xpose.msra.mxu0 0
        %1082 = vmatprep.subr.bf16.mxu0 0
        %1083 = vmatpush1.bf16.xpose.msra.mxu0 0
        %1084 = vmatprep.subr.bf16.mxu0 0
        %1085 = vmatpush1.bf16.xpose.msra.mxu0 0
        %1086 = vmatprep.subr.bf16.mxu0 0
        %1087 = vmatpush1.bf16.xpose.msra.mxu0 0
        %1088 = vmatprep.subr.bf16.mxu0 0
        %1089 = vmatpush1.bf16.xpose.msra.mxu0 0
        %1090 = vmatprep.subr.bf16.mxu0 0
        %1091 = vmatpush1.bf16.xpose.msra.mxu0 0
        %1092 = vmatprep.subr.bf16.mxu0 0
        %1093 = vmatpush1.bf16.xpose.msra.mxu0 0
        %1094 = vmatprep.subr.bf16.mxu0 0
        %1095 = vmatpush1.bf16.xpose.msra.mxu0 0
        %1096 = vmatprep.subr.bf16.mxu0 0
        %1097 = vmatpush1.bf16.xpose.msra.mxu0 0
        %1098 = vmatprep.subr.bf16.mxu0 0
        %1099 = vmatpush1.bf16.xpose.msra.mxu0 0
        %1100 = vmatprep.subr.bf16.mxu0 0
        %1101 = vmatpush1.bf16.xpose.msra.mxu0 0
        %1102 = vmatprep.subr.bf16.mxu0 0
        %1103 = vmatpush1.bf16.xpose.msra.mxu0 0
        %1104 = vmatprep.subr.bf16.mxu0 0
        %1105 = vmatpush1.bf16.xpose.msra.mxu0 0
        %1106 = vmatprep.mubr.bf16.mxu0 0
        %1107 = vmatmul.mubr.bf16.gmra.mrb[0].mxu0 %v1069
        %v1108 = vpop.f32.mrb[0].mxu0
        %v1109 = vadd.f32 0.0, %v1108
        %v1110 = vpop.f32.mrb[0].mxu0
        %v1111 = vpop.f32.mrb[0].mxu0
        %v1112 = vpop.f32.mrb[0].mxu0
        %1113 = vdwg.mxu0
        %v1115 = vsel %vm975, %v966, 0
        %v1118 = vsel %vm975, %v970, 0
        %1120 = vmatprep.subr.bf16.mxu0 0
        %1121 = vmatpush1.bf16.xpose.msra.mxu0 %v1118
        %1122 = vmatprep.subr.bf16.mxu0 0
        %1123 = vmatpush1.bf16.xpose.msra.mxu0 0
        %1124 = vmatprep.subr.bf16.mxu0 0
        %1125 = vmatpush1.bf16.xpose.msra.mxu0 0
        %1126 = vmatprep.subr.bf16.mxu0 0
        %1127 = vmatpush1.bf16.xpose.msra.mxu0 0
        %1128 = vmatprep.subr.bf16.mxu0 0
        %1129 = vmatpush1.bf16.xpose.msra.mxu0 0
        %1130 = vmatprep.subr.bf16.mxu0 0
        %1131 = vmatpush1.bf16.xpose.msra.mxu0 0
        %1132 = vmatprep.subr.bf16.mxu0 0
        %1133 = vmatpush1.bf16.xpose.msra.mxu0 0
        %1134 = vmatprep.subr.bf16.mxu0 0
        %1135 = vmatpush1.bf16.xpose.msra.mxu0 0
        %1136 = vmatprep.subr.bf16.mxu0 0
        %1137 = vmatpush1.bf16.xpose.msra.mxu0 0
        %1138 = vmatprep.subr.bf16.mxu0 0
        %1139 = vmatpush1.bf16.xpose.msra.mxu0 0
        %1140 = vmatprep.subr.bf16.mxu0 0
        %1141 = vmatpush1.bf16.xpose.msra.mxu0 0
        %1142 = vmatprep.subr.bf16.mxu0 0
        %1143 = vmatpush1.bf16.xpose.msra.mxu0 0
        %1144 = vmatprep.subr.bf16.mxu0 0
        %1145 = vmatpush1.bf16.xpose.msra.mxu0 0
        %1146 = vmatprep.subr.bf16.mxu0 0
        %1147 = vmatpush1.bf16.xpose.msra.mxu0 0
        %1148 = vmatprep.subr.bf16.mxu0 0
        %1149 = vmatpush1.bf16.xpose.msra.mxu0 0
        %1150 = vmatprep.subr.bf16.mxu0 0
        %1151 = vmatpush1.bf16.xpose.msra.mxu0 0
        %1152 = vmatprep.mubr.bf16.mxu0 0
        %1153 = vmatmul.mubr.bf16.gmra.mrb[0].mxu0 %v1115
        %v1154 = vpop.f32.mrb[0].mxu0
        %v1155 = vadd.f32 0.0, %v1154
        %v1156 = vpop.f32.mrb[0].mxu0
        %v1157 = vpop.f32.mrb[0].mxu0
        %v1158 = vpop.f32.mrb[0].mxu0
        %1159 = vdwg.mxu0
        %v1160 = vsel %vm975, %v1017, -inf
        %1161 = vmax.xlane.f32.xlu0 %v1160
        %v1162 = vpop.xlane.xlu0 %1161
        %v1163 = vsel %vm975, %v1063, -inf
        %1164 = vmax.xlane.f32.xlu0 %v1163
        %v1165 = vpop.xlane.xlu0 %1164
        %v1166 = vsel %vm975, %v1109, -inf
        %1167 = vmax.xlane.f32.xlu0 %v1166
        %v1168 = vpop.xlane.xlu0 %1167
        %v1169 = vsel %vm975, %v1155, -inf
        %1170 = vmax.xlane.f32.xlu0 %v1169
        %v1171 = vpop.xlane.xlu0 %1170
        %v1172 = vsub.f32 %v1017, %v1162
        %v1173 = vsub.f32 %v1063, %v1165
        %v1174 = vsub.f32 %v1109, %v1168
        %v1175 = vsub.f32 %v1155, %v1171
        %v1176 = vmul.f32 %v1172, 1.442695
        %v1177 = vpow.pop %v1176
        %v1178 = vmul.f32 %v1173, 1.442695
        %v1179 = vpow.pop %v1178
        %v1180 = vmul.f32 %v1174, 1.442695
        %v1181 = vpow.pop %v1180
        %v1182 = vmul.f32 %v1175, 1.442695
        %v1183 = vpow.pop %v1182
        %v1184 = vsel %vm975, %v1177, 0.0
        %1185 = vadd.xlane.f32.xlu0 %v1184
        %v1186 = vpop.xlane.xlu0 %1185
        %v1187 = vsel %vm975, %v1179, 0.0
        %1188 = vadd.xlane.f32.xlu0 %v1187
        %v1189 = vpop.xlane.xlu0 %1188
        %v1190 = vsel %vm975, %v1181, 0.0
        %1191 = vadd.xlane.f32.xlu0 %v1190
        %v1192 = vpop.xlane.xlu0 %1191
        %v1193 = vsel %vm975, %v1183, 0.0
        %1194 = vadd.xlane.f32.xlu0 %v1193
        %v1195 = vpop.xlane.xlu0 %1194
        %v1196 = vpack.c.bf16 %v1177, %v1177
        %v1197 = vpack.c.bf16 %v1179, %v1179
        %v1198 = vpack.c.bf16 %v1181, %v1181
        %v1199 = vpack.c.bf16 %v1183, %v1183
        %v1201 = vsel %vm975, %v1196, 0
        %vm1203 = vcmask 1043456
        %v1205 = vsel %vm1203, %v971, 0
        %1207 = vmatprep.subr.bf16.mxu0 0
        %1208 = vmatpush1.bf16.msra.mxu0 %v1205
        %1209 = vmatprep.subr.bf16.mxu0 0
        %1210 = vmatpush1.bf16.msra.mxu0 0
        %1211 = vmatprep.subr.bf16.mxu0 0
        %1212 = vmatpush1.bf16.msra.mxu0 0
        %1213 = vmatprep.subr.bf16.mxu0 0
        %1214 = vmatpush1.bf16.msra.mxu0 0
        %1215 = vmatprep.subr.bf16.mxu0 0
        %1216 = vmatpush1.bf16.msra.mxu0 0
        %1217 = vmatprep.subr.bf16.mxu0 0
        %1218 = vmatpush1.bf16.msra.mxu0 0
        %1219 = vmatprep.subr.bf16.mxu0 0
        %1220 = vmatpush1.bf16.msra.mxu0 0
        %1221 = vmatprep.subr.bf16.mxu0 0
        %1222 = vmatpush1.bf16.msra.mxu0 0
        %1223 = vmatprep.subr.bf16.mxu0 0
        %1224 = vmatpush1.bf16.msra.mxu0 0
        %1225 = vmatprep.subr.bf16.mxu0 0
        %1226 = vmatpush1.bf16.msra.mxu0 0
        %1227 = vmatprep.subr.bf16.mxu0 0
        %1228 = vmatpush1.bf16.msra.mxu0 0
        %1229 = vmatprep.subr.bf16.mxu0 0
        %1230 = vmatpush1.bf16.msra.mxu0 0
        %1231 = vmatprep.subr.bf16.mxu0 0
        %1232 = vmatpush1.bf16.msra.mxu0 0
        %1233 = vmatprep.subr.bf16.mxu0 0
        %1234 = vmatpush1.bf16.msra.mxu0 0
        %1235 = vmatprep.subr.bf16.mxu0 0
        %1236 = vmatpush1.bf16.msra.mxu0 0
        %1237 = vmatprep.subr.bf16.mxu0 0
        %1238 = vmatpush1.bf16.msra.mxu0 0
        %1239 = vmatprep.mubr.bf16.mxu0 0
        %1240 = vmatmul.mubr.bf16.gmra.mrb[0].mxu0 %v1201
        %v1241 = vpop.f32.mrb[0].mxu0
        %v1242 = vadd.f32 0.0, %v1241
        %v1243 = vpop.f32.mrb[0].mxu0
        %v1244 = vpop.f32.mrb[0].mxu0
        %v1245 = vpop.f32.mrb[0].mxu0
        %1246 = vdwg.mxu0
        %v1248 = vsel %vm975, %v1197, 0
        %v1251 = vsel %vm1203, %v972, 0
        %1253 = vmatprep.subr.bf16.mxu0 0
        %1254 = vmatpush1.bf16.msra.mxu0 %v1251
        %1255 = vmatprep.subr.bf16.mxu0 0
        %1256 = vmatpush1.bf16.msra.mxu0 0
        %1257 = vmatprep.subr.bf16.mxu0 0
        %1258 = vmatpush1.bf16.msra.mxu0 0
        %1259 = vmatprep.subr.bf16.mxu0 0
        %1260 = vmatpush1.bf16.msra.mxu0 0
        %1261 = vmatprep.subr.bf16.mxu0 0
        %1262 = vmatpush1.bf16.msra.mxu0 0
        %1263 = vmatprep.subr.bf16.mxu0 0
        %1264 = vmatpush1.bf16.msra.mxu0 0
        %1265 = vmatprep.subr.bf16.mxu0 0
        %1266 = vmatpush1.bf16.msra.mxu0 0
        %1267 = vmatprep.subr.bf16.mxu0 0
        %1268 = vmatpush1.bf16.msra.mxu0 0
        %1269 = vmatprep.subr.bf16.mxu0 0
        %1270 = vmatpush1.bf16.msra.mxu0 0
        %1271 = vmatprep.subr.bf16.mxu0 0
        %1272 = vmatpush1.bf16.msra.mxu0 0
        %1273 = vmatprep.subr.bf16.mxu0 0
        %1274 = vmatpush1.bf16.msra.mxu0 0
        %1275 = vmatprep.subr.bf16.mxu0 0
        %1276 = vmatpush1.bf16.msra.mxu0 0
        %1277 = vmatprep.subr.bf16.mxu0 0
        %1278 = vmatpush1.bf16.msra.mxu0 0
        %1279 = vmatprep.subr.bf16.mxu0 0
        %1280 = vmatpush1.bf16.msra.mxu0 0
        %1281 = vmatprep.subr.bf16.mxu0 0
        %1282 = vmatpush1.bf16.msra.mxu0 0
        %1283 = vmatprep.subr.bf16.mxu0 0
        %1284 = vmatpush1.bf16.msra.mxu0 0
        %1285 = vmatprep.mubr.bf16.mxu0 0
        %1286 = vmatmul.mubr.bf16.gmra.mrb[0].mxu0 %v1248
        %v1287 = vpop.f32.mrb[0].mxu0
        %v1288 = vadd.f32 0.0, %v1287
        %v1289 = vpop.f32.mrb[0].mxu0
        %v1290 = vpop.f32.mrb[0].mxu0
        %v1291 = vpop.f32.mrb[0].mxu0
        %1292 = vdwg.mxu0
        %v1294 = vsel %vm975, %v1198, 0
        %v1297 = vsel %vm1203, %v973, 0
        %1299 = vmatprep.subr.bf16.mxu0 0
        %1300 = vmatpush1.bf16.msra.mxu0 %v1297
        %1301 = vmatprep.subr.bf16.mxu0 0
        %1302 = vmatpush1.bf16.msra.mxu0 0
        %1303 = vmatprep.subr.bf16.mxu0 0
        %1304 = vmatpush1.bf16.msra.mxu0 0
        %1305 = vmatprep.subr.bf16.mxu0 0
        %1306 = vmatpush1.bf16.msra.mxu0 0
        %1307 = vmatprep.subr.bf16.mxu0 0
        %1308 = vmatpush1.bf16.msra.mxu0 0
        %1309 = vmatprep.subr.bf16.mxu0 0
        %1310 = vmatpush1.bf16.msra.mxu0 0
        %1311 = vmatprep.subr.bf16.mxu0 0
        %1312 = vmatpush1.bf16.msra.mxu0 0
        %1313 = vmatprep.subr.bf16.mxu0 0
        %1314 = vmatpush1.bf16.msra.mxu0 0
        %1315 = vmatprep.subr.bf16.mxu0 0
        %1316 = vmatpush1.bf16.msra.mxu0 0
        %1317 = vmatprep.subr.bf16.mxu0 0
        %1318 = vmatpush1.bf16.msra.mxu0 0
        %1319 = vmatprep.subr.bf16.mxu0 0
        %1320 = vmatpush1.bf16.msra.mxu0 0
        %1321 = vmatprep.subr.bf16.mxu0 0
        %1322 = vmatpush1.bf16.msra.mxu0 0
        %1323 = vmatprep.subr.bf16.mxu0 0
        %1324 = vmatpush1.bf16.msra.mxu0 0
        %1325 = vmatprep.subr.bf16.mxu0 0
        %1326 = vmatpush1.bf16.msra.mxu0 0
        %1327 = vmatprep.subr.bf16.mxu0 0
        %1328 = vmatpush1.bf16.msra.mxu0 0
        %1329 = vmatprep.subr.bf16.mxu0 0
        %1330 = vmatpush1.bf16.msra.mxu0 0
        %1331 = vmatprep.mubr.bf16.mxu0 0
        %1332 = vmatmul.mubr.bf16.gmra.mrb[0].mxu0 %v1294
        %v1333 = vpop.f32.mrb[0].mxu0
        %v1334 = vadd.f32 0.0, %v1333
        %v1335 = vpop.f32.mrb[0].mxu0
        %v1336 = vpop.f32.mrb[0].mxu0
        %v1337 = vpop.f32.mrb[0].mxu0
        %1338 = vdwg.mxu0
        %v1340 = vsel %vm975, %v1199, 0
        %v1343 = vsel %vm1203, %v974, 0
        %1345 = vmatprep.subr.bf16.mxu0 0
        %1346 = vmatpush1.bf16.msra.mxu0 %v1343
        %1347 = vmatprep.subr.bf16.mxu0 0
        %1348 = vmatpush1.bf16.msra.mxu0 0
        %1349 = vmatprep.subr.bf16.mxu0 0
        %1350 = vmatpush1.bf16.msra.mxu0 0
        %1351 = vmatprep.subr.bf16.mxu0 0
        %1352 = vmatpush1.bf16.msra.mxu0 0
        %1353 = vmatprep.subr.bf16.mxu0 0
        %1354 = vmatpush1.bf16.msra.mxu0 0
        %1355 = vmatprep.subr.bf16.mxu0 0
        %1356 = vmatpush1.bf16.msra.mxu0 0
        %1357 = vmatprep.subr.bf16.mxu0 0
        %1358 = vmatpush1.bf16.msra.mxu0 0
        %1359 = vmatprep.subr.bf16.mxu0 0
        %1360 = vmatpush1.bf16.msra.mxu0 0
        %1361 = vmatprep.subr.bf16.mxu0 0
        %1362 = vmatpush1.bf16.msra.mxu0 0
        %1363 = vmatprep.subr.bf16.mxu0 0
        %1364 = vmatpush1.bf16.msra.mxu0 0
        %1365 = vmatprep.subr.bf16.mxu0 0
        %1366 = vmatpush1.bf16.msra.mxu0 0
        %1367 = vmatprep.subr.bf16.mxu0 0
        %1368 = vmatpush1.bf16.msra.mxu0 0
        %1369 = vmatprep.subr.bf16.mxu0 0
        %1370 = vmatpush1.bf16.msra.mxu0 0
        %1371 = vmatprep.subr.bf16.mxu0 0
        %1372 = vmatpush1.bf16.msra.mxu0 0
        %1373 = vmatprep.subr.bf16.mxu0 0
        %1374 = vmatpush1.bf16.msra.mxu0 0
        %1375 = vmatprep.subr.bf16.mxu0 0
        %1376 = vmatpush1.bf16.msra.mxu0 0
        %1377 = vmatprep.mubr.bf16.mxu0 0
        %1378 = vmatmul.mubr.bf16.gmra.mrb[0].mxu0 %v1340
        %v1379 = vpop.f32.mrb[0].mxu0
        %v1380 = vadd.f32 0.0, %v1379
        %v1381 = vpop.f32.mrb[0].mxu0
        %v1382 = vpop.f32.mrb[0].mxu0
        %v1383 = vpop.f32.mrb[0].mxu0
        %1384 = vdwg.mxu0
        %v1385 = vrcp.pop %v1186
        %v1386 = vrcp.pop %v1189
        %v1387 = vrcp.pop %v1192
        %v1388 = vrcp.pop %v1195
        %v1389 = vmul.f32 %v1242, %v1385
        %v1390 = vmul.f32 %v1288, %v1386
        %v1391 = vmul.f32 %v1334, %v1387
        %v1392 = vmul.f32 %v1380, %v1388
        %v1393 = vcombine.low %v1389, %v1391
        %v1394 = vcombine.high %v1389, %v1391
        %v1396 = vunpack.c.l.s4 1983009808
        %v1397 = vunpack.c.0.s8 %v1396
        %v1398 = vlaneseq
        %v1399 = vshrl.u32 %v1398, 7
        %v1400 = vsub.s32 %v1397, %v1399
        %v1401 = vrot.slane %v1393, %v1400
        %v1403 = vunpack.c.l.s4 1983009808
        %v1404 = vunpack.c.0.s8 %v1403
        %v1405 = vlaneseq
        %v1406 = vshrl.u32 %v1405, 7
        %v1407 = vsub.s32 %v1404, %v1406
        %v1408 = vrot.slane %v1394, %v1407
        %v1409 = vcombine.low %v1390, %v1392
        %v1410 = vcombine.high %v1390, %v1392
        %v1412 = vunpack.c.l.s4 1983009808
        %v1413 = vunpack.c.0.s8 %v1412
        %v1414 = vlaneseq
        %v1415 = vshrl.u32 %v1414, 7
        %v1416 = vsub.s32 %v1413, %v1415
        %v1417 = vrot.slane %v1409, %v1416
        %v1419 = vunpack.c.l.s4 1983009808
        %v1420 = vunpack.c.0.s8 %v1419
        %v1421 = vlaneseq
        %v1422 = vshrl.u32 %v1421, 7
        %v1423 = vsub.s32 %v1420, %v1422
        %v1424 = vrot.slane %v1410, %v1423
        %v1425 = vcombine.low %v1401, %v1417
        %v1426 = vcombine.high %v1401, %v1417
        %v1428 = vunpack.c.l.s4 1934713408
        %v1429 = vunpack.c.0.s8 %v1428
        %v1430 = vlaneseq
        %v1431 = vshrl.u32 %v1430, 7
        %v1432 = vsub.s32 %v1429, %v1431
        %v1433 = vrot.slane %v1425, %v1432
        %v1435 = vunpack.c.l.s4 1934713408
        %v1436 = vunpack.c.0.s8 %v1435
        %v1437 = vlaneseq
        %v1438 = vshrl.u32 %v1437, 7
        %v1439 = vsub.s32 %v1436, %v1438
        %v1440 = vrot.slane %v1426, %v1439
        %v1441 = vcombine.low %v1408, %v1424
        %v1442 = vcombine.high %v1408, %v1424
        %v1444 = vunpack.c.l.s4 1934713408
        %v1445 = vunpack.c.0.s8 %v1444
        %v1446 = vlaneseq
        %v1447 = vshrl.u32 %v1446, 7
        %v1448 = vsub.s32 %v1445, %v1447
        %v1449 = vrot.slane %v1441, %v1448
        %v1451 = vunpack.c.l.s4 1934713408
        %v1452 = vunpack.c.0.s8 %v1451
        %v1453 = vlaneseq
        %v1454 = vshrl.u32 %v1453, 7
        %v1455 = vsub.s32 %v1452, %v1454
        %v1456 = vrot.slane %v1442, %v1455
        %v1457 = vcombine.high %v1433, 0.0
        %v1458 = vcombine.high %v1440, 0.0
        %v1459 = vcombine.high %v1449, 0.0
        %v1460 = vcombine.high %v1456, 0.0
        %v1461 = vcombine.low %v1433, %v1440
        %v1463 = vunpack.c.l.s4 1983009808
        %v1464 = vunpack.c.0.s8 %v1463
        %v1465 = vlaneseq
        %v1466 = vshrl.u32 %v1465, 7
        %v1467 = vsub.s32 %v1464, %v1466
        %v1468 = vrot.slane %v1461, %v1467
        %v1469 = vcombine.low %v1457, %v1458
        %v1471 = vunpack.c.l.s4 1983009808
        %v1472 = vunpack.c.0.s8 %v1471
        %v1473 = vlaneseq
        %v1474 = vshrl.u32 %v1473, 7
        %v1475 = vsub.s32 %v1472, %v1474
        %v1476 = vrot.slane %v1469, %v1475
        %v1477 = vcombine.low %v1449, %v1456
        %v1479 = vunpack.c.l.s4 1983009808
        %v1480 = vunpack.c.0.s8 %v1479
        %v1481 = vlaneseq
        %v1482 = vshrl.u32 %v1481, 7
        %v1483 = vsub.s32 %v1480, %v1482
        %v1484 = vrot.slane %v1477, %v1483
        %v1485 = vcombine.low %v1459, %v1460
        %v1487 = vunpack.c.l.s4 1983009808
        %v1488 = vunpack.c.0.s8 %v1487
        %v1489 = vlaneseq
        %v1490 = vshrl.u32 %v1489, 7
        %v1491 = vsub.s32 %v1488, %v1490
        %v1492 = vrot.slane %v1485, %v1491
        %v1493 = vcombine.low %v1468, %v1476
        %v1494 = vcombine.high %v1468, %v1476
        %v1496 = vunpack.c.l.s4 1934713408
        %v1497 = vunpack.c.0.s8 %v1496
        %v1498 = vlaneseq
        %v1499 = vshrl.u32 %v1498, 7
        %v1500 = vsub.s32 %v1497, %v1499
        %v1501 = vrot.slane %v1493, %v1500
        %v1503 = vunpack.c.l.s4 1934713408
        %v1504 = vunpack.c.0.s8 %v1503
        %v1505 = vlaneseq
        %v1506 = vshrl.u32 %v1505, 7
        %v1507 = vsub.s32 %v1504, %v1506
        %v1508 = vrot.slane %v1494, %v1507
        %v1509 = vcombine.low %v1484, %v1492
        %v1510 = vcombine.high %v1484, %v1492
        %v1512 = vunpack.c.l.s4 1934713408
        %v1513 = vunpack.c.0.s8 %v1512
        %v1514 = vlaneseq
        %v1515 = vshrl.u32 %v1514, 7
        %v1516 = vsub.s32 %v1513, %v1515
        %v1517 = vrot.slane %v1509, %v1516
        %v1519 = vunpack.c.l.s4 1934713408
        %v1520 = vunpack.c.0.s8 %v1519
        %v1521 = vlaneseq
        %v1522 = vshrl.u32 %v1521, 7
        %v1523 = vsub.s32 %v1520, %v1522
        %v1524 = vrot.slane %v1510, %v1523
        %v1525 = vcombine.low %v1501, %v1517
        %v1526 = vcombine.high %v1501, %v1517
        %v1527 = vcombine.low %v1508, %v1524
        %v1528 = vcombine.high %v1508, %v1524
        %1530 = vrot.lane.b32.xlu0 %v1526, 8
        %v1531 = vpop.permute.xlu0 %1530
        %1534 = vrot.lane.b32.xlu0 %v1527, 16
        %v1535 = vpop.permute.xlu0 %1534
        %1538 = vrot.lane.b32.xlu0 %v1528, 24
        %v1539 = vpop.permute.xlu0 %1538
        %v1541 = vsel %vm975, %v1525, %v1531
        %vm1542 = vcmask 130048
        %v1543 = vsel %vm1542, %v1541, %v1535
        %vm1544 = vcmask 195584
        %v1545 = vsel %vm1544, %v1543, %v1539
        %v1546 = vpack.c.bf16 %v1545, %v1545
        %v1547 = vld [vmem:[%s3] sm:$0xf]
        %v1548 = vld [vmem:[%s3 + $0x4] sm:$0xf]
        %v1549 = vld [vmem:[%s3 + $0x8] sm:$0xf]
        %v1550 = vld [vmem:[%s3 + $0xc] sm:$0xf]
        %v1551 = vld [vmem:[%s4] sm:$0x1]
        %v1553 = vlaneseq
        %v1554 = vshrl.u32 %v1553, 7
        %v1555 = vsub.s32 0, %v1554
        %v1556 = vrot.slane %v1551, %v1555
        %v1562 = vunpack.c.l.b16 %v1547
        %v1563 = vunpack.c.l.b16 %v1548
        %v1564 = vunpack.c.l.b16 %v1549
        %v1565 = vunpack.c.l.b16 %v1550
        %v1566 = vpack.c.b16 %v1563, %v1562
        %v1567 = vpack.c.b16 %v1565, %v1564
        %v1571 = vsel %vm477, %v1546, 0
        %1573 = vmatprep.subr.bf16.mxu0 0
        %1574 = vmatpush1.bf16.msra.mxu0 %v1566
        %1575 = vmatprep.subr.bf16.mxu0 0
        %1576 = vmatpush1.bf16.msra.mxu0 %v1567
        %1577 = vmatprep.subr.bf16.mxu0 0
        %1578 = vmatpush1.bf16.msra.mxu0 0
        %1579 = vmatprep.subr.bf16.mxu0 0
        %1580 = vmatpush1.bf16.msra.mxu0 0
        %1581 = vmatprep.subr.bf16.mxu0 0
        %1582 = vmatpush1.bf16.msra.mxu0 0
        %1583 = vmatprep.subr.bf16.mxu0 0
        %1584 = vmatpush1.bf16.msra.mxu0 0
        %1585 = vmatprep.subr.bf16.mxu0 0
        %1586 = vmatpush1.bf16.msra.mxu0 0
        %1587 = vmatprep.subr.bf16.mxu0 0
        %1588 = vmatpush1.bf16.msra.mxu0 0
        %1589 = vmatprep.subr.bf16.mxu0 0
        %1590 = vmatpush1.bf16.msra.mxu0 0
        %1591 = vmatprep.subr.bf16.mxu0 0
        %1592 = vmatpush1.bf16.msra.mxu0 0
        %1593 = vmatprep.subr.bf16.mxu0 0
        %1594 = vmatpush1.bf16.msra.mxu0 0
        %1595 = vmatprep.subr.bf16.mxu0 0
        %1596 = vmatpush1.bf16.msra.mxu0 0
        %1597 = vmatprep.subr.bf16.mxu0 0
        %1598 = vmatpush1.bf16.msra.mxu0 0
        %1599 = vmatprep.subr.bf16.mxu0 0
        %1600 = vmatpush1.bf16.msra.mxu0 0
        %1601 = vmatprep.subr.bf16.mxu0 0
        %1602 = vmatpush1.bf16.msra.mxu0 0
        %1603 = vmatprep.subr.bf16.mxu0 0
        %1604 = vmatpush1.bf16.msra.mxu0 0
        %1605 = vmatprep.mubr.bf16.mxu0 0
        %1606 = vmatmul.mubr.bf16.gmra.mrb[0].mxu0 %v1571
        %v1607 = vpop.f32.mrb[0].mxu0
        %v1608 = vadd.f32 %v1556, %v1607
        %v1609 = vpop.f32.mrb[0].mxu0
        %v1610 = vpop.f32.mrb[0].mxu0
        %v1611 = vpop.f32.mrb[0].mxu0
        %1612 = vdwg.mxu0
        %v1613 = vadd.f32 %v452, %v1608
        %v1614 = vld [vmem:[%s5] sm:$0x1]
        %v1615 = vld [vmem:[%s6] sm:$0x1]
        %v1616 = vsel %vm477, %v1613, 0.0
        %1617 = vadd.xlane.f32.xlu0 %v1616
        %v1618 = vpop.xlane.xlu0 %1617
        %v1619 = vrcp.pop 32.0
        %v1620 = vmul.f32 %v1618, %v1619
        %v1621 = vsub.f32 %v1613, %v1620
        %v1622 = vmul.f32 %v1621, %v1621
        %v1623 = vsel %vm477, %v1622, 0.0
        %1624 = vadd.xlane.f32.xlu0 %v1623
        %v1625 = vpop.xlane.xlu0 %1624
        %v1626 = vmul.f32 %v1625, %v1619
        %v1627 = vadd.f32 %v1626, 1e-05
        %v1628 = vrsqrt.pop %v1627
        %v1629 = vmul.f32 %v1621, %v1628
        %v1631 = vlaneseq
        %v1632 = vshrl.u32 %v1631, 7
        %v1633 = vsub.s32 0, %v1632
        %v1634 = vrot.slane %v1614, %v1633
        %v1636 = vmul.f32 %v1629, %v1634
        %v1638 = vlaneseq
        %v1639 = vshrl.u32 %v1638, 7
        %v1640 = vsub.s32 0, %v1639
        %v1641 = vrot.slane %v1615, %v1640
        %v1643 = vadd.f32 %v1636, %v1641
        %v1644 = vpack.c.bf16 %v1643, %v1643
        %v1645 = vld [vmem:[#allocation2] sm:$0xf]
        %v1646 = vld [vmem:[#allocation2 + $0x4] sm:$0xf]
        %v1647 = vld [vmem:[#allocation2 + $0x8] sm:$0xf]
        %v1648 = vld [vmem:[#allocation2 + $0xc] sm:$0xf]
        %v1649 = vld [vmem:[%s8] sm:$0x1]
        %v1651 = vlaneseq
        %v1652 = vshrl.u32 %v1651, 7
        %v1653 = vsub.s32 0, %v1652
        %v1654 = vrot.slane %v1649, %v1653
        %v1660 = vunpack.c.l.b16 %v1645
        %v1661 = vunpack.c.l.b16 %v1646
        %v1662 = vunpack.c.l.b16 %v1647
        %v1663 = vunpack.c.l.b16 %v1648
        %v1664 = vpack.c.b16 %v1661, %v1660
        %v1665 = vpack.c.b16 %v1663, %v1662
        %v1669 = vsel %vm477, %v1644, 0
        %1671 = vmatprep.subr.bf16.mxu0 0
        %1672 = vmatpush1.bf16.msra.mxu0 %v1664
        %1673 = vmatprep.subr.bf16.mxu0 0
        %1674 = vmatpush1.bf16.msra.mxu0 %v1665
        %1675 = vmatprep.subr.bf16.mxu0 0
        %1676 = vmatpush1.bf16.msra.mxu0 0
        %1677 = vmatprep.subr.bf16.mxu0 0
        %1678 = vmatpush1.bf16.msra.mxu0 0
        %1679 = vmatprep.subr.bf16.mxu0 0
        %1680 = vmatpush1.bf16.msra.mxu0 0
        %1681 = vmatprep.subr.bf16.mxu0 0
        %1682 = vmatpush1.bf16.msra.mxu0 0
        %1683 = vmatprep.subr.bf16.mxu0 0
        %1684 = vmatpush1.bf16.msra.mxu0 0
        %1685 = vmatprep.subr.bf16.mxu0 0
        %1686 = vmatpush1.bf16.msra.mxu0 0
        %1687 = vmatprep.subr.bf16.mxu0 0
        %1688 = vmatpush1.bf16.msra.mxu0 0
        %1689 = vmatprep.subr.bf16.mxu0 0
        %1690 = vmatpush1.bf16.msra.mxu0 0
        %1691 = vmatprep.subr.bf16.mxu0 0
        %1692 = vmatpush1.bf16.msra.mxu0 0
        %1693 = vmatprep.subr.bf16.mxu0 0
        %1694 = vmatpush1.bf16.msra.mxu0 0
        %1695 = vmatprep.subr.bf16.mxu0 0
        %1696 = vmatpush1.bf16.msra.mxu0 0
        %1697 = vmatprep.subr.bf16.mxu0 0
        %1698 = vmatpush1.bf16.msra.mxu0 0
        %1699 = vmatprep.subr.bf16.mxu0 0
        %1700 = vmatpush1.bf16.msra.mxu0 0
        %1701 = vmatprep.subr.bf16.mxu0 0
        %1702 = vmatpush1.bf16.msra.mxu0 0
        %1703 = vmatprep.mubr.bf16.mxu0 0
        %1704 = vmatmul.mubr.bf16.gmra.mrb[0].mxu0 %v1669
        %v1705 = vpop.f32.mrb[0].mxu0
        %v1706 = vadd.f32 %v1654, %v1705
        %v1707 = vpop.f32.mrb[0].mxu0
        %v1708 = vpop.f32.mrb[0].mxu0
        %v1709 = vpop.f32.mrb[0].mxu0
        %1710 = vdwg.mxu0
        %v1711 = vmul.f32 %v1706, 0.5
        %v1712 = vmul.f32 %v1706, 0.70710677
        %v1713 = verf.f32.pop %v1712
        %v1714 = vadd.f32 %v1713, 1.0
        %v1715 = vmul.f32 %v1711, %v1714
        %v1716 = vpack.c.bf16 %v1715, %v1715
        %v1717 = vld [vmem:[%s9] sm:$0xf]
        %v1718 = vld [vmem:[%s9 + $0x4] sm:$0xf]
        %v1719 = vld [vmem:[%s9 + $0x8] sm:$0xf]
        %v1720 = vld [vmem:[%s9 + $0xc] sm:$0xf]
        %v1721 = vld [vmem:[%s9 + $0x10] sm:$0xf]
        %v1722 = vld [vmem:[%s9 + $0x14] sm:$0xf]
        %v1723 = vld [vmem:[%s9 + $0x18] sm:$0xf]
        %v1724 = vld [vmem:[%s9 + $0x1c] sm:$0xf]
        %v1725 = vld [vmem:[%s10] sm:$0x1]
        %v1727 = vlaneseq
        %v1728 = vshrl.u32 %v1727, 7
        %v1729 = vsub.s32 0, %v1728
        %v1730 = vrot.slane %v1725, %v1729
        %v1740 = vunpack.c.l.b16 %v1717
        %v1741 = vunpack.c.l.b16 %v1718
        %v1742 = vunpack.c.l.b16 %v1719
        %v1743 = vunpack.c.l.b16 %v1720
        %v1744 = vunpack.c.l.b16 %v1721
        %v1745 = vunpack.c.l.b16 %v1722
        %v1746 = vunpack.c.l.b16 %v1723
        %v1747 = vunpack.c.l.b16 %v1724
        %v1748 = vpack.c.b16 %v1741, %v1740
        %v1749 = vpack.c.b16 %v1743, %v1742
        %v1750 = vpack.c.b16 %v1745, %v1744
        %v1751 = vpack.c.b16 %v1747, %v1746
        %vm1756 = vcmask 523264
        %v1758 = vsel %vm1756, %v1716, 0
        %1760 = vmatprep.subr.bf16.mxu0 0
        %1761 = vmatpush1.bf16.msra.mxu0 %v1748
        %1762 = vmatprep.subr.bf16.mxu0 0
        %1763 = vmatpush1.bf16.msra.mxu0 %v1749
        %1764 = vmatprep.subr.bf16.mxu0 0
        %1765 = vmatpush1.bf16.msra.mxu0 %v1750
        %1766 = vmatprep.subr.bf16.mxu0 0
        %1767 = vmatpush1.bf16.msra.mxu0 %v1751
        %1768 = vmatprep.subr.bf16.mxu0 0
        %1769 = vmatpush1.bf16.msra.mxu0 0
        %1770 = vmatprep.subr.bf16.mxu0 0
        %1771 = vmatpush1.bf16.msra.mxu0 0
        %1772 = vmatprep.subr.bf16.mxu0 0
        %1773 = vmatpush1.bf16.msra.mxu0 0
        %1774 = vmatprep.subr.bf16.mxu0 0
        %1775 = vmatpush1.bf16.msra.mxu0 0
        %1776 = vmatprep.subr.bf16.mxu0 0
        %1777 = vmatpush1.bf16.msra.mxu0 0
        %1778 = vmatprep.subr.bf16.mxu0 0
        %1779 = vmatpush1.bf16.msra.mxu0 0
        %1780 = vmatprep.subr.bf16.mxu0 0
        %1781 = vmatpush1.bf16.msra.mxu0 0
        %1782 = vmatprep.subr.bf16.mxu0 0
        %1783 = vmatpush1.bf16.msra.mxu0 0
        %1784 = vmatprep.subr.bf16.mxu0 0
        %1785 = vmatpush1.bf16.msra.mxu0 0
        %1786 = vmatprep.subr.bf16.mxu0 0
        %1787 = vmatpush1.bf16.msra.mxu0 0
        %1788 = vmatprep.subr.bf16.mxu0 0
        %1789 = vmatpush1.bf16.msra.mxu0 0
        %1790 = vmatprep.subr.bf16.mxu0 0
        %1791 = vmatpush1.bf16.msra.mxu0 0
        %1792 = vmatprep.mubr.bf16.mxu0 0
        %1793 = vmatmul.mubr.bf16.gmra.mrb[0].mxu0 %v1758
        %v1794 = vpop.f32.mrb[0].mxu0
        %v1795 = vadd.f32 %v1730, %v1794
        %v1796 = vpop.f32.mrb[0].mxu0
        %v1797 = vpop.f32.mrb[0].mxu0
        %v1798 = vpop.f32.mrb[0].mxu0
        %1799 = vdwg.mxu0
        %v1800 = vadd.f32 %v1643, %v1795
        %v1801 = vld [vmem:[%s11] sm:$0x1]
        %v1802 = vld [vmem:[%s12] sm:$0x1]
        %v1803 = vsel %vm477, %v1800, 0.0
        %1804 = vadd.xlane.f32.xlu0 %v1803
        %v1805 = vpop.xlane.xlu0 %1804
        %v1806 = vmul.f32 %v1805, %v1619
        %v1807 = vsub.f32 %v1800, %v1806
        %v1808 = vmul.f32 %v1807, %v1807
        %v1809 = vsel %vm477, %v1808, 0.0
        %1810 = vadd.xlane.f32.xlu0 %v1809
        %v1811 = vpop.xlane.xlu0 %1810
        %v1812 = vmul.f32 %v1811, %v1619
        %v1813 = vadd.f32 %v1812, 1e-05
        %v1814 = vrsqrt.pop %v1813
        %v1815 = vmul.f32 %v1807, %v1814
        %v1817 = vlaneseq
        %v1818 = vshrl.u32 %v1817, 7
        %v1819 = vsub.s32 0, %v1818
        %v1820 = vrot.slane %v1801, %v1819
        %v1822 = vmul.f32 %v1815, %v1820
        %v1824 = vlaneseq
        %v1825 = vshrl.u32 %v1824, 7
        %v1826 = vsub.s32 0, %v1825
        %v1827 = vrot.slane %v1802, %v1826
        %v1829 = vadd.f32 %v1822, %v1827
        %1830 = vst.msk [vmem:[%s446] sm:$0xff] %vm477, %v1829
        %s1831 = sand.u32 %s314, 1
        %s1832 = scalar_lea.sflag [#allocation4], %s1831
        %s1833 = sand.u32 %s314, 1
        %s1834 = smul.addr %s1833, 8
        %s1835 = scalar_lea.vmem [#allocation5], %s1834
        // Predicated region
        $region77: #{tpu_custom_call.1} parent=71 // pred_check
          %p1836 = pneg %p324
        $region78: #{tpu_custom_call.1} parent=71 // pred_check_branch
          %1838 = sbr.rel (%p1836) target = $region80
        $region79: #{tpu_custom_call.1} parent=71 // pred_region
          %s1840 = ssub.s32 128, 128
          %1841 = vsyncadd %s1832, %s1840
          %s1842 = smul.addr %s28, 128
          %s1843 = scalar_lea.hbm %s13, %s1842
          %s1845 = sshll.u32 %s1835, 4
          %s1846 = int_to_ptr.vmem [resolvable:$true] %s1845
          %1848 = dma.vmem_to_hbm [thread:$0]  %s1846, 128, %s1843, %s1832
        $region80: #{tpu_custom_call.1} parent=71 // pred_fallthru
          _
      $region72: #{tpu_custom_call.1} parent=5 // pred_fallthru
        _
      %p1849 = scmp.le.s32.totalorder 2, %s23
      // Predicated region
      $region81: #{tpu_custom_call.1} parent=5 // pred_check
        %p1850 = pneg %p1849
      $region82: #{tpu_custom_call.1} parent=5 // pred_check_branch
        %1852 = sbr.rel (%p1850) target = $region84
      $region83: #{tpu_custom_call.1} parent=5 // pred_region
        %s1853 = ssub.s32 %s23, 2
        // Predicated region
        $region85: #{tpu_custom_call.1} parent=83 // pred_check
          %p1854 = pneg %p330
        $region86: #{tpu_custom_call.1} parent=83 // pred_check_branch
          %1856 = sbr.rel (%p1854) target = $region88
        $region87: #{tpu_custom_call.1} parent=83 // pred_region
          %s1857 = sand.u32 %s315, 1
          %s1858 = scalar_lea.sflag [#allocation4], %s1857
          %s1859 = sand.u32 %s315, 1
          %s1860 = smul.addr %s1859, 8
          %s1861 = scalar_lea.vmem [#allocation5], %s1860
          %1862 = dma.done %s1858, 128
        $region88: #{tpu_custom_call.1} parent=83 // pred_fallthru
          _
      $region84: #{tpu_custom_call.1} parent=5 // pred_fallthru
        _
    $region6: #{tpu_custom_call.1} parent=1 // loop_footer
      %s27 = sadd.s32 1, %s23
    $region7: #{tpu_custom_call.1} parent=1 // loop_footer_branch
      %22 = sbr.rel target = $region3
    $region8: #{tpu_custom_call.1} parent=1 // loop_exit
      _
    %1863 = vsyncpa [#allocation3], 1
    %s1864 = scalar_lea.sflag [#allocation3], 1
    %1865 = vsyncpa %s1864, 1
    %1866 = vsyncpa [#allocation4], 1
    %s1867 = scalar_lea.sflag [#allocation4], 1
    %1868 = vsyncpa %s1867, 1

// kernel: tpu_custom_call.1
$region0: #{tpu_custom_call.1}
  #allocation0 [shape = 'u32[]', space=smem, size = 0x4, offset = 0x4, fixed_abs, tag = 'smem constant byte address 0x4 - core index']
  #allocation1 [shape = 'u32[144,128]{1,0:T(1,128)}', space=vmem, size = 0x12000, scoped, tag = 'internal scratch']
  %s0 = inlined_call_operand.vmem [shape: f32[2,8,32], index: 0, kind: input, shape index: {}]
  %s1 = inlined_call_operand.vmem [shape: bf16[32,96], index: 1, kind: input, shape index: {}]
  %s2 = inlined_call_operand.vmem [shape: f32[1,96], index: 2, kind: input, shape index: {}]
  %s3 = inlined_call_operand.vmem [shape: bf16[32,32], index: 3, kind: input, shape index: {}]
  %s4 = inlined_call_operand.vmem [shape: f32[1,32], index: 4, kind: input, shape index: {}]
  %s5 = inlined_call_operand.vmem [shape: f32[1,32], index: 5, kind: input, shape index: {}]
  %s6 = inlined_call_operand.vmem [shape: f32[1,32], index: 6, kind: input, shape index: {}]
  %s7 = inlined_call_operand.hbm [shape: bf16[32,64], index: 7, kind: input, shape index: {}]
  %s8 = inlined_call_operand.vmem [shape: f32[1,64], index: 8, kind: input, shape index: {}]
  %s9 = inlined_call_operand.vmem [shape: bf16[64,32], index: 9, kind: input, shape index: {}]
  %s10 = inlined_call_operand.vmem [shape: f32[1,32], index: 10, kind: input, shape index: {}]
  %s11 = inlined_call_operand.vmem [shape: f32[1,32], index: 11, kind: input, shape index: {}]
  %s12 = inlined_call_operand.vmem [shape: f32[1,32], index: 12, kind: input, shape index: {}]
  %s13 = inlined_call_operand.hbm [shape: f32[2,8,32], index: 13, kind: output, shape index: {}]
  %s14 = sld [smem:[#allocation0]]
  $region89: #{tpu_custom_call.1} parent=0
    _
  %s16 = ssub.s32 1, %s14
  %s17 = scalar_select 0, %s16, %s14
  $region1: #{tpu_custom_call.1} parent=0
    #allocation2 [shape = 'u8[8192]{0}', space=vmem, size = 0x2000, scoped, tag = 'input window, operand 7, single buffered']
    #allocation3 [shape = 's32[2]{0}', space=sflag, size = 0x8, scoped, tag = 'scoped memory for tpu_custom_call.1']
    #allocation4 [shape = 's32[2]{0}', space=sflag, size = 0x8, scoped, tag = 'scoped memory for tpu_custom_call.1']
    #allocation5 [shape = 'u8[8192]{0}', space=vmem, size = 0x2000, scoped, tag = 'output window, operand 0']
    %18 = vsyncpa [#allocation3], 0
    %19 = vsyncpa [#allocation4], 0
    %s20 = scalar_lea.sflag [#allocation4], 1
    %21 = vsyncpa %s20, 0
    loop: start=0, step=1, limit=4
    $region2: #{tpu_custom_call.1} parent=1 // loop_pre_header
      _
    $region3: #{tpu_custom_call.1} parent=1 // loop_header
      %s23 = sphi 0, %s27
      %p24 = scmp.ge.s32.totalorder %s23, 4
      %s33 = sphi 0, %s35
      %s36 = sphi 0, %s33
      %s37 = sphi 0, %s36
      %s53 = sphi 0, %s37
      %s57 = sphi 0, %s57
      %s59 = sphi 0, %s57
      %s60 = sphi 0, %s59
      %s74 = sphi 0, %s60
      %s78 = sphi 0, %s78
      %s80 = sphi 0, %s78
      %s81 = sphi 0, %s80
      %s95 = sphi 0, %s81
      %s99 = sphi 0, %s99
      %s101 = sphi 0, %s99
      %s102 = sphi 0, %s101
      %s116 = sphi 0, %s102
      %s120 = sphi 0, %s120
      %s122 = sphi 0, %s120
      %s123 = sphi 0, %s122
      %s137 = sphi 0, %s123
      %s141 = sphi 0, %s141
      %s143 = sphi 0, %s141
      %s144 = sphi 0, %s143
      %s158 = sphi 0, %s144
      %s162 = sphi 0, %s162
      %s164 = sphi 0, %s162
      %s165 = sphi 0, %s164
      %s179 = sphi 0, %s165
      %s183 = sphi 0, %s183
      %s185 = sphi 0, %s183
      %s186 = sphi 0, %s185
      %s200 = sphi 0, %s186
      %s204 = sphi 0, %s204
      %s206 = sphi 0, %s204
      %s207 = sphi 0, %s206
      %s221 = sphi 0, %s207
      %s225 = sphi 0, %s225
      %s227 = sphi 0, %s225
      %s228 = sphi 0, %s227
      %s242 = sphi 0, %s228
      %s246 = sphi 0, %s246
      %s248 = sphi 0, %s246
      %s249 = sphi 0, %s248
      %s263 = sphi 0, %s249
      %s267 = sphi 0, %s267
      %s269 = sphi 0, %s267
      %s270 = sphi 0, %s269
      %s284 = sphi 0, %s270
      %s288 = sphi 0, %s288
      %s290 = sphi 0, %s288
      %s291 = sphi 0, %s290
      %s305 = sphi 0, %s291
      %s311 = sphi 0, %s313
      %s314 = sphi 0, %s311
      %s315 = sphi 0, %s314
      %s331 = sphi 0, %s315
    $region4: #{tpu_custom_call.1} parent=1 // loop_header_branch
      %26 = sbr.rel (%p24) target = $region8
    $region5: #{tpu_custom_call.1} parent=1 // loop_body
      %s28 = ssub.s32 %s23, 1
      %s29 = ssub.s32 %s23, 2
      %s30 = sadd.s32 %s23, 1
      %s31 = ssub.s32 %s23, %s30
      %p32 = scmp.eq.s32.totalorder %s31, 0
      %s34 = sadd.s32 %s33, 1
      %s35 = scalar_select %p32, %s33, %s34
      %p38 = pneg %p32
      %p39 = scmp.eq.s32.totalorder %s23, 1
      %p40 = por %p38, %p39
      %p41 = scmp.ne.s32.totalorder %s33, %s36
      %p42 = scmp.eq.s32.totalorder %s23, 0
      %p43 = por %p41, %p42
      %p44 = scmp.ne.s32.totalorder %s33, %s36
      %p45 = scmp.eq.s32.totalorder %s28, 1
      %p46 = por %p44, %p45
      %p47 = scmp.ne.s32.totalorder %s36, %s37
      %p48 = scmp.eq.s32.totalorder %s28, 0
      %p49 = por %p47, %p48
      %p50 = scmp.ne.s32.totalorder %s36, %s37
      %p51 = scmp.eq.s32.totalorder %s29, 1
      %p52 = por %p50, %p51
      %p54 = scmp.ne.s32.totalorder %s37, %s53
      %p55 = scmp.eq.s32.totalorder %s29, 0
      %p56 = por %p54, %p55
      %s58 = sadd.s32 %s57, 1
      %p61 = scmp.eq.s32.totalorder %s23, 1
      %p62 = scmp.ne.s32.totalorder %s57, %s59
      %p63 = scmp.eq.s32.totalorder %s23, 0
      %p64 = por %p62, %p63
      %p65 = scmp.ne.s32.totalorder %s57, %s59
      %p66 = scmp.eq.s32.totalorder %s28, 1
      %p67 = por %p65, %p66
      %p68 = scmp.ne.s32.totalorder %s59, %s60
      %p69 = scmp.eq.s32.totalorder %s28, 0
      %p70 = por %p68, %p69
      %p71 = scmp.ne.s32.totalorder %s59, %s60
      %p72 = scmp.eq.s32.totalorder %s29, 1
      %p73 = por %p71, %p72
      %p75 = scmp.ne.s32.totalorder %s60, %s74
      %p76 = scmp.eq.s32.totalorder %s29, 0
      %p77 = por %p75, %p76
      %s79 = sadd.s32 %s78, 1
      %p82 = scmp.eq.s32.totalorder %s23, 1
      %p83 = scmp.ne.s32.totalorder %s78, %s80
      %p84 = scmp.eq.s32.totalorder %s23, 0
      %p85 = por %p83, %p84
      %p86 = scmp.ne.s32.totalorder %s78, %s80
      %p87 = scmp.eq.s32.totalorder %s28, 1
      %p88 = por %p86, %p87
      %p89 = scmp.ne.s32.totalorder %s80, %s81
      %p90 = scmp.eq.s32.totalorder %s28, 0
      %p91 = por %p89, %p90
      %p92 = scmp.ne.s32.totalorder %s80, %s81
      %p93 = scmp.eq.s32.totalorder %s29, 1
      %p94 = por %p92, %p93
      %p96 = scmp.ne.s32.totalorder %s81, %s95
      %p97 = scmp.eq.s32.totalorder %s29, 0
      %p98 = por %p96, %p97
      %s100 = sadd.s32 %s99, 1
      %p103 = scmp.eq.s32.totalorder %s23, 1
      %p104 = scmp.ne.s32.totalorder %s99, %s101
      %p105 = scmp.eq.s32.totalorder %s23, 0
      %p106 = por %p104, %p105
      %p107 = scmp.ne.s32.totalorder %s99, %s101
      %p108 = scmp.eq.s32.totalorder %s28, 1
      %p109 = por %p107, %p108
      %p110 = scmp.ne.s32.totalorder %s101, %s102
      %p111 = scmp.eq.s32.totalorder %s28, 0
      %p112 = por %p110, %p111
      %p113 = scmp.ne.s32.totalorder %s101, %s102
      %p114 = scmp.eq.s32.totalorder %s29, 1
      %p115 = por %p113, %p114
      %p117 = scmp.ne.s32.totalorder %s102, %s116
      %p118 = scmp.eq.s32.totalorder %s29, 0
      %p119 = por %p117, %p118
      %s121 = sadd.s32 %s120, 1
      %p124 = scmp.eq.s32.totalorder %s23, 1
      %p125 = scmp.ne.s32.totalorder %s120, %s122
      %p126 = scmp.eq.s32.totalorder %s23, 0
      %p127 = por %p125, %p126
      %p128 = scmp.ne.s32.totalorder %s120, %s122
      %p129 = scmp.eq.s32.totalorder %s28, 1
      %p130 = por %p128, %p129
      %p131 = scmp.ne.s32.totalorder %s122, %s123
      %p132 = scmp.eq.s32.totalorder %s28, 0
      %p133 = por %p131, %p132
      %p134 = scmp.ne.s32.totalorder %s122, %s123
      %p135 = scmp.eq.s32.totalorder %s29, 1
      %p136 = por %p134, %p135
      %p138 = scmp.ne.s32.totalorder %s123, %s137
      %p139 = scmp.eq.s32.totalorder %s29, 0
      %p140 = por %p138, %p139
      %s142 = sadd.s32 %s141, 1
      %p145 = scmp.eq.s32.totalorder %s23, 1
      %p146 = scmp.ne.s32.totalorder %s141, %s143
      %p147 = scmp.eq.s32.totalorder %s23, 0
      %p148 = por %p146, %p147
      %p149 = scmp.ne.s32.totalorder %s141, %s143
      %p150 = scmp.eq.s32.totalorder %s28, 1
      %p151 = por %p149, %p150
      %p152 = scmp.ne.s32.totalorder %s143, %s144
      %p153 = scmp.eq.s32.totalorder %s28, 0
      %p154 = por %p152, %p153
      %p155 = scmp.ne.s32.totalorder %s143, %s144
      %p156 = scmp.eq.s32.totalorder %s29, 1
      %p157 = por %p155, %p156
      %p159 = scmp.ne.s32.totalorder %s144, %s158
      %p160 = scmp.eq.s32.totalorder %s29, 0
      %p161 = por %p159, %p160
      %s163 = sadd.s32 %s162, 1
      %p166 = scmp.eq.s32.totalorder %s23, 1
      %p167 = scmp.ne.s32.totalorder %s162, %s164
      %p168 = scmp.eq.s32.totalorder %s23, 0
      %p169 = por %p167, %p168
      %p170 = scmp.ne.s32.totalorder %s162, %s164
      %p171 = scmp.eq.s32.totalorder %s28, 1
      %p172 = por %p170, %p171
      %p173 = scmp.ne.s32.totalorder %s164, %s165
      %p174 = scmp.eq.s32.totalorder %s28, 0
      %p175 = por %p173, %p174
      %p176 = scmp.ne.s32.totalorder %s164, %s165
      %p177 = scmp.eq.s32.totalorder %s29, 1
      %p178 = por %p176, %p177
      %p180 = scmp.ne.s32.totalorder %s165, %s179
      %p181 = scmp.eq.s32.totalorder %s29, 0
      %p182 = por %p180, %p181
      %s184 = sadd.s32 %s183, 1
      %p187 = scmp.eq.s32.totalorder %s23, 1
      %p188 = scmp.ne.s32.totalorder %s183, %s185
      %p189 = scmp.eq.s32.totalorder %s23, 0
      %p190 = por %p188, %p189
      %p191 = scmp.ne.s32.totalorder %s183, %s185
      %p192 = scmp.eq.s32.totalorder %s28, 1
      %p193 = por %p191, %p192
      %p194 = scmp.ne.s32.totalorder %s185, %s186
      %p195 = scmp.eq.s32.totalorder %s28, 0
      %p196 = por %p194, %p195
      %p197 = scmp.ne.s32.totalorder %s185, %s186
      %p198 = scmp.eq.s32.totalorder %s29, 1
      %p199 = por %p197, %p198
      %p201 = scmp.ne.s32.totalorder %s186, %s200
      %p202 = scmp.eq.s32.totalorder %s29, 0
      %p203 = por %p201, %p202
      %s205 = sadd.s32 %s204, 1
      %p208 = scmp.eq.s32.totalorder %s23, 1
      %p209 = scmp.ne.s32.totalorder %s204, %s206
      %p210 = scmp.eq.s32.totalorder %s23, 0
      %p211 = por %p209, %p210
      %p212 = scmp.ne.s32.totalorder %s204, %s206
      %p213 = scmp.eq.s32.totalorder %s28, 1
      %p214 = por %p212, %p213
      %p215 = scmp.ne.s32.totalorder %s206, %s207
      %p216 = scmp.eq.s32.totalorder %s28, 0
      %p217 = por %p215, %p216
      %p218 = scmp.ne.s32.totalorder %s206, %s207
      %p219 = scmp.eq.s32.totalorder %s29, 1
      %p220 = por %p218, %p219
      %p222 = scmp.ne.s32.totalorder %s207, %s221
      %p223 = scmp.eq.s32.totalorder %s29, 0
      %p224 = por %p222, %p223
      %s226 = sadd.s32 %s225, 1
      %p229 = scmp.eq.s32.totalorder %s23, 1
      %p230 = scmp.ne.s32.totalorder %s225, %s227
      %p231 = scmp.eq.s32.totalorder %s23, 0
      %p232 = por %p230, %p231
      %p233 = scmp.ne.s32.totalorder %s225, %s227
      %p234 = scmp.eq.s32.totalorder %s28, 1
      %p235 = por %p233, %p234
      %p236 = scmp.ne.s32.totalorder %s227, %s228
      %p237 = scmp.eq.s32.totalorder %s28, 0
      %p238 = por %p236, %p237
      %p239 = scmp.ne.s32.totalorder %s227, %s228
      %p240 = scmp.eq.s32.totalorder %s29, 1
      %p241 = por %p239, %p240
      %p243 = scmp.ne.s32.totalorder %s228, %s242
      %p244 = scmp.eq.s32.totalorder %s29, 0
      %p245 = por %p243, %p244
      %s247 = sadd.s32 %s246, 1
      %p250 = scmp.eq.s32.totalorder %s23, 1
      %p251 = scmp.ne.s32.totalorder %s246, %s248
      %p252 = scmp.eq.s32.totalorder %s23, 0
      %p253 = por %p251, %p252
      %p254 = scmp.ne.s32.totalorder %s246, %s248
      %p255 = scmp.eq.s32.totalorder %s28, 1
      %p256 = por %p254, %p255
      %p257 = scmp.ne.s32.totalorder %s248, %s249
      %p258 = scmp.eq.s32.totalorder %s28, 0
      %p259 = por %p257, %p258
      %p260 = scmp.ne.s32.totalorder %s248, %s249
      %p261 = scmp.eq.s32.totalorder %s29, 1
      %p262 = por %p260, %p261
      %p264 = scmp.ne.s32.totalorder %s249, %s263
      %p265 = scmp.eq.s32.totalorder %s29, 0
      %p266 = por %p264, %p265
      %s268 = sadd.s32 %s267, 1
      %p271 = scmp.eq.s32.totalorder %s23, 1
      %p272 = scmp.ne.s32.totalorder %s267, %s269
      %p273 = scmp.eq.s32.totalorder %s23, 0
      %p274 = por %p272, %p273
      %p275 = scmp.ne.s32.totalorder %s267, %s269
      %p276 = scmp.eq.s32.totalorder %s28, 1
      %p277 = por %p275, %p276
      %p278 = scmp.ne.s32.totalorder %s269, %s270
      %p279 = scmp.eq.s32.totalorder %s28, 0
      %p280 = por %p278, %p279
      %p281 = scmp.ne.s32.totalorder %s269, %s270
      %p282 = scmp.eq.s32.totalorder %s29, 1
      %p283 = por %p281, %p282
      %p285 = scmp.ne.s32.totalorder %s270, %s284
      %p286 = scmp.eq.s32.totalorder %s29, 0
      %p287 = por %p285, %p286
      %s289 = sadd.s32 %s288, 1
      %p292 = scmp.eq.s32.totalorder %s23, 1
      %p293 = scmp.ne.s32.totalorder %s288, %s290
      %p294 = scmp.eq.s32.totalorder %s23, 0
      %p295 = por %p293, %p294
      %p296 = scmp.ne.s32.totalorder %s288, %s290
      %p297 = scmp.eq.s32.totalorder %s28, 1
      %p298 = por %p296, %p297
      %p299 = scmp.ne.s32.totalorder %s290, %s291
      %p300 = scmp.eq.s32.totalorder %s28, 0
      %p301 = por %p299, %p300
      %p302 = scmp.ne.s32.totalorder %s290, %s291
      %p303 = scmp.eq.s32.totalorder %s29, 1
      %p304 = por %p302, %p303
      %p306 = scmp.ne.s32.totalorder %s291, %s305
      %p307 = scmp.eq.s32.totalorder %s29, 0
      %p308 = por %p306, %p307
      %s309 = ssub.s32 %s23, %s30
      %p310 = scmp.eq.s32.totalorder %s309, 0
      %s312 = sadd.s32 %s311, 1
      %s313 = scalar_select %p310, %s311, %s312
      %p316 = pneg %p310
      %p317 = scmp.eq.s32.totalorder %s23, 1
      %p318 = por %p316, %p317
      %p319 = scmp.ne.s32.totalorder %s311, %s314
      %p320 = scmp.eq.s32.totalorder %s23, 0
      %p321 = por %p319, %p320
      %p322 = scmp.ne.s32.totalorder %s311, %s314
      %p323 = scmp.eq.s32.totalorder %s28, 1
      %p324 = por %p322, %p323
      %p325 = scmp.ne.s32.totalorder %s314, %s315
      %p326 = scmp.eq.s32.totalorder %s28, 0
      %p327 = por %p325, %p326
      %p328 = scmp.ne.s32.totalorder %s314, %s315
      %p329 = scmp.eq.s32.totalorder %s29, 1
      %p330 = por %p328, %p329
      %p332 = scmp.ne.s32.totalorder %s315, %s331
      %p333 = scmp.eq.s32.totalorder %s29, 0
      %p334 = por %p332, %p333
      %p335 = scmp.le.s32.totalorder 1, %s23
      %p336 = scmp.lt.s32.totalorder %s23, 3
      %p337 = pnand %p335, %p336
      %p338 = pneg %p337
      // Predicated region
      $region9: #{tpu_custom_call.1} parent=5 // pred_check
        _
      $region10: #{tpu_custom_call.1} parent=5 // pred_check_branch
        %340 = sbr.rel (%p337) target = $region12
      $region11: #{tpu_custom_call.1} parent=5 // pred_region
        %s341 = ssub.s32 %s23, 1
        // Predicated region
        $region13: #{tpu_custom_call.1} parent=11 // pred_check
          %p342 = pneg %p70
        $region14: #{tpu_custom_call.1} parent=11 // pred_check_branch
          %344 = sbr.rel (%p342) target = $region16
        $region15: #{tpu_custom_call.1} parent=11 // pred_region
          _
        $region16: #{tpu_custom_call.1} parent=11 // pred_fallthru
          _
        // Predicated region
        $region17: #{tpu_custom_call.1} parent=11 // pred_check
          %p345 = pneg %p91
        $region18: #{tpu_custom_call.1} parent=11 // pred_check_branch
          %347 = sbr.rel (%p345) target = $region20
        $region19: #{tpu_custom_call.1} parent=11 // pred_region
          _
        $region20: #{tpu_custom_call.1} parent=11 // pred_fallthru
          _
        // Predicated region
        $region21: #{tpu_custom_call.1} parent=11 // pred_check
          %p348 = pneg %p112
        $region22: #{tpu_custom_call.1} parent=11 // pred_check_branch
          %350 = sbr.rel (%p348) target = $region24
        $region23: #{tpu_custom_call.1} parent=11 // pred_region
          _
        $region24: #{tpu_custom_call.1} parent=11 // pred_fallthru
          _
        // Predicated region
        $region25: #{tpu_custom_call.1} parent=11 // pred_check
          %p351 = pneg %p133
        $region26: #{tpu_custom_call.1} parent=11 // pred_check_branch
          %353 = sbr.rel (%p351) target = $region28
        $region27: #{tpu_custom_call.1} parent=11 // pred_region
          _
        $region28: #{tpu_custom_call.1} parent=11 // pred_fallthru
          _
        // Predicated region
        $region29: #{tpu_custom_call.1} parent=11 // pred_check
          %p354 = pneg %p154
        $region30: #{tpu_custom_call.1} parent=11 // pred_check_branch
          %356 = sbr.rel (%p354) target = $region32
        $region31: #{tpu_custom_call.1} parent=11 // pred_region
          _
        $region32: #{tpu_custom_call.1} parent=11 // pred_fallthru
          _
        // Predicated region
        $region33: #{tpu_custom_call.1} parent=11 // pred_check
          %p357 = pneg %p175
        $region34: #{tpu_custom_call.1} parent=11 // pred_check_branch
          %359 = sbr.rel (%p357) target = $region36
        $region35: #{tpu_custom_call.1} parent=11 // pred_region
          _
        $region36: #{tpu_custom_call.1} parent=11 // pred_fallthru
          _
        // Predicated region
        $region37: #{tpu_custom_call.1} parent=11 // pred_check
          %p360 = pneg %p196
        $region38: #{tpu_custom_call.1} parent=11 // pred_check_branch
          %362 = sbr.rel (%p360) target = $region40
        $region39: #{tpu_custom_call.1} parent=11 // pred_region
          %s364 = ssub.s32 256, 256
          %365 = vsyncadd [#allocation3], %s364
          %s366 = sshll.u32 [#allocation2], 4
          %s367 = int_to_ptr.vmem [resolvable:$true] %s366
          %372 = dma.hbm_to_vmem [thread:$0]  %s7, 256, %s367, [#allocation3], 64, 64, 4
        $region40: #{tpu_custom_call.1} parent=11 // pred_fallthru
          _
        // Predicated region
        $region41: #{tpu_custom_call.1} parent=11 // pred_check
          %p373 = pneg %p217
        $region42: #{tpu_custom_call.1} parent=11 // pred_check_branch
          %375 = sbr.rel (%p373) target = $region44
        $region43: #{tpu_custom_call.1} parent=11 // pred_region
          _
        $region44: #{tpu_custom_call.1} parent=11 // pred_fallthru
          _
        // Predicated region
        $region45: #{tpu_custom_call.1} parent=11 // pred_check
          %p376 = pneg %p238
        $region46: #{tpu_custom_call.1} parent=11 // pred_check_branch
          %378 = sbr.rel (%p376) target = $region48
        $region47: #{tpu_custom_call.1} parent=11 // pred_region
          _
        $region48: #{tpu_custom_call.1} parent=11 // pred_fallthru
          _
        // Predicated region
        $region49: #{tpu_custom_call.1} parent=11 // pred_check
          %p379 = pneg %p259
        $region50: #{tpu_custom_call.1} parent=11 // pred_check_branch
          %381 = sbr.rel (%p379) target = $region52
        $region51: #{tpu_custom_call.1} parent=11 // pred_region
          _
        $region52: #{tpu_custom_call.1} parent=11 // pred_fallthru
          _
        // Predicated region
        $region53: #{tpu_custom_call.1} parent=11 // pred_check
          %p382 = pneg %p280
        $region54: #{tpu_custom_call.1} parent=11 // pred_check_branch
          %384 = sbr.rel (%p382) target = $region56
        $region55: #{tpu_custom_call.1} parent=11 // pred_region
          _
        $region56: #{tpu_custom_call.1} parent=11 // pred_fallthru
          _
        // Predicated region
        $region57: #{tpu_custom_call.1} parent=11 // pred_check
          %p385 = pneg %p301
        $region58: #{tpu_custom_call.1} parent=11 // pred_check_branch
          %387 = sbr.rel (%p385) target = $region60
        $region59: #{tpu_custom_call.1} parent=11 // pred_region
          _
        $region60: #{tpu_custom_call.1} parent=11 // pred_fallthru
          _
      $region12: #{tpu_custom_call.1} parent=5 // pred_fallthru
        _
      %p388 = scmp.lt.s32.totalorder %s23, 2
      // Predicated region
      $region61: #{tpu_custom_call.1} parent=5 // pred_check
        %p389 = pneg %p388
      $region62: #{tpu_custom_call.1} parent=5 // pred_check_branch
        %391 = sbr.rel (%p389) target = $region64
      $region63: #{tpu_custom_call.1} parent=5 // pred_region
        // Predicated region
        $region65: #{tpu_custom_call.1} parent=63 // pred_check
          %p392 = pneg %p43
        $region66: #{tpu_custom_call.1} parent=63 // pred_check_branch
          %394 = sbr.rel (%p392) target = $region68
        $region67: #{tpu_custom_call.1} parent=63 // pred_region
          %p395 = scmp.lt.s32.totalorder %s23, 1
          %s396 = scalar_select %p395, %s23, 1
          %s397 = smul.addr %s396, 8
          %s398 = scalar_lea.vmem %s0, %s397
        $region68: #{tpu_custom_call.1} parent=63 // pred_fallthru
          _
      $region64: #{tpu_custom_call.1} parent=5 // pred_fallthru
        _
      %p399 = scmp.le.s32.totalorder 1, %s23
      %p400 = scmp.lt.s32.totalorder %s23, 3
      %p401 = pnand %p399, %p400
      %p402 = pneg %p401
      // Predicated region
      $region69: #{tpu_custom_call.1} parent=5 // pred_check
        _
      $region70: #{tpu_custom_call.1} parent=5 // pred_check_branch
        %404 = sbr.rel (%p401) target = $region72
      $region71: #{tpu_custom_call.1} parent=5 // pred_region
        %s405 = ssub.s32 %s23, 1
        // Predicated region
        $region73: #{tpu_custom_call.1} parent=71 // pred_check
          %p406 = pneg %p196
        $region74: #{tpu_custom_call.1} parent=71 // pred_check_branch
          %408 = sbr.rel (%p406) target = $region76
        $region75: #{tpu_custom_call.1} parent=71 // pred_region
          %409 = dma.done [#allocation3], 256
        $region76: #{tpu_custom_call.1} parent=71 // pred_fallthru
          _
        %p410 = scmp.lt.s32.totalorder %s28, 1
        %s411 = scalar_select %p410, %s28, 1
        %s412 = smul.addr %s411, 8
        %s413 = scalar_lea.vmem %s0, %s412
        %p414 = pneg %p49
        %p415 = pneg %p46
        %p416 = pneg %p70
        %p417 = pneg %p67
        %p418 = pneg %p91
        %p419 = pneg %p88
        %p420 = pneg %p112
        %p421 = pneg %p109
        %p422 = pneg %p133
        %p423 = pneg %p130
        %p424 = pneg %p154
        %p425 = pneg %p151
        %p426 = pneg %p175
        %p427 = pneg %p172
        %p428 = pneg %p196
        %p429 = pneg %p193
        %p430 = pneg %p217
        %p431 = pneg %p214
        %p432 = pneg %p238
        %p433 = pneg %p235
        %p434 = pneg %p259
        %p435 = pneg %p256
        %p436 = pneg %p280
        %p437 = pneg %p277
        %p438 = pneg %p301
        %p439 = pneg %p298
        %p440 = pneg %p327
        %p441 = pneg %p324
        %s442 = sand.u32 %s314, 1
        %s443 = scalar_lea.sflag [#allocation4], %s442
        %s444 = sand.u32 %s314, 1
        %s445 = smul.addr %s444, 8
        %s446 = scalar_lea.vmem [#allocation5], %s445
        %p447 = scmp.lt.s32.totalorder %s28, 1
        %s448 = scalar_select %p447, %s28, 1
        %s449 = smul.addr %s448, 8
        %s450 = scalar_lea.vmem %s0, %s449
        %v452 = vld [vmem:[%s450] sm:$0xff]
        %v453 = vpack.c.bf16 %v452, %v452
        %v454 = vld [vmem:[%s1] sm:$0xf]
        %v455 = vld [vmem:[%s1 + $0x4] sm:$0xf]
        %v456 = vld [vmem:[%s1 + $0x8] sm:$0xf]
        %v457 = vld [vmem:[%s1 + $0xc] sm:$0xf]
        %v458 = vld [vmem:[%s2] sm:$0x1]
        %v460 = vlaneseq
        %v461 = vshrl.u32 %v460, 7
        %v462 = vsub.s32 0, %v461
        %v463 = vrot.slane %v458, %v462
        %v469 = vunpack.c.l.b16 %v454
        %v470 = vunpack.c.l.b16 %v455
        %v471 = vunpack.c.l.b16 %v456
        %v472 = vunpack.c.l.b16 %v457
        %v473 = vpack.c.b16 %v470, %v469
        %v474 = vpack.c.b16 %v472, %v471
        %vm477 = vcmask 261120
        %v479 = vsel %vm477, %v453, 0
        %481 = vmatprep.subr.bf16.mxu0 0
        %482 = vmatpush1.bf16.msra.mxu0 %v473
        %483 = vmatprep.subr.bf16.mxu0 0
        %484 = vmatpush1.bf16.msra.mxu0 %v474
        %485 = vmatprep.subr.bf16.mxu0 0
        %486 = vmatpush1.bf16.msra.mxu0 0
        %487 = vmatprep.subr.bf16.mxu0 0
        %488 = vmatpush1.bf16.msra.mxu0 0
        %489 = vmatprep.subr.bf16.mxu0 0
        %490 = vmatpush1.bf16.msra.mxu0 0
        %491 = vmatprep.subr.bf16.mxu0 0
        %492 = vmatpush1.bf16.msra.mxu0 0
        %493 = vmatprep.subr.bf16.mxu0 0
        %494 = vmatpush1.bf16.msra.mxu0 0
        %495 = vmatprep.subr.bf16.mxu0 0
        %496 = vmatpush1.bf16.msra.mxu0 0
        %497 = vmatprep.subr.bf16.mxu0 0
        %498 = vmatpush1.bf16.msra.mxu0 0
        %499 = vmatprep.subr.bf16.mxu0 0
        %500 = vmatpush1.bf16.msra.mxu0 0
        %501 = vmatprep.subr.bf16.mxu0 0
        %502 = vmatpush1.bf16.msra.mxu0 0
        %503 = vmatprep.subr.bf16.mxu0 0
        %504 = vmatpush1.bf16.msra.mxu0 0
        %505 = vmatprep.subr.bf16.mxu0 0
        %506 = vmatpush1.bf16.msra.mxu0 0
        %507 = vmatprep.subr.bf16.mxu0 0
        %508 = vmatpush1.bf16.msra.mxu0 0
        %509 = vmatprep.subr.bf16.mxu0 0
        %510 = vmatpush1.bf16.msra.mxu0 0
        %511 = vmatprep.subr.bf16.mxu0 0
        %512 = vmatpush1.bf16.msra.mxu0 0
        %513 = vmatprep.mubr.bf16.mxu0 0
        %514 = vmatmul.mubr.bf16.gmra.mrb[0].mxu0 %v479
        %v515 = vpop.f32.mrb[0].mxu0
        %v516 = vadd.f32 %v463, %v515
        %v517 = vpop.f32.mrb[0].mxu0
        %v518 = vpop.f32.mrb[0].mxu0
        %v519 = vpop.f32.mrb[0].mxu0
        %520 = vdwg.mxu0
        %522 = vrot.lane.b32.xlu0 %v516, 120
        %v523 = vpop.permute.xlu0 %522
        %525 = vrot.lane.b32.xlu0 %v516, 112
        %v526 = vpop.permute.xlu0 %525
        %528 = vrot.lane.b32.xlu0 %v516, 104
        %v529 = vpop.permute.xlu0 %528
        %531 = vrot.lane.b32.xlu0 %v516, 96
        %v532 = vpop.permute.xlu0 %531
        %534 = vrot.lane.b32.xlu0 %v516, 88
        %v535 = vpop.permute.xlu0 %534
        %537 = vrot.lane.b32.xlu0 %v516, 80
        %v538 = vpop.permute.xlu0 %537
        %540 = vrot.lane.b32.xlu0 %v516, 72
        %v541 = vpop.permute.xlu0 %540
        %543 = vrot.lane.b32.xlu0 %v516, 64
        %v544 = vpop.permute.xlu0 %543
        %546 = vrot.lane.b32.xlu0 %v516, 56
        %v547 = vpop.permute.xlu0 %546
        %549 = vrot.lane.b32.xlu0 %v516, 48
        %v550 = vpop.permute.xlu0 %549
        %552 = vrot.lane.b32.xlu0 %v516, 40
        %v553 = vpop.permute.xlu0 %552
        %v555 = vcombine.low %v516, %v526
        %v556 = vcombine.high %v516, %v526
        %v558 = vunpack.c.l.s4 1983009808
        %v559 = vunpack.c.0.s8 %v558
        %v560 = vlaneseq
        %v561 = vshrl.u32 %v560, 7
        %v562 = vsub.s32 %v559, %v561
        %v563 = vrot.slane %v555, %v562
        %v565 = vunpack.c.l.s4 1983009808
        %v566 = vunpack.c.0.s8 %v565
        %v567 = vlaneseq
        %v568 = vshrl.u32 %v567, 7
        %v569 = vsub.s32 %v566, %v568
        %v570 = vrot.slane %v556, %v569
        %v571 = vcombine.low %v523, %v529
        %v572 = vcombine.high %v523, %v529
        %v574 = vunpack.c.l.s4 1983009808
        %v575 = vunpack.c.0.s8 %v574
        %v576 = vlaneseq
        %v577 = vshrl.u32 %v576, 7
        %v578 = vsub.s32 %v575, %v577
        %v579 = vrot.slane %v571, %v578
        %v581 = vunpack.c.l.s4 1983009808
        %v582 = vunpack.c.0.s8 %v581
        %v583 = vlaneseq
        %v584 = vshrl.u32 %v583, 7
        %v585 = vsub.s32 %v582, %v584
        %v586 = vrot.slane %v572, %v585
        %v587 = vcombine.low %v532, %v538
        %v588 = vcombine.high %v532, %v538
        %v590 = vunpack.c.l.s4 1983009808
        %v591 = vunpack.c.0.s8 %v590
        %v592 = vlaneseq
        %v593 = vshrl.u32 %v592, 7
        %v594 = vsub.s32 %v591, %v593
        %v595 = vrot.slane %v587, %v594
        %v597 = vunpack.c.l.s4 1983009808
        %v598 = vunpack.c.0.s8 %v597
        %v599 = vlaneseq
        %v600 = vshrl.u32 %v599, 7
        %v601 = vsub.s32 %v598, %v600
        %v602 = vrot.slane %v588, %v601
        %v603 = vcombine.low %v535, %v541
        %v604 = vcombine.high %v535, %v541
        %v606 = vunpack.c.l.s4 1983009808
        %v607 = vunpack.c.0.s8 %v606
        %v608 = vlaneseq
        %v609 = vshrl.u32 %v608, 7
        %v610 = vsub.s32 %v607, %v609
        %v611 = vrot.slane %v603, %v610
        %v613 = vunpack.c.l.s4 1983009808
        %v614 = vunpack.c.0.s8 %v613
        %v615 = vlaneseq
        %v616 = vshrl.u32 %v615, 7
        %v617 = vsub.s32 %v614, %v616
        %v618 = vrot.slane %v604, %v617
        %v619 = vcombine.low %v563, %v579
        %v620 = vcombine.high %v563, %v579
        %v622 = vunpack.c.l.s4 1934713408
        %v623 = vunpack.c.0.s8 %v622
        %v624 = vlaneseq
        %v625 = vshrl.u32 %v624, 7
        %v626 = vsub.s32 %v623, %v625
        %v627 = vrot.slane %v619, %v626
        %v629 = vunpack.c.l.s4 1934713408
        %v630 = vunpack.c.0.s8 %v629
        %v631 = vlaneseq
        %v632 = vshrl.u32 %v631, 7
        %v633 = vsub.s32 %v630, %v632
        %v634 = vrot.slane %v620, %v633
        %v635 = vcombine.low %v570, %v586
        %v636 = vcombine.high %v570, %v586
        %v638 = vunpack.c.l.s4 1934713408
        %v639 = vunpack.c.0.s8 %v638
        %v640 = vlaneseq
        %v641 = vshrl.u32 %v640, 7
        %v642 = vsub.s32 %v639, %v641
        %v643 = vrot.slane %v635, %v642
        %v645 = vunpack.c.l.s4 1934713408
        %v646 = vunpack.c.0.s8 %v645
        %v647 = vlaneseq
        %v648 = vshrl.u32 %v647, 7
        %v649 = vsub.s32 %v646, %v648
        %v650 = vrot.slane %v636, %v649
        %v651 = vcombine.low %v595, %v611
        %v652 = vcombine.high %v595, %v611
        %v654 = vunpack.c.l.s4 1934713408
        %v655 = vunpack.c.0.s8 %v654
        %v656 = vlaneseq
        %v657 = vshrl.u32 %v656, 7
        %v658 = vsub.s32 %v655, %v657
        %v659 = vrot.slane %v651, %v658
        %v661 = vunpack.c.l.s4 1934713408
        %v662 = vunpack.c.0.s8 %v661
        %v663 = vlaneseq
        %v664 = vshrl.u32 %v663, 7
        %v665 = vsub.s32 %v662, %v664
        %v666 = vrot.slane %v652, %v665
        %v667 = vcombine.low %v602, %v618
        %v668 = vcombine.high %v602, %v618
        %v670 = vunpack.c.l.s4 1934713408
        %v671 = vunpack.c.0.s8 %v670
        %v672 = vlaneseq
        %v673 = vshrl.u32 %v672, 7
        %v674 = vsub.s32 %v671, %v673
        %v675 = vrot.slane %v667, %v674
        %v677 = vunpack.c.l.s4 1934713408
        %v678 = vunpack.c.0.s8 %v677
        %v679 = vlaneseq
        %v680 = vshrl.u32 %v679, 7
        %v681 = vsub.s32 %v678, %v680
        %v682 = vrot.slane %v668, %v681
        %v683 = vcombine.low %v627, %v659
        %v684 = vcombine.high %v627, %v659
        %v685 = vcombine.low %v634, %v666
        %v686 = vcombine.high %v634, %v666
        %v687 = vcombine.low %v643, %v675
        %v688 = vcombine.high %v643, %v675
        %v689 = vcombine.low %v650, %v682
        %v690 = vcombine.high %v650, %v682
        %v691 = vcombine.low %v544, %v550
        %v692 = vcombine.high %v544, %v550
        %v694 = vunpack.c.l.s4 1983009808
        %v695 = vunpack.c.0.s8 %v694
        %v696 = vlaneseq
        %v697 = vshrl.u32 %v696, 7
        %v698 = vsub.s32 %v695, %v697
        %v699 = vrot.slane %v691, %v698
        %v701 = vunpack.c.l.s4 1983009808
        %v702 = vunpack.c.0.s8 %v701
        %v703 = vlaneseq
        %v704 = vshrl.u32 %v703, 7
        %v705 = vsub.s32 %v702, %v704
        %v706 = vrot.slane %v692, %v705
        %v707 = vcombine.low %v547, %v553
        %v708 = vcombine.high %v547, %v553
        %v710 = vunpack.c.l.s4 1983009808
        %v711 = vunpack.c.0.s8 %v710
        %v712 = vlaneseq
        %v713 = vshrl.u32 %v712, 7
        %v714 = vsub.s32 %v711, %v713
        %v715 = vrot.slane %v707, %v714
        %v717 = vunpack.c.l.s4 1983009808
        %v718 = vunpack.c.0.s8 %v717
        %v719 = vlaneseq
        %v720 = vshrl.u32 %v719, 7
        %v721 = vsub.s32 %v718, %v720
        %v722 = vrot.slane %v708, %v721
        %v723 = vcombine.low %v699, %v715
        %v724 = vcombine.high %v699, %v715
        %v726 = vunpack.c.l.s4 1934713408
        %v727 = vunpack.c.0.s8 %v726
        %v728 = vlaneseq
        %v729 = vshrl.u32 %v728, 7
        %v730 = vsub.s32 %v727, %v729
        %v731 = vrot.slane %v723, %v730
        %v733 = vunpack.c.l.s4 1934713408
        %v734 = vunpack.c.0.s8 %v733
        %v735 = vlaneseq
        %v736 = vshrl.u32 %v735, 7
        %v737 = vsub.s32 %v734, %v736
        %v738 = vrot.slane %v724, %v737
        %v739 = vcombine.low %v706, %v722
        %v740 = vcombine.high %v706, %v722
        %v742 = vunpack.c.l.s4 1934713408
        %v743 = vunpack.c.0.s8 %v742
        %v744 = vlaneseq
        %v745 = vshrl.u32 %v744, 7
        %v746 = vsub.s32 %v743, %v745
        %v747 = vrot.slane %v739, %v746
        %v749 = vunpack.c.l.s4 1934713408
        %v750 = vunpack.c.0.s8 %v749
        %v751 = vlaneseq
        %v752 = vshrl.u32 %v751, 7
        %v753 = vsub.s32 %v750, %v752
        %v754 = vrot.slane %v740, %v753
        %v755 = vcombine.high %v731, 0.0
        %v756 = vcombine.high %v738, 0.0
        %v757 = vcombine.high %v747, 0.0
        %v758 = vcombine.high %v754, 0.0
        %v759 = vcombine.low %v683, %v685
        %v760 = vcombine.high %v683, %v685
        %v762 = vunpack.c.l.s4 1983009808
        %v763 = vunpack.c.0.s8 %v762
        %v764 = vlaneseq
        %v765 = vshrl.u32 %v764, 7
        %v766 = vsub.s32 %v763, %v765
        %v767 = vrot.slane %v759, %v766
        %v769 = vunpack.c.l.s4 1983009808
        %v770 = vunpack.c.0.s8 %v769
        %v771 = vlaneseq
        %v772 = vshrl.u32 %v771, 7
        %v773 = vsub.s32 %v770, %v772
        %v774 = vrot.slane %v760, %v773
        %v775 = vcombine.low %v684, %v686
        %v776 = vcombine.high %v684, %v686
        %v778 = vunpack.c.l.s4 1983009808
        %v779 = vunpack.c.0.s8 %v778
        %v780 = vlaneseq
        %v781 = vshrl.u32 %v780, 7
        %v782 = vsub.s32 %v779, %v781
        %v783 = vrot.slane %v775, %v782
        %v785 = vunpack.c.l.s4 1983009808
        %v786 = vunpack.c.0.s8 %v785
        %v787 = vlaneseq
        %v788 = vshrl.u32 %v787, 7
        %v789 = vsub.s32 %v786, %v788
        %v790 = vrot.slane %v776, %v789
        %v791 = vcombine.low %v687, %v689
        %v792 = vcombine.high %v687, %v689
        %v794 = vunpack.c.l.s4 1983009808
        %v795 = vunpack.c.0.s8 %v794
        %v796 = vlaneseq
        %v797 = vshrl.u32 %v796, 7
        %v798 = vsub.s32 %v795, %v797
        %v799 = vrot.slane %v791, %v798
        %v801 = vunpack.c.l.s4 1983009808
        %v802 = vunpack.c.0.s8 %v801
        %v803 = vlaneseq
        %v804 = vshrl.u32 %v803, 7
        %v805 = vsub.s32 %v802, %v804
        %v806 = vrot.slane %v792, %v805
        %v807 = vcombine.low %v688, %v690
        %v808 = vcombine.high %v688, %v690
        %v810 = vunpack.c.l.s4 1983009808
        %v811 = vunpack.c.0.s8 %v810
        %v812 = vlaneseq
        %v813 = vshrl.u32 %v812, 7
        %v814 = vsub.s32 %v811, %v813
        %v815 = vrot.slane %v807, %v814
        %v817 = vunpack.c.l.s4 1983009808
        %v818 = vunpack.c.0.s8 %v817
        %v819 = vlaneseq
        %v820 = vshrl.u32 %v819, 7
        %v821 = vsub.s32 %v818, %v820
        %v822 = vrot.slane %v808, %v821
        %v823 = vcombine.low %v767, %v783
        %v824 = vcombine.high %v767, %v783
        %v826 = vunpack.c.l.s4 1934713408
        %v827 = vunpack.c.0.s8 %v826
        %v828 = vlaneseq
        %v829 = vshrl.u32 %v828, 7
        %v830 = vsub.s32 %v827, %v829
        %v831 = vrot.slane %v823, %v830
        %v833 = vunpack.c.l.s4 1934713408
        %v834 = vunpack.c.0.s8 %v833
        %v835 = vlaneseq
        %v836 = vshrl.u32 %v835, 7
        %v837 = vsub.s32 %v834, %v836
        %v838 = vrot.slane %v824, %v837
        %v839 = vcombine.low %v774, %v790
        %v840 = vcombine.high %v774, %v790
        %v842 = vunpack.c.l.s4 1934713408
        %v843 = vunpack.c.0.s8 %v842
        %v844 = vlaneseq
        %v845 = vshrl.u32 %v844, 7
        %v846 = vsub.s32 %v843, %v845
        %v847 = vrot.slane %v839, %v846
        %v849 = vunpack.c.l.s4 1934713408
        %v850 = vunpack.c.0.s8 %v849
        %v851 = vlaneseq
        %v852 = vshrl.u32 %v851, 7
        %v853 = vsub.s32 %v850, %v852
        %v854 = vrot.slane %v840, %v853
        %v855 = vcombine.low %v799, %v815
        %v856 = vcombine.high %v799, %v815
        %v858 = vunpack.c.l.s4 1934713408
        %v859 = vunpack.c.0.s8 %v858
        %v860 = vlaneseq
        %v861 = vshrl.u32 %v860, 7
        %v862 = vsub.s32 %v859, %v861
        %v863 = vrot.slane %v855, %v862
        %v865 = vunpack.c.l.s4 1934713408
        %v866 = vunpack.c.0.s8 %v865
        %v867 = vlaneseq
        %v868 = vshrl.u32 %v867, 7
        %v869 = vsub.s32 %v866, %v868
        %v870 = vrot.slane %v856, %v869
        %v871 = vcombine.low %v806, %v822
        %v872 = vcombine.high %v806, %v822
        %v874 = vunpack.c.l.s4 1934713408
        %v875 = vunpack.c.0.s8 %v874
        %v876 = vlaneseq
        %v877 = vshrl.u32 %v876, 7
        %v878 = vsub.s32 %v875, %v877
        %v879 = vrot.slane %v871, %v878
        %v881 = vunpack.c.l.s4 1934713408
        %v882 = vunpack.c.0.s8 %v881
        %v883 = vlaneseq
        %v884 = vshrl.u32 %v883, 7
        %v885 = vsub.s32 %v882, %v884
        %v886 = vrot.slane %v872, %v885
        %v887 = vcombine.low %v831, %v863
        %v888 = vcombine.high %v831, %v863
        %v889 = vcombine.low %v838, %v870
        %v890 = vcombine.high %v838, %v870
        %v891 = vcombine.low %v847, %v879
        %v892 = vcombine.high %v847, %v879
        %v893 = vcombine.low %v854, %v886
        %v894 = vcombine.high %v854, %v886
        %v895 = vcombine.low %v731, %v738
        %v897 = vunpack.c.l.s4 1983009808
        %v898 = vunpack.c.0.s8 %v897
        %v899 = vlaneseq
        %v900 = vshrl.u32 %v899, 7
        %v901 = vsub.s32 %v898, %v900
        %v902 = vrot.slane %v895, %v901
        %v903 = vcombine.low %v755, %v756
        %v905 = vunpack.c.l.s4 1983009808
        %v906 = vunpack.c.0.s8 %v905
        %v907 = vlaneseq
        %v908 = vshrl.u32 %v907, 7
        %v909 = vsub.s32 %v906, %v908
        %v910 = vrot.slane %v903, %v909
        %v911 = vcombine.low %v747, %v754
        %v913 = vunpack.c.l.s4 1983009808
        %v914 = vunpack.c.0.s8 %v913
        %v915 = vlaneseq
        %v916 = vshrl.u32 %v915, 7
        %v917 = vsub.s32 %v914, %v916
        %v918 = vrot.slane %v911, %v917
        %v919 = vcombine.low %v757, %v758
        %v921 = vunpack.c.l.s4 1983009808
        %v922 = vunpack.c.0.s8 %v921
        %v923 = vlaneseq
        %v924 = vshrl.u32 %v923, 7
        %v925 = vsub.s32 %v922, %v924
        %v926 = vrot.slane %v919, %v925
        %v927 = vcombine.low %v902, %v910
        %v928 = vcombine.high %v902, %v910
        %v930 = vunpack.c.l.s4 1934713408
        %v931 = vunpack.c.0.s8 %v930
        %v932 = vlaneseq
        %v933 = vshrl.u32 %v932, 7
        %v934 = vsub.s32 %v931, %v933
        %v935 = vrot.slane %v927, %v934
        %v937 = vunpack.c.l.s4 1934713408
        %v938 = vunpack.c.0.s8 %v937
        %v939 = vlaneseq
        %v940 = vshrl.u32 %v939, 7
        %v941 = vsub.s32 %v938, %v940
        %v942 = vrot.slane %v928, %v941
        %v943 = vcombine.low %v918, %v926
        %v944 = vcombine.high %v918, %v926
        %v946 = vunpack.c.l.s4 1934713408
        %v947 = vunpack.c.0.s8 %v946
        %v948 = vlaneseq
        %v949 = vshrl.u32 %v948, 7
        %v950 = vsub.s32 %v947, %v949
        %v951 = vrot.slane %v943, %v950
        %v953 = vunpack.c.l.s4 1934713408
        %v954 = vunpack.c.0.s8 %v953
        %v955 = vlaneseq
        %v956 = vshrl.u32 %v955, 7
        %v957 = vsub.s32 %v954, %v956
        %v958 = vrot.slane %v944, %v957
        %v959 = vcombine.low %v935, %v951
        %v960 = vcombine.high %v935, %v951
        %v961 = vcombine.low %v942, %v958
        %v962 = vcombine.high %v942, %v958
        %v963 = vpack.c.bf16 %v887, %v887
        %v964 = vpack.c.bf16 %v888, %v888
        %v965 = vpack.c.bf16 %v889, %v889
        %v966 = vpack.c.bf16 %v890, %v890
        %v967 = vpack.c.bf16 %v891, %v891
        %v968 = vpack.c.bf16 %v892, %v892
        %v969 = vpack.c.bf16 %v893, %v893
        %v970 = vpack.c.bf16 %v894, %v894
        %v971 = vpack.c.bf16 %v959, %v959
        %v972 = vpack.c.bf16 %v960, %v960
        %v973 = vpack.c.bf16 %v961, %v961
        %v974 = vpack.c.bf16 %v962, %v962
        %vm975 = vcmask 64512
        %v977 = vsel %vm975, %v963, 0
        %v980 = vsel %vm975, %v967, 0
        %982 = vmatprep.subr.bf16.mxu0 0
        %983 = vmatpush1.bf16.xpose.msra.mxu0 %v980
        %984 = vmatprep.subr.bf16.mxu0 0
        %985 = vmatpush1.bf16.xpose.msra.mxu0 0
        %986 = vmatprep.subr.bf16.mxu0 0
        %987 = vmatpush1.bf16.xpose.msra.mxu0 0
        %988 = vmatprep.subr.bf16.mxu0 0
        %989 = vmatpush1.bf16.xpose.msra.mxu0 0
        %990 = vmatprep.subr.bf16.mxu0 0
        %991 = vmatpush1.bf16.xpose.msra.mxu0 0
        %992 = vmatprep.subr.bf16.mxu0 0
        %993 = vmatpush1.bf16.xpose.msra.mxu0 0
        %994 = vmatprep.subr.bf16.mxu0 0
        %995 = vmatpush1.bf16.xpose.msra.mxu0 0
        %996 = vmatprep.subr.bf16.mxu0 0
        %997 = vmatpush1.bf16.xpose.msra.mxu0 0
        %998 = vmatprep.subr.bf16.mxu0 0
        %999 = vmatpush1.bf16.xpose.msra.mxu0 0
        %1000 = vmatprep.subr.bf16.mxu0 0
        %1001 = vmatpush1.bf16.xpose.msra.mxu0 0
        %1002 = vmatprep.subr.bf16.mxu0 0
        %1003 = vmatpush1.bf16.xpose.msra.mxu0 0
        %1004 = vmatprep.subr.bf16.mxu0 0
        %1005 = vmatpush1.bf16.xpose.msra.mxu0 0
        %1006 = vmatprep.subr.bf16.mxu0 0
        %1007 = vmatpush1.bf16.xpose.msra.mxu0 0
        %1008 = vmatprep.subr.bf16.mxu0 0
        %1009 = vmatpush1.bf16.xpose.msra.mxu0 0
        %1010 = vmatprep.subr.bf16.mxu0 0
        %1011 = vmatpush1.bf16.xpose.msra.mxu0 0
        %1012 = vmatprep.subr.bf16.mxu0 0
        %1013 = vmatpush1.bf16.xpose.msra.mxu0 0
        %1014 = vmatprep.mubr.bf16.mxu0 0
        %1015 = vmatmul.mubr.bf16.gmra.mrb[0].mxu0 %v977
        %v1016 = vpop.f32.mrb[0].mxu0
        %v1017 = vadd.f32 0.0, %v1016
        %v1018 = vpop.f32.mrb[0].mxu0
        %v1019 = vpop.f32.mrb[0].mxu0
        %v1020 = vpop.f32.mrb[0].mxu0
        %1021 = vdwg.mxu0
        %v1023 = vsel %vm975, %v964, 0
        %v1026 = vsel %vm975, %v968, 0
        %1028 = vmatprep.subr.bf16.mxu0 0
        %1029 = vmatpush1.bf16.xpose.msra.mxu0 %v1026
        %1030 = vmatprep.subr.bf16.mxu0 0
        %1031 = vmatpush1.bf16.xpose.msra.mxu0 0
        %1032 = vmatprep.subr.bf16.mxu0 0
        %1033 = vmatpush1.bf16.xpose.msra.mxu0 0
        %1034 = vmatprep.subr.bf16.mxu0 0
        %1035 = vmatpush1.bf16.xpose.msra.mxu0 0
        %1036 = vmatprep.subr.bf16.mxu0 0
        %1037 = vmatpush1.bf16.xpose.msra.mxu0 0
        %1038 = vmatprep.subr.bf16.mxu0 0
        %1039 = vmatpush1.bf16.xpose.msra.mxu0 0
        %1040 = vmatprep.subr.bf16.mxu0 0
        %1041 = vmatpush1.bf16.xpose.msra.mxu0 0
        %1042 = vmatprep.subr.bf16.mxu0 0
        %1043 = vmatpush1.bf16.xpose.msra.mxu0 0
        %1044 = vmatprep.subr.bf16.mxu0 0
        %1045 = vmatpush1.bf16.xpose.msra.mxu0 0
        %1046 = vmatprep.subr.bf16.mxu0 0
        %1047 = vmatpush1.bf16.xpose.msra.mxu0 0
        %1048 = vmatprep.subr.bf16.mxu0 0
        %1049 = vmatpush1.bf16.xpose.msra.mxu0 0
        %1050 = vmatprep.subr.bf16.mxu0 0
        %1051 = vmatpush1.bf16.xpose.msra.mxu0 0
        %1052 = vmatprep.subr.bf16.mxu0 0
        %1053 = vmatpush1.bf16.xpose.msra.mxu0 0
        %1054 = vmatprep.subr.bf16.mxu0 0
        %1055 = vmatpush1.bf16.xpose.msra.mxu0 0
        %1056 = vmatprep.subr.bf16.mxu0 0
        %1057 = vmatpush1.bf16.xpose.msra.mxu0 0
        %1058 = vmatprep.subr.bf16.mxu0 0
        %1059 = vmatpush1.bf16.xpose.msra.mxu0 0
        %1060 = vmatprep.mubr.bf16.mxu0 0
        %1061 = vmatmul.mubr.bf16.gmra.mrb[0].mxu0 %v1023
        %v1062 = vpop.f32.mrb[0].mxu0
        %v1063 = vadd.f32 0.0, %v1062
        %v1064 = vpop.f32.mrb[0].mxu0
        %v1065 = vpop.f32.mrb[0].mxu0
        %v1066 = vpop.f32.mrb[0].mxu0
        %1067 = vdwg.mxu0
        %v1069 = vsel %vm975, %v965, 0
        %v1072 = vsel %vm975, %v969, 0
        %1074 = vmatprep.subr.bf16.mxu0 0
        %1075 = vmatpush1.bf16.xpose.msra.mxu0 %v1072
        %1076 = vmatprep.subr.bf16.mxu0 0
        %1077 = vmatpush1.bf16.xpose.msra.mxu0 0
        %1078 = vmatprep.subr.bf16.mxu0 0
        %1079 = vmatpush1.bf16.xpose.msra.mxu0 0
        %1080 = vmatprep.subr.bf16.mxu0 0
        %1081 = vmatpush1.bf16.xpose.msra.mxu0 0
        %1082 = vmatprep.subr.bf16.mxu0 0
        %1083 = vmatpush1.bf16.xpose.msra.mxu0 0
        %1084 = vmatprep.subr.bf16.mxu0 0
        %1085 = vmatpush1.bf16.xpose.msra.mxu0 0
        %1086 = vmatprep.subr.bf16.mxu0 0
        %1087 = vmatpush1.bf16.xpose.msra.mxu0 0
        %1088 = vmatprep.subr.bf16.mxu0 0
        %1089 = vmatpush1.bf16.xpose.msra.mxu0 0
        %1090 = vmatprep.subr.bf16.mxu0 0
        %1091 = vmatpush1.bf16.xpose.msra.mxu0 0
        %1092 = vmatprep.subr.bf16.mxu0 0
        %1093 = vmatpush1.bf16.xpose.msra.mxu0 0
        %1094 = vmatprep.subr.bf16.mxu0 0
        %1095 = vmatpush1.bf16.xpose.msra.mxu0 0
        %1096 = vmatprep.subr.bf16.mxu0 0
        %1097 = vmatpush1.bf16.xpose.msra.mxu0 0
        %1098 = vmatprep.subr.bf16.mxu0 0
        %1099 = vmatpush1.bf16.xpose.msra.mxu0 0
        %1100 = vmatprep.subr.bf16.mxu0 0
        %1101 = vmatpush1.bf16.xpose.msra.mxu0 0
        %1102 = vmatprep.subr.bf16.mxu0 0
        %1103 = vmatpush1.bf16.xpose.msra.mxu0 0
        %1104 = vmatprep.subr.bf16.mxu0 0
        %1105 = vmatpush1.bf16.xpose.msra.mxu0 0
        %1106 = vmatprep.mubr.bf16.mxu0 0
        %1107 = vmatmul.mubr.bf16.gmra.mrb[0].mxu0 %v1069
        %v1108 = vpop.f32.mrb[0].mxu0
        %v1109 = vadd.f32 0.0, %v1108
        %v1110 = vpop.f32.mrb[0].mxu0
        %v1111 = vpop.f32.mrb[0].mxu0
        %v1112 = vpop.f32.mrb[0].mxu0
        %1113 = vdwg.mxu0
        %v1115 = vsel %vm975, %v966, 0
        %v1118 = vsel %vm975, %v970, 0
        %1120 = vmatprep.subr.bf16.mxu0 0
        %1121 = vmatpush1.bf16.xpose.msra.mxu0 %v1118
        %1122 = vmatprep.subr.bf16.mxu0 0
        %1123 = vmatpush1.bf16.xpose.msra.mxu0 0
        %1124 = vmatprep.subr.bf16.mxu0 0
        %1125 = vmatpush1.bf16.xpose.msra.mxu0 0
        %1126 = vmatprep.subr.bf16.mxu0 0
        %1127 = vmatpush1.bf16.xpose.msra.mxu0 0
        %1128 = vmatprep.subr.bf16.mxu0 0
        %1129 = vmatpush1.bf16.xpose.msra.mxu0 0
        %1130 = vmatprep.subr.bf16.mxu0 0
        %1131 = vmatpush1.bf16.xpose.msra.mxu0 0
        %1132 = vmatprep.subr.bf16.mxu0 0
        %1133 = vmatpush1.bf16.xpose.msra.mxu0 0
        %1134 = vmatprep.subr.bf16.mxu0 0
        %1135 = vmatpush1.bf16.xpose.msra.mxu0 0
        %1136 = vmatprep.subr.bf16.mxu0 0
        %1137 = vmatpush1.bf16.xpose.msra.mxu0 0
        %1138 = vmatprep.subr.bf16.mxu0 0
        %1139 = vmatpush1.bf16.xpose.msra.mxu0 0
        %1140 = vmatprep.subr.bf16.mxu0 0
        %1141 = vmatpush1.bf16.xpose.msra.mxu0 0
        %1142 = vmatprep.subr.bf16.mxu0 0
        %1143 = vmatpush1.bf16.xpose.msra.mxu0 0
        %1144 = vmatprep.subr.bf16.mxu0 0
        %1145 = vmatpush1.bf16.xpose.msra.mxu0 0
        %1146 = vmatprep.subr.bf16.mxu0 0
        %1147 = vmatpush1.bf16.xpose.msra.mxu0 0
        %1148 = vmatprep.subr.bf16.mxu0 0
        %1149 = vmatpush1.bf16.xpose.msra.mxu0 0
        %1150 = vmatprep.subr.bf16.mxu0 0
        %1151 = vmatpush1.bf16.xpose.msra.mxu0 0
        %1152 = vmatprep.mubr.bf16.mxu0 0
        %1153 = vmatmul.mubr.bf16.gmra.mrb[0].mxu0 %v1115
        %v1154 = vpop.f32.mrb[0].mxu0
        %v1155 = vadd.f32 0.0, %v1154
        %v1156 = vpop.f32.mrb[0].mxu0
        %v1157 = vpop.f32.mrb[0].mxu0
        %v1158 = vpop.f32.mrb[0].mxu0
        %1159 = vdwg.mxu0
        %v1160 = vsel %vm975, %v1017, -inf
        %1161 = vmax.xlane.f32.xlu0 %v1160
        %v1162 = vpop.xlane.xlu0 %1161
        %v1163 = vsel %vm975, %v1063, -inf
        %1164 = vmax.xlane.f32.xlu0 %v1163
        %v1165 = vpop.xlane.xlu0 %1164
        %v1166 = vsel %vm975, %v1109, -inf
        %1167 = vmax.xlane.f32.xlu0 %v1166
        %v1168 = vpop.xlane.xlu0 %1167
        %v1169 = vsel %vm975, %v1155, -inf
        %1170 = vmax.xlane.f32.xlu0 %v1169
        %v1171 = vpop.xlane.xlu0 %1170
        %v1172 = vsub.f32 %v1017, %v1162
        %v1173 = vsub.f32 %v1063, %v1165
        %v1174 = vsub.f32 %v1109, %v1168
        %v1175 = vsub.f32 %v1155, %v1171
        %v1176 = vmul.f32 %v1172, 1.442695
        %v1177 = vpow.pop %v1176
        %v1178 = vmul.f32 %v1173, 1.442695
        %v1179 = vpow.pop %v1178
        %v1180 = vmul.f32 %v1174, 1.442695
        %v1181 = vpow.pop %v1180
        %v1182 = vmul.f32 %v1175, 1.442695
        %v1183 = vpow.pop %v1182
        %v1184 = vsel %vm975, %v1177, 0.0
        %1185 = vadd.xlane.f32.xlu0 %v1184
        %v1186 = vpop.xlane.xlu0 %1185
        %v1187 = vsel %vm975, %v1179, 0.0
        %1188 = vadd.xlane.f32.xlu0 %v1187
        %v1189 = vpop.xlane.xlu0 %1188
        %v1190 = vsel %vm975, %v1181, 0.0
        %1191 = vadd.xlane.f32.xlu0 %v1190
        %v1192 = vpop.xlane.xlu0 %1191
        %v1193 = vsel %vm975, %v1183, 0.0
        %1194 = vadd.xlane.f32.xlu0 %v1193
        %v1195 = vpop.xlane.xlu0 %1194
        %v1196 = vpack.c.bf16 %v1177, %v1177
        %v1197 = vpack.c.bf16 %v1179, %v1179
        %v1198 = vpack.c.bf16 %v1181, %v1181
        %v1199 = vpack.c.bf16 %v1183, %v1183
        %v1201 = vsel %vm975, %v1196, 0
        %vm1203 = vcmask 1043456
        %v1205 = vsel %vm1203, %v971, 0
        %1207 = vmatprep.subr.bf16.mxu0 0
        %1208 = vmatpush1.bf16.msra.mxu0 %v1205
        %1209 = vmatprep.subr.bf16.mxu0 0
        %1210 = vmatpush1.bf16.msra.mxu0 0
        %1211 = vmatprep.subr.bf16.mxu0 0
        %1212 = vmatpush1.bf16.msra.mxu0 0
        %1213 = vmatprep.subr.bf16.mxu0 0
        %1214 = vmatpush1.bf16.msra.mxu0 0
        %1215 = vmatprep.subr.bf16.mxu0 0
        %1216 = vmatpush1.bf16.msra.mxu0 0
        %1217 = vmatprep.subr.bf16.mxu0 0
        %1218 = vmatpush1.bf16.msra.mxu0 0
        %1219 = vmatprep.subr.bf16.mxu0 0
        %1220 = vmatpush1.bf16.msra.mxu0 0
        %1221 = vmatprep.subr.bf16.mxu0 0
        %1222 = vmatpush1.bf16.msra.mxu0 0
        %1223 = vmatprep.subr.bf16.mxu0 0
        %1224 = vmatpush1.bf16.msra.mxu0 0
        %1225 = vmatprep.subr.bf16.mxu0 0
        %1226 = vmatpush1.bf16.msra.mxu0 0
        %1227 = vmatprep.subr.bf16.mxu0 0
        %1228 = vmatpush1.bf16.msra.mxu0 0
        %1229 = vmatprep.subr.bf16.mxu0 0
        %1230 = vmatpush1.bf16.msra.mxu0 0
        %1231 = vmatprep.subr.bf16.mxu0 0
        %1232 = vmatpush1.bf16.msra.mxu0 0
        %1233 = vmatprep.subr.bf16.mxu0 0
        %1234 = vmatpush1.bf16.msra.mxu0 0
        %1235 = vmatprep.subr.bf16.mxu0 0
        %1236 = vmatpush1.bf16.msra.mxu0 0
        %1237 = vmatprep.subr.bf16.mxu0 0
        %1238 = vmatpush1.bf16.msra.mxu0 0
        %1239 = vmatprep.mubr.bf16.mxu0 0
        %1240 = vmatmul.mubr.bf16.gmra.mrb[0].mxu0 %v1201
        %v1241 = vpop.f32.mrb[0].mxu0
        %v1242 = vadd.f32 0.0, %v1241
        %v1243 = vpop.f32.mrb[0].mxu0
        %v1244 = vpop.f32.mrb[0].mxu0
        %v1245 = vpop.f32.mrb[0].mxu0
        %1246 = vdwg.mxu0
        %v1248 = vsel %vm975, %v1197, 0
        %v1251 = vsel %vm1203, %v972, 0
        %1253 = vmatprep.subr.bf16.mxu0 0
        %1254 = vmatpush1.bf16.msra.mxu0 %v1251
        %1255 = vmatprep.subr.bf16.mxu0 0
        %1256 = vmatpush1.bf16.msra.mxu0 0
        %1257 = vmatprep.subr.bf16.mxu0 0
        %1258 = vmatpush1.bf16.msra.mxu0 0
        %1259 = vmatprep.subr.bf16.mxu0 0
        %1260 = vmatpush1.bf16.msra.mxu0 0
        %1261 = vmatprep.subr.bf16.mxu0 0
        %1262 = vmatpush1.bf16.msra.mxu0 0
        %1263 = vmatprep.subr.bf16.mxu0 0
        %1264 = vmatpush1.bf16.msra.mxu0 0
        %1265 = vmatprep.subr.bf16.mxu0 0
        %1266 = vmatpush1.bf16.msra.mxu0 0
        %1267 = vmatprep.subr.bf16.mxu0 0
        %1268 = vmatpush1.bf16.msra.mxu0 0
        %1269 = vmatprep.subr.bf16.mxu0 0
        %1270 = vmatpush1.bf16.msra.mxu0 0
        %1271 = vmatprep.subr.bf16.mxu0 0
        %1272 = vmatpush1.bf16.msra.mxu0 0
        %1273 = vmatprep.subr.bf16.mxu0 0
        %1274 = vmatpush1.bf16.msra.mxu0 0
        %1275 = vmatprep.subr.bf16.mxu0 0
        %1276 = vmatpush1.bf16.msra.mxu0 0
        %1277 = vmatprep.subr.bf16.mxu0 0
        %1278 = vmatpush1.bf16.msra.mxu0 0
        %1279 = vmatprep.subr.bf16.mxu0 0
        %1280 = vmatpush1.bf16.msra.mxu0 0
        %1281 = vmatprep.subr.bf16.mxu0 0
        %1282 = vmatpush1.bf16.msra.mxu0 0
        %1283 = vmatprep.subr.bf16.mxu0 0
        %1284 = vmatpush1.bf16.msra.mxu0 0
        %1285 = vmatprep.mubr.bf16.mxu0 0
        %1286 = vmatmul.mubr.bf16.gmra.mrb[0].mxu0 %v1248
        %v1287 = vpop.f32.mrb[0].mxu0
        %v1288 = vadd.f32 0.0, %v1287
        %v1289 = vpop.f32.mrb[0].mxu0
        %v1290 = vpop.f32.mrb[0].mxu0
        %v1291 = vpop.f32.mrb[0].mxu0
        %1292 = vdwg.mxu0
        %v1294 = vsel %vm975, %v1198, 0
        %v1297 = vsel %vm1203, %v973, 0
        %1299 = vmatprep.subr.bf16.mxu0 0
        %1300 = vmatpush1.bf16.msra.mxu0 %v1297
        %1301 = vmatprep.subr.bf16.mxu0 0
        %1302 = vmatpush1.bf16.msra.mxu0 0
        %1303 = vmatprep.subr.bf16.mxu0 0
        %1304 = vmatpush1.bf16.msra.mxu0 0
        %1305 = vmatprep.subr.bf16.mxu0 0
        %1306 = vmatpush1.bf16.msra.mxu0 0
        %1307 = vmatprep.subr.bf16.mxu0 0
        %1308 = vmatpush1.bf16.msra.mxu0 0
        %1309 = vmatprep.subr.bf16.mxu0 0
        %1310 = vmatpush1.bf16.msra.mxu0 0
        %1311 = vmatprep.subr.bf16.mxu0 0
        %1312 = vmatpush1.bf16.msra.mxu0 0
        %1313 = vmatprep.subr.bf16.mxu0 0
        %1314 = vmatpush1.bf16.msra.mxu0 0
        %1315 = vmatprep.subr.bf16.mxu0 0
        %1316 = vmatpush1.bf16.msra.mxu0 0
        %1317 = vmatprep.subr.bf16.mxu0 0
        %1318 = vmatpush1.bf16.msra.mxu0 0
        %1319 = vmatprep.subr.bf16.mxu0 0
        %1320 = vmatpush1.bf16.msra.mxu0 0
        %1321 = vmatprep.subr.bf16.mxu0 0
        %1322 = vmatpush1.bf16.msra.mxu0 0
        %1323 = vmatprep.subr.bf16.mxu0 0
        %1324 = vmatpush1.bf16.msra.mxu0 0
        %1325 = vmatprep.subr.bf16.mxu0 0
        %1326 = vmatpush1.bf16.msra.mxu0 0
        %1327 = vmatprep.subr.bf16.mxu0 0
        %1328 = vmatpush1.bf16.msra.mxu0 0
        %1329 = vmatprep.subr.bf16.mxu0 0
        %1330 = vmatpush1.bf16.msra.mxu0 0
        %1331 = vmatprep.mubr.bf16.mxu0 0
        %1332 = vmatmul.mubr.bf16.gmra.mrb[0].mxu0 %v1294
        %v1333 = vpop.f32.mrb[0].mxu0
        %v1334 = vadd.f32 0.0, %v1333
        %v1335 = vpop.f32.mrb[0].mxu0
        %v1336 = vpop.f32.mrb[0].mxu0
        %v1337 = vpop.f32.mrb[0].mxu0
        %1338 = vdwg.mxu0
        %v1340 = vsel %vm975, %v1199, 0
        %v1343 = vsel %vm1203, %v974, 0
        %1345 = vmatprep.subr.bf16.mxu0 0
        %1346 = vmatpush1.bf16.msra.mxu0 %v1343
        %1347 = vmatprep.subr.bf16.mxu0 0
        %1348 = vmatpush1.bf16.msra.mxu0 0
        %1349 = vmatprep.subr.bf16.mxu0 0
        %1350 = vmatpush1.bf16.msra.mxu0 0
        %1351 = vmatprep.subr.bf16.mxu0 0
        %1352 = vmatpush1.bf16.msra.mxu0 0
        %1353 = vmatprep.subr.bf16.mxu0 0
        %1354 = vmatpush1.bf16.msra.mxu0 0
        %1355 = vmatprep.subr.bf16.mxu0 0
        %1356 = vmatpush1.bf16.msra.mxu0 0
        %1357 = vmatprep.subr.bf16.mxu0 0
        %1358 = vmatpush1.bf16.msra.mxu0 0
        %1359 = vmatprep.subr.bf16.mxu0 0
        %1360 = vmatpush1.bf16.msra.mxu0 0
        %1361 = vmatprep.subr.bf16.mxu0 0
        %1362 = vmatpush1.bf16.msra.mxu0 0
        %1363 = vmatprep.subr.bf16.mxu0 0
        %1364 = vmatpush1.bf16.msra.mxu0 0
        %1365 = vmatprep.subr.bf16.mxu0 0
        %1366 = vmatpush1.bf16.msra.mxu0 0
        %1367 = vmatprep.subr.bf16.mxu0 0
        %1368 = vmatpush1.bf16.msra.mxu0 0
        %1369 = vmatprep.subr.bf16.mxu0 0
        %1370 = vmatpush1.bf16.msra.mxu0 0
        %1371 = vmatprep.subr.bf16.mxu0 0
        %1372 = vmatpush1.bf16.msra.mxu0 0
        %1373 = vmatprep.subr.bf16.mxu0 0
        %1374 = vmatpush1.bf16.msra.mxu0 0
        %1375 = vmatprep.subr.bf16.mxu0 0
        %1376 = vmatpush1.bf16.msra.mxu0 0
        %1377 = vmatprep.mubr.bf16.mxu0 0
        %1378 = vmatmul.mubr.bf16.gmra.mrb[0].mxu0 %v1340
        %v1379 = vpop.f32.mrb[0].mxu0
        %v1380 = vadd.f32 0.0, %v1379
        %v1381 = vpop.f32.mrb[0].mxu0
        %v1382 = vpop.f32.mrb[0].mxu0
        %v1383 = vpop.f32.mrb[0].mxu0
        %1384 = vdwg.mxu0
        %v1385 = vrcp.pop %v1186
        %v1386 = vrcp.pop %v1189
        %v1387 = vrcp.pop %v1192
        %v1388 = vrcp.pop %v1195
        %v1389 = vmul.f32 %v1242, %v1385
        %v1390 = vmul.f32 %v1288, %v1386
        %v1391 = vmul.f32 %v1334, %v1387
        %v1392 = vmul.f32 %v1380, %v1388
        %v1393 = vcombine.low %v1389, %v1391
        %v1394 = vcombine.high %v1389, %v1391
        %v1396 = vunpack.c.l.s4 1983009808
        %v1397 = vunpack.c.0.s8 %v1396
        %v1398 = vlaneseq
        %v1399 = vshrl.u32 %v1398, 7
        %v1400 = vsub.s32 %v1397, %v1399
        %v1401 = vrot.slane %v1393, %v1400
        %v1403 = vunpack.c.l.s4 1983009808
        %v1404 = vunpack.c.0.s8 %v1403
        %v1405 = vlaneseq
        %v1406 = vshrl.u32 %v1405, 7
        %v1407 = vsub.s32 %v1404, %v1406
        %v1408 = vrot.slane %v1394, %v1407
        %v1409 = vcombine.low %v1390, %v1392
        %v1410 = vcombine.high %v1390, %v1392
        %v1412 = vunpack.c.l.s4 1983009808
        %v1413 = vunpack.c.0.s8 %v1412
        %v1414 = vlaneseq
        %v1415 = vshrl.u32 %v1414, 7
        %v1416 = vsub.s32 %v1413, %v1415
        %v1417 = vrot.slane %v1409, %v1416
        %v1419 = vunpack.c.l.s4 1983009808
        %v1420 = vunpack.c.0.s8 %v1419
        %v1421 = vlaneseq
        %v1422 = vshrl.u32 %v1421, 7
        %v1423 = vsub.s32 %v1420, %v1422
        %v1424 = vrot.slane %v1410, %v1423
        %v1425 = vcombine.low %v1401, %v1417
        %v1426 = vcombine.high %v1401, %v1417
        %v1428 = vunpack.c.l.s4 1934713408
        %v1429 = vunpack.c.0.s8 %v1428
        %v1430 = vlaneseq
        %v1431 = vshrl.u32 %v1430, 7
        %v1432 = vsub.s32 %v1429, %v1431
        %v1433 = vrot.slane %v1425, %v1432
        %v1435 = vunpack.c.l.s4 1934713408
        %v1436 = vunpack.c.0.s8 %v1435
        %v1437 = vlaneseq
        %v1438 = vshrl.u32 %v1437, 7
        %v1439 = vsub.s32 %v1436, %v1438
        %v1440 = vrot.slane %v1426, %v1439
        %v1441 = vcombine.low %v1408, %v1424
        %v1442 = vcombine.high %v1408, %v1424
        %v1444 = vunpack.c.l.s4 1934713408
        %v1445 = vunpack.c.0.s8 %v1444
        %v1446 = vlaneseq
        %v1447 = vshrl.u32 %v1446, 7
        %v1448 = vsub.s32 %v1445, %v1447
        %v1449 = vrot.slane %v1441, %v1448
        %v1451 = vunpack.c.l.s4 1934713408
        %v1452 = vunpack.c.0.s8 %v1451
        %v1453 = vlaneseq
        %v1454 = vshrl.u32 %v1453, 7
        %v1455 = vsub.s32 %v1452, %v1454
        %v1456 = vrot.slane %v1442, %v1455
        %v1457 = vcombine.high %v1433, 0.0
        %v1458 = vcombine.high %v1440, 0.0
        %v1459 = vcombine.high %v1449, 0.0
        %v1460 = vcombine.high %v1456, 0.0
        %v1461 = vcombine.low %v1433, %v1440
        %v1463 = vunpack.c.l.s4 1983009808
        %v1464 = vunpack.c.0.s8 %v1463
        %v1465 = vlaneseq
        %v1466 = vshrl.u32 %v1465, 7
        %v1467 = vsub.s32 %v1464, %v1466
        %v1468 = vrot.slane %v1461, %v1467
        %v1469 = vcombine.low %v1457, %v1458
        %v1471 = vunpack.c.l.s4 1983009808
        %v1472 = vunpack.c.0.s8 %v1471
        %v1473 = vlaneseq
        %v1474 = vshrl.u32 %v1473, 7
        %v1475 = vsub.s32 %v1472, %v1474
        %v1476 = vrot.slane %v1469, %v1475
        %v1477 = vcombine.low %v1449, %v1456
        %v1479 = vunpack.c.l.s4 1983009808
        %v1480 = vunpack.c.0.s8 %v1479
        %v1481 = vlaneseq
        %v1482 = vshrl.u32 %v1481, 7
        %v1483 = vsub.s32 %v1480, %v1482
        %v1484 = vrot.slane %v1477, %v1483
        %v1485 = vcombine.low %v1459, %v1460
        %v1487 = vunpack.c.l.s4 1983009808
        %v1488 = vunpack.c.0.s8 %v1487
        %v1489 = vlaneseq
        %v1490 = vshrl.u32 %v1489, 7
        %v1491 = vsub.s32 %v1488, %v1490
        %v1492 = vrot.slane %v1485, %v1491
        %v1493 = vcombine.low %v1468, %v1476
        %v1494 = vcombine.high %v1468, %v1476
        %v1496 = vunpack.c.l.s4 1934713408
        %v1497 = vunpack.c.0.s8 %v1496
        %v1498 = vlaneseq
        %v1499 = vshrl.u32 %v1498, 7
        %v1500 = vsub.s32 %v1497, %v1499
        %v1501 = vrot.slane %v1493, %v1500
        %v1503 = vunpack.c.l.s4 1934713408
        %v1504 = vunpack.c.0.s8 %v1503
        %v1505 = vlaneseq
        %v1506 = vshrl.u32 %v1505, 7
        %v1507 = vsub.s32 %v1504, %v1506
        %v1508 = vrot.slane %v1494, %v1507
        %v1509 = vcombine.low %v1484, %v1492
        %v1510 = vcombine.high %v1484, %v1492
        %v1512 = vunpack.c.l.s4 1934713408
        %v1513 = vunpack.c.0.s8 %v1512
        %v1514 = vlaneseq
        %v1515 = vshrl.u32 %v1514, 7
        %v1516 = vsub.s32 %v1513, %v1515
        %v1517 = vrot.slane %v1509, %v1516
        %v1519 = vunpack.c.l.s4 1934713408
        %v1520 = vunpack.c.0.s8 %v1519
        %v1521 = vlaneseq
        %v1522 = vshrl.u32 %v1521, 7
        %v1523 = vsub.s32 %v1520, %v1522
        %v1524 = vrot.slane %v1510, %v1523
        %v1525 = vcombine.low %v1501, %v1517
        %v1526 = vcombine.high %v1501, %v1517
        %v1527 = vcombine.low %v1508, %v1524
        %v1528 = vcombine.high %v1508, %v1524
        %1530 = vrot.lane.b32.xlu0 %v1526, 8
        %v1531 = vpop.permute.xlu0 %1530
        %1534 = vrot.lane.b32.xlu0 %v1527, 16
        %v1535 = vpop.permute.xlu0 %1534
        %1538 = vrot.lane.b32.xlu0 %v1528, 24
        %v1539 = vpop.permute.xlu0 %1538
        %v1541 = vsel %vm975, %v1525, %v1531
        %vm1542 = vcmask 130048
        %v1543 = vsel %vm1542, %v1541, %v1535
        %vm1544 = vcmask 195584
        %v1545 = vsel %vm1544, %v1543, %v1539
        %v1546 = vpack.c.bf16 %v1545, %v1545
        %v1547 = vld [vmem:[%s3] sm:$0xf]
        %v1548 = vld [vmem:[%s3 + $0x4] sm:$0xf]
        %v1549 = vld [vmem:[%s3 + $0x8] sm:$0xf]
        %v1550 = vld [vmem:[%s3 + $0xc] sm:$0xf]
        %v1551 = vld [vmem:[%s4] sm:$0x1]
        %v1553 = vlaneseq
        %v1554 = vshrl.u32 %v1553, 7
        %v1555 = vsub.s32 0, %v1554
        %v1556 = vrot.slane %v1551, %v1555
        %v1562 = vunpack.c.l.b16 %v1547
        %v1563 = vunpack.c.l.b16 %v1548
        %v1564 = vunpack.c.l.b16 %v1549
        %v1565 = vunpack.c.l.b16 %v1550
        %v1566 = vpack.c.b16 %v1563, %v1562
        %v1567 = vpack.c.b16 %v1565, %v1564
        %v1571 = vsel %vm477, %v1546, 0
        %1573 = vmatprep.subr.bf16.mxu0 0
        %1574 = vmatpush1.bf16.msra.mxu0 %v1566
        %1575 = vmatprep.subr.bf16.mxu0 0
        %1576 = vmatpush1.bf16.msra.mxu0 %v1567
        %1577 = vmatprep.subr.bf16.mxu0 0
        %1578 = vmatpush1.bf16.msra.mxu0 0
        %1579 = vmatprep.subr.bf16.mxu0 0
        %1580 = vmatpush1.bf16.msra.mxu0 0
        %1581 = vmatprep.subr.bf16.mxu0 0
        %1582 = vmatpush1.bf16.msra.mxu0 0
        %1583 = vmatprep.subr.bf16.mxu0 0
        %1584 = vmatpush1.bf16.msra.mxu0 0
        %1585 = vmatprep.subr.bf16.mxu0 0
        %1586 = vmatpush1.bf16.msra.mxu0 0
        %1587 = vmatprep.subr.bf16.mxu0 0
        %1588 = vmatpush1.bf16.msra.mxu0 0
        %1589 = vmatprep.subr.bf16.mxu0 0
        %1590 = vmatpush1.bf16.msra.mxu0 0
        %1591 = vmatprep.subr.bf16.mxu0 0
        %1592 = vmatpush1.bf16.msra.mxu0 0
        %1593 = vmatprep.subr.bf16.mxu0 0
        %1594 = vmatpush1.bf16.msra.mxu0 0
        %1595 = vmatprep.subr.bf16.mxu0 0
        %1596 = vmatpush1.bf16.msra.mxu0 0
        %1597 = vmatprep.subr.bf16.mxu0 0
        %1598 = vmatpush1.bf16.msra.mxu0 0
        %1599 = vmatprep.subr.bf16.mxu0 0
        %1600 = vmatpush1.bf16.msra.mxu0 0
        %1601 = vmatprep.subr.bf16.mxu0 0
        %1602 = vmatpush1.bf16.msra.mxu0 0
        %1603 = vmatprep.subr.bf16.mxu0 0
        %1604 = vmatpush1.bf16.msra.mxu0 0
        %1605 = vmatprep.mubr.bf16.mxu0 0
        %1606 = vmatmul.mubr.bf16.gmra.mrb[0].mxu0 %v1571
        %v1607 = vpop.f32.mrb[0].mxu0
        %v1608 = vadd.f32 %v1556, %v1607
        %v1609 = vpop.f32.mrb[0].mxu0
        %v1610 = vpop.f32.mrb[0].mxu0
        %v1611 = vpop.f32.mrb[0].mxu0
        %1612 = vdwg.mxu0
        %v1613 = vadd.f32 %v452, %v1608
        %v1614 = vld [vmem:[%s5] sm:$0x1]
        %v1615 = vld [vmem:[%s6] sm:$0x1]
        %v1616 = vsel %vm477, %v1613, 0.0
        %1617 = vadd.xlane.f32.xlu0 %v1616
        %v1618 = vpop.xlane.xlu0 %1617
        %v1619 = vrcp.pop 32.0
        %v1620 = vmul.f32 %v1618, %v1619
        %v1621 = vsub.f32 %v1613, %v1620
        %v1622 = vmul.f32 %v1621, %v1621
        %v1623 = vsel %vm477, %v1622, 0.0
        %1624 = vadd.xlane.f32.xlu0 %v1623
        %v1625 = vpop.xlane.xlu0 %1624
        %v1626 = vmul.f32 %v1625, %v1619
        %v1627 = vadd.f32 %v1626, 1e-05
        %v1628 = vrsqrt.pop %v1627
        %v1629 = vmul.f32 %v1621, %v1628
        %v1631 = vlaneseq
        %v1632 = vshrl.u32 %v1631, 7
        %v1633 = vsub.s32 0, %v1632
        %v1634 = vrot.slane %v1614, %v1633
        %v1636 = vmul.f32 %v1629, %v1634
        %v1638 = vlaneseq
        %v1639 = vshrl.u32 %v1638, 7
        %v1640 = vsub.s32 0, %v1639
        %v1641 = vrot.slane %v1615, %v1640
        %v1643 = vadd.f32 %v1636, %v1641
        %v1644 = vpack.c.bf16 %v1643, %v1643
        %v1645 = vld [vmem:[#allocation2] sm:$0xf]
        %v1646 = vld [vmem:[#allocation2 + $0x4] sm:$0xf]
        %v1647 = vld [vmem:[#allocation2 + $0x8] sm:$0xf]
        %v1648 = vld [vmem:[#allocation2 + $0xc] sm:$0xf]
        %v1649 = vld [vmem:[%s8] sm:$0x1]
        %v1651 = vlaneseq
        %v1652 = vshrl.u32 %v1651, 7
        %v1653 = vsub.s32 0, %v1652
        %v1654 = vrot.slane %v1649, %v1653
        %v1660 = vunpack.c.l.b16 %v1645
        %v1661 = vunpack.c.l.b16 %v1646
        %v1662 = vunpack.c.l.b16 %v1647
        %v1663 = vunpack.c.l.b16 %v1648
        %v1664 = vpack.c.b16 %v1661, %v1660
        %v1665 = vpack.c.b16 %v1663, %v1662
        %v1669 = vsel %vm477, %v1644, 0
        %1671 = vmatprep.subr.bf16.mxu0 0
        %1672 = vmatpush1.bf16.msra.mxu0 %v1664
        %1673 = vmatprep.subr.bf16.mxu0 0
        %1674 = vmatpush1.bf16.msra.mxu0 %v1665
        %1675 = vmatprep.subr.bf16.mxu0 0
        %1676 = vmatpush1.bf16.msra.mxu0 0
        %1677 = vmatprep.subr.bf16.mxu0 0
        %1678 = vmatpush1.bf16.msra.mxu0 0
        %1679 = vmatprep.subr.bf16.mxu0 0
        %1680 = vmatpush1.bf16.msra.mxu0 0
        %1681 = vmatprep.subr.bf16.mxu0 0
        %1682 = vmatpush1.bf16.msra.mxu0 0
        %1683 = vmatprep.subr.bf16.mxu0 0
        %1684 = vmatpush1.bf16.msra.mxu0 0
        %1685 = vmatprep.subr.bf16.mxu0 0
        %1686 = vmatpush1.bf16.msra.mxu0 0
        %1687 = vmatprep.subr.bf16.mxu0 0
        %1688 = vmatpush1.bf16.msra.mxu0 0
        %1689 = vmatprep.subr.bf16.mxu0 0
        %1690 = vmatpush1.bf16.msra.mxu0 0
        %1691 = vmatprep.subr.bf16.mxu0 0
        %1692 = vmatpush1.bf16.msra.mxu0 0
        %1693 = vmatprep.subr.bf16.mxu0 0
        %1694 = vmatpush1.bf16.msra.mxu0 0
        %1695 = vmatprep.subr.bf16.mxu0 0
        %1696 = vmatpush1.bf16.msra.mxu0 0
        %1697 = vmatprep.subr.bf16.mxu0 0
        %1698 = vmatpush1.bf16.msra.mxu0 0
        %1699 = vmatprep.subr.bf16.mxu0 0
        %1700 = vmatpush1.bf16.msra.mxu0 0
        %1701 = vmatprep.subr.bf16.mxu0 0
        %1702 = vmatpush1.bf16.msra.mxu0 0
        %1703 = vmatprep.mubr.bf16.mxu0 0
        %1704 = vmatmul.mubr.bf16.gmra.mrb[0].mxu0 %v1669
        %v1705 = vpop.f32.mrb[0].mxu0
        %v1706 = vadd.f32 %v1654, %v1705
        %v1707 = vpop.f32.mrb[0].mxu0
        %v1708 = vpop.f32.mrb[0].mxu0
        %v1709 = vpop.f32.mrb[0].mxu0
        %1710 = vdwg.mxu0
        %v1711 = vmul.f32 %v1706, 0.5
        %v1712 = vmul.f32 %v1706, 0.70710677
        %v1713 = verf.f32.pop %v1712
        %v1714 = vadd.f32 %v1713, 1.0
        %v1715 = vmul.f32 %v1711, %v1714
        %v1716 = vpack.c.bf16 %v1715, %v1715
        %v1717 = vld [vmem:[%s9] sm:$0xf]
        %v1718 = vld [vmem:[%s9 + $0x4] sm:$0xf]
        %v1719 = vld [vmem:[%s9 + $0x8] sm:$0xf]
        %v1720 = vld [vmem:[%s9 + $0xc] sm:$0xf]
        %v1721 = vld [vmem:[%s9 + $0x10] sm:$0xf]
        %v1722 = vld [vmem:[%s9 + $0x14] sm:$0xf]
        %v1723 = vld [vmem:[%s9 + $0x18] sm:$0xf]
        %v1724 = vld [vmem:[%s9 + $0x1c] sm:$0xf]
        %v1725 = vld [vmem:[%s10] sm:$0x1]
        %v1727 = vlaneseq
        %v1728 = vshrl.u32 %v1727, 7
        %v1729 = vsub.s32 0, %v1728
        %v1730 = vrot.slane %v1725, %v1729
        %v1740 = vunpack.c.l.b16 %v1717
        %v1741 = vunpack.c.l.b16 %v1718
        %v1742 = vunpack.c.l.b16 %v1719
        %v1743 = vunpack.c.l.b16 %v1720
        %v1744 = vunpack.c.l.b16 %v1721
        %v1745 = vunpack.c.l.b16 %v1722
        %v1746 = vunpack.c.l.b16 %v1723
        %v1747 = vunpack.c.l.b16 %v1724
        %v1748 = vpack.c.b16 %v1741, %v1740
        %v1749 = vpack.c.b16 %v1743, %v1742
        %v1750 = vpack.c.b16 %v1745, %v1744
        %v1751 = vpack.c.b16 %v1747, %v1746
        %vm1756 = vcmask 523264
        %v1758 = vsel %vm1756, %v1716, 0
        %1760 = vmatprep.subr.bf16.mxu0 0
        %1761 = vmatpush1.bf16.msra.mxu0 %v1748
        %1762 = vmatprep.subr.bf16.mxu0 0
        %1763 = vmatpush1.bf16.msra.mxu0 %v1749
        %1764 = vmatprep.subr.bf16.mxu0 0
        %1765 = vmatpush1.bf16.msra.mxu0 %v1750
        %1766 = vmatprep.subr.bf16.mxu0 0
        %1767 = vmatpush1.bf16.msra.mxu0 %v1751
        %1768 = vmatprep.subr.bf16.mxu0 0
        %1769 = vmatpush1.bf16.msra.mxu0 0
        %1770 = vmatprep.subr.bf16.mxu0 0
        %1771 = vmatpush1.bf16.msra.mxu0 0
        %1772 = vmatprep.subr.bf16.mxu0 0
        %1773 = vmatpush1.bf16.msra.mxu0 0
        %1774 = vmatprep.subr.bf16.mxu0 0
        %1775 = vmatpush1.bf16.msra.mxu0 0
        %1776 = vmatprep.subr.bf16.mxu0 0
        %1777 = vmatpush1.bf16.msra.mxu0 0
        %1778 = vmatprep.subr.bf16.mxu0 0
        %1779 = vmatpush1.bf16.msra.mxu0 0
        %1780 = vmatprep.subr.bf16.mxu0 0
        %1781 = vmatpush1.bf16.msra.mxu0 0
        %1782 = vmatprep.subr.bf16.mxu0 0
        %1783 = vmatpush1.bf16.msra.mxu0 0
        %1784 = vmatprep.subr.bf16.mxu0 0
        %1785 = vmatpush1.bf16.msra.mxu0 0
        %1786 = vmatprep.subr.bf16.mxu0 0
        %1787 = vmatpush1.bf16.msra.mxu0 0
        %1788 = vmatprep.subr.bf16.mxu0 0
        %1789 = vmatpush1.bf16.msra.mxu0 0
        %1790 = vmatprep.subr.bf16.mxu0 0
        %1791 = vmatpush1.bf16.msra.mxu0 0
        %1792 = vmatprep.mubr.bf16.mxu0 0
        %1793 = vmatmul.mubr.bf16.gmra.mrb[0].mxu0 %v1758
        %v1794 = vpop.f32.mrb[0].mxu0
        %v1795 = vadd.f32 %v1730, %v1794
        %v1796 = vpop.f32.mrb[0].mxu0
        %v1797 = vpop.f32.mrb[0].mxu0
        %v1798 = vpop.f32.mrb[0].mxu0
        %1799 = vdwg.mxu0
        %v1800 = vadd.f32 %v1643, %v1795
        %v1801 = vld [vmem:[%s11] sm:$0x1]
        %v1802 = vld [vmem:[%s12] sm:$0x1]
        %v1803 = vsel %vm477, %v1800, 0.0
        %1804 = vadd.xlane.f32.xlu0 %v1803
        %v1805 = vpop.xlane.xlu0 %1804
        %v1806 = vmul.f32 %v1805, %v1619
        %v1807 = vsub.f32 %v1800, %v1806
        %v1808 = vmul.f32 %v1807, %v1807
        %v1809 = vsel %vm477, %v1808, 0.0
        %1810 = vadd.xlane.f32.xlu0 %v1809
        %v1811 = vpop.xlane.xlu0 %1810
        %v1812 = vmul.f32 %v1811, %v1619
        %v1813 = vadd.f32 %v1812, 1e-05
        %v1814 = vrsqrt.pop %v1813
        %v1815 = vmul.f32 %v1807, %v1814
        %v1817 = vlaneseq
        %v1818 = vshrl.u32 %v1817, 7
        %v1819 = vsub.s32 0, %v1818
        %v1820 = vrot.slane %v1801, %v1819
        %v1822 = vmul.f32 %v1815, %v1820
        %v1824 = vlaneseq
        %v1825 = vshrl.u32 %v1824, 7
        %v1826 = vsub.s32 0, %v1825
        %v1827 = vrot.slane %v1802, %v1826
        %v1829 = vadd.f32 %v1822, %v1827
        %1830 = vst.msk [vmem:[%s446] sm:$0xff] %vm477, %v1829
        %s1831 = sand.u32 %s314, 1
        %s1832 = scalar_lea.sflag [#allocation4], %s1831
        %s1833 = sand.u32 %s314, 1
        %s1834 = smul.addr %s1833, 8
        %s1835 = scalar_lea.vmem [#allocation5], %s1834
        // Predicated region
        $region77: #{tpu_custom_call.1} parent=71 // pred_check
          %p1836 = pneg %p324
        $region78: #{tpu_custom_call.1} parent=71 // pred_check_branch
          %1838 = sbr.rel (%p1836) target = $region80
        $region79: #{tpu_custom_call.1} parent=71 // pred_region
          %s1840 = ssub.s32 128, 128
          %1841 = vsyncadd %s1832, %s1840
          %s1842 = smul.addr %s28, 128
          %s1843 = scalar_lea.hbm %s13, %s1842
          %s1845 = sshll.u32 %s1835, 4
          %s1846 = int_to_ptr.vmem [resolvable:$true] %s1845
          %1848 = dma.vmem_to_hbm [thread:$0]  %s1846, 128, %s1843, %s1832
        $region80: #{tpu_custom_call.1} parent=71 // pred_fallthru
          _
      $region72: #{tpu_custom_call.1} parent=5 // pred_fallthru
        _
      %p1849 = scmp.le.s32.totalorder 2, %s23
      // Predicated region
      $region81: #{tpu_custom_call.1} parent=5 // pred_check
        %p1850 = pneg %p1849
      $region82: #{tpu_custom_call.1} parent=5 // pred_check_branch
        %1852 = sbr.rel (%p1850) target = $region84
      $region83: #{tpu_custom_call.1} parent=5 // pred_region
        %s1853 = ssub.s32 %s23, 2
        // Predicated region
        $region85: #{tpu_custom_call.1} parent=83 // pred_check
          %p1854 = pneg %p330
        $region86: #{tpu_custom_call.1} parent=83 // pred_check_branch
          %1856 = sbr.rel (%p1854) target = $region88
        $region87: #{tpu_custom_call.1} parent=83 // pred_region
          %s1857 = sand.u32 %s315, 1
          %s1858 = scalar_lea.sflag [#allocation4], %s1857
          %s1859 = sand.u32 %s315, 1
          %s1860 = smul.addr %s1859, 8
          %s1861 = scalar_lea.vmem [#allocation5], %s1860
          %1862 = dma.done %s1858, 128
        $region88: #{tpu_custom_call.1} parent=83 // pred_fallthru
          _
      $region84: #{tpu_custom_call.1} parent=5 // pred_fallthru
        _
    $region6: #{tpu_custom_call.1} parent=1 // loop_footer
      %s27 = sadd.s32 1, %s23
    $region7: #{tpu_custom_call.1} parent=1 // loop_footer_branch
      %22 = sbr.rel target = $region3
    $region8: #{tpu_custom_call.1} parent=1 // loop_exit
      _
    %1863 = vsyncpa [#allocation3], 1
    %s1864 = scalar_lea.sflag [#allocation3], 1
    %1865 = vsyncpa %s1864, 1
    %1866 = vsyncpa [#allocation4], 1
    %s1867 = scalar_lea.sflag [#allocation4], 1
    %1868 = vsyncpa %s1867, 1

</llo_original>
